<compile_context>
chip_gen: v6e
topology: v6e:2x2x1
jax: 0.10.0
libtpu: 0.0.40
codegen_flags: <defaults>
</compile_context>

<pallas_src>
import math
import numpy as np
import jax
import jax.numpy as jnp
from jax.experimental import pallas as pl
from jax.experimental.pallas import tpu as pltpu


def _round_up(v, m):
    return (v + m - 1) // m * m


def wavenet_denoiser_forward(x, diffusion_step, conditioner, params, *, batch_block=2):
    """x:[B,M,T] f32, diffusion_step:[B] f32, conditioner:[B,E,T] f32 -> [B,M,T] f32."""
    B, M, T = x.shape
    E = conditioner.shape[1]
    L = params["conv_w"].shape[0]
    R = params["in_w"].shape[1]
    twoR = 2 * R
    half = R // 2
    inv_sqrt2 = 1.0 / math.sqrt(2.0)
    inv_sqrtL = 1.0 / math.sqrt(float(L))
    f32, bf16 = jnp.float32, jnp.bfloat16

    # ---- one-shot math stays in XLA (frees VMEM, removes 1-row MXU matmuls) ------
    emb_c = math.log(10000.0) / (half - 1)
    freqs = jnp.exp(-emb_c * jnp.arange(half, dtype=f32))
    ang = diffusion_step.astype(f32)[:, None] * freqs[None, :]
    emb = jnp.concatenate([jnp.sin(ang), jnp.cos(ang)], axis=-1)              # [B,R]
    h = emb @ params["mlp_w1"].astype(f32)
    h = h * jnp.tanh(jax.nn.softplus(h))                                      # Mish
    d = h @ params["mlp_w2"].astype(f32)                                      # [B,R]
    dsteps = jnp.einsum("br,lrs->bls", d, params["dproj_w"].astype(f32))      # [B,L,R]

    # ---- batch-row blocking: amortize the per-layer weight stream over Bb items --
    Bb = max(1, min(int(batch_block), B))
    if (Bb * T) % 8 != 0 and Bb != B:
        Bb = B                      # fall back to a single full-batch block
    Bpad = _round_up(B, Bb)
    BT = Bb * T
    nb = Bpad // Bb
    Mp = _round_up(M, 128)          # lane-dense x load / output store

    # ---- channel-last, (batch,time) merged rows: every 1x1 conv = one MXU matmul -
    x_rows = jnp.transpose(x, (0, 2, 1)).astype(f32)                          # [B,T,M]
    x_rows = jnp.pad(x_rows, ((0, Bpad - B), (0, 0), (0, Mp - M))).reshape(Bpad * T, Mp)
    c_rows = jnp.transpose(conditioner, (0, 2, 1)).astype(f32)                # [B,T,E]
    c_rows = jnp.pad(c_rows, ((0, Bpad - B), (0, 0), (0, 0))).reshape(Bpad * T, E)
    dsteps = jnp.pad(dsteps, ((0, Bpad - B), (0, 0), (0, 0))).reshape(Bpad, L, 1, R)

    # ---- weights to bf16 (halves HBM weight traffic, doubles MXU rate) -----------
    cw = params["conv_w"].astype(bf16)                                        # [L,3,R,2R]
    kw = params["cond_w"].astype(bf16)                                        # [L,E,2R]
    ow = params["out_w"].astype(bf16)                                         # [L,R,2R]
    layer_b = jnp.stack([params["conv_b"] + params["cond_b"],                 # z bias
                         params["out_b"]], axis=1).astype(f32)                # [L,2,2R]
    inw = jnp.pad(params["in_w"], ((0, Mp - M), (0, 0))).astype(bf16)         # [Mp,R]
    inb = params["in_b"].reshape(1, R).astype(f32)
    skw = params["skip_w"].astype(bf16)                                       # [R,R]
    skb = params["skip_b"].reshape(1, R).astype(f32)
    opw = jnp.pad(params["outp_w"], ((0, 0), (0, Mp - M))).astype(bf16)       # [R,Mp]
    opb = jnp.pad(params["outp_b"], ((0, Mp - M),)).reshape(1, Mp).astype(f32)

    def kernel(x_ref, c_ref, d_ref, cw_ref, kw_ref, ow_ref, lb_ref,
               inw_ref, inb_ref, skw_ref, skb_ref, opw_ref, opb_ref,
               o_ref, x_sc, skip_sc):
        l = pl.program_id(1)

        @pl.when(l == 0)
        def _init():
            x0 = jnp.dot(x_ref[...].astype(bf16), inw_ref[...],
                         preferred_element_type=f32) + inb_ref[...]
            x_sc[...] = jnp.maximum(x0, 0.0)
            skip_sc[...] = jnp.zeros_like(skip_sc)

        xcur = x_sc[...]                                                      # [BT,R] f32

        # y = x + diffusion_projection(d) per batch item inside the row block
        if Bb == 1:
            y = xcur + d_ref[0]
        else:
            y = jnp.concatenate(
                [xcur[j * T:(j + 1) * T, :] + d_ref[j] for j in range(Bb)], axis=0)

        # k=3 / dilation=1 conv as three time-shifted matmuls (roll = XLU slot).
        # Edge rows of every item are zeroed so zero-padding never leaks across
        # time or across batch items sharing the block.
        rid = jax.lax.broadcasted_iota(jnp.int32, (BT, 1), 0)
        first = rid == 0
        last = rid == T - 1
        for j in range(1, Bb):
            first = jnp.logical_or(first, rid == j * T)
            last = jnp.logical_or(last, rid == j * T + T - 1)
        y_prev = pltpu.roll(y, shift=1, axis=0) * jnp.where(first, 0.0, 1.0)
        y_next = pltpu.roll(y, shift=BT - 1, axis=0) * jnp.where(last, 0.0, 1.0)

        bias = lb_ref[...]                                                    # [2,2R] f32
        z = (jnp.dot(y_prev.astype(bf16), cw_ref[0], preferred_element_type=f32)
             + jnp.dot(y.astype(bf16), cw_ref[1], preferred_element_type=f32)
             + jnp.dot(y_next.astype(bf16), cw_ref[2], preferred_element_type=f32)
             + jnp.dot(c_ref[...].astype(bf16), kw_ref[...], preferred_element_type=f32)
             + bias[0:1, :])
        # gate | filter halves: lane-aligned slice when R % 128 == 0 (prod R=512);
        # still correct (relayout only) for other R.
        act = jax.nn.sigmoid(z[:, :R]) * jnp.tanh(z[:, R:])                   # [BT,R] f32

        o = (jnp.dot(act.astype(bf16), ow_ref[...], preferred_element_type=f32)
             + bias[1:2, :])
        x_sc[...] = (xcur + o[:, :R]) * inv_sqrt2                             # residual
        skip_sc[...] = skip_sc[...] + o[:, R:]                                # skip sum

        @pl.when(l == pl.num_programs(1) - 1)
        def _final():
            s = skip_sc[...] * inv_sqrtL
            s = jnp.dot(s.astype(bf16), skw_ref[...],
                        preferred_element_type=f32) + skb_ref[...]
            s = jnp.maximum(s, 0.0)
            out = jnp.dot(s.astype(bf16), opw_ref[...],
                          preferred_element_type=f32) + opb_ref[...]
            o_ref[...] = out.astype(o_ref.dtype)

    try:
        vmem_cap = pltpu.get_tpu_info().vmem_capacity_bytes
    except Exception:
        vmem_cap = 64 * 1024 * 1024        # conservative (v7x-sized) fallback
    vmem_limit = int(min(vmem_cap * 0.85, 110 * 1024 * 1024))

    out_rows = pl.pallas_call(
        kernel,
        out_shape=jax.ShapeDtypeStruct((Bpad * T, Mp), jnp.float32),
        grid=(nb, L),
        in_specs=[
            pl.BlockSpec((BT, Mp), lambda bb, l: (bb, 0)),                    # x rows
            pl.BlockSpec((BT, E), lambda bb, l: (bb, 0)),                     # cond rows
            pl.BlockSpec((Bb, None, 1, R), lambda bb, l: (bb, l, 0, 0)),      # dsteps
            pl.BlockSpec((None, 3, R, twoR), lambda bb, l: (l, 0, 0, 0)),     # conv_w
            pl.BlockSpec((None, E, twoR), lambda bb, l: (l, 0, 0)),           # cond_w
            pl.BlockSpec((None, R, twoR), lambda bb, l: (l, 0, 0)),           # out_w
            pl.BlockSpec((None, 2, twoR), lambda bb, l: (l, 0, 0)),           # packed biases
            pl.BlockSpec((Mp, R), lambda bb, l: (0, 0)),                      # in_w
            pl.BlockSpec((1, R), lambda bb, l: (0, 0)),                       # in_b
            pl.BlockSpec((R, R), lambda bb, l: (0, 0)),                       # skip_w
            pl.BlockSpec((1, R), lambda bb, l: (0, 0)),                       # skip_b
            pl.BlockSpec((R, Mp), lambda bb, l: (0, 0)),                      # outp_w
            pl.BlockSpec((1, Mp), lambda bb, l: (0, 0)),                      # outp_b
        ],
        out_specs=pl.BlockSpec((BT, Mp), lambda bb, l: (bb, 0)),
        scratch_shapes=[pltpu.VMEM((BT, R), jnp.float32),                     # x carry
                        pltpu.VMEM((BT, R), jnp.float32)],                    # skip sum
        compiler_params=pltpu.CompilerParams(
            dimension_semantics=("parallel", "arbitrary"),
            vmem_limit_bytes=vmem_limit,
        ),
    )(x_rows, c_rows, dsteps, cw, kw, ow, layer_b, inw, inb, skw, skb, opw, opb)

    out = out_rows.reshape(Bpad, T, Mp)[:B, :, :M]
    return jnp.transpose(out, (0, 2, 1))


# ----------------------------- reference (numpy, float64) -----------------------------
def _ref_forward(x, tstep, cond, p, L):
    B, M, T = x.shape
    R = p["in_w"].shape[1]
    half = R // 2

    def sigmoid(v):
        return 1.0 / (1.0 + np.exp(-v))

    h = np.einsum("bmt,mr->brt", x, p["in_w"]) + p["in_b"][None, :, None]
    h = np.maximum(h, 0.0)

    c_emb = math.log(10000.0) / (half - 1)
    freqs = np.exp(-c_emb * np.arange(half))
    ang = tstep[:, None] * freqs[None, :]
    e = np.concatenate([np.sin(ang), np.cos(ang)], axis=-1)        # [B,R]
    z = e @ p["mlp_w1"]
    sp = np.where(z > 20.0, z, np.log(1.0 + np.exp(np.minimum(z, 20.0))))
    z = z * np.tanh(sp)
    d = z @ p["mlp_w2"]                                            # [B,R]

    skip_sum = np.zeros((B, R, T))
    for l in range(L):
        dstep = d @ p["dproj_w"][l]
        y = h + dstep[:, :, None]
        ypad = np.pad(y, ((0, 0), (0, 0), (1, 1)))
        zz = np.zeros((B, 2 * R, T))
        for k in range(3):
            zz += np.einsum("brt,rs->bst", ypad[:, :, k:k + T], p["conv_w"][l, k])
        zz += p["conv_b"][l][None, :, None]
        zz += np.einsum("bet,es->bst", cond, p["cond_w"][l]) + p["cond_b"][l][None, :, None]
        gate, filt = zz[:, :R], zz[:, R:]
        a = sigmoid(gate) * np.tanh(filt)
        o = np.einsum("brt,rs->bst", a, p["out_w"][l]) + p["out_b"][l][None, :, None]
        res, skp = o[:, :R], o[:, R:]
        h = (h + res) / math.sqrt(2.0)
        skip_sum += skp

    s = skip_sum / math.sqrt(float(L))
    s = np.einsum("brt,rs->bst", s, p["skip_w"]) + p["skip_b"][None, :, None]
    s = np.maximum(s, 0.0)
    return np.einsum("brt,rm->bmt", s, p["outp_w"]) + p["outp_b"][None, :, None]


# ---------------------------------------- main ----------------------------------------
if __name__ == "__main__":
    # Small shapes: mel M=16, d_encoder E=32, residual_channels R=128 (multiple of
    # 128 so the production merged-weight / lane-aligned slice path is exercised),
    # 4 layers, T=64.
    B, M, E, R, L, T = 2, 16, 32, 128, 4, 64

    key = jax.random.PRNGKey(0)
    ks = jax.random.split(key, 16)

    def rnd(k, shape, fan_in):
        return (jax.random.normal(k, shape, jnp.float32) / np.sqrt(fan_in)).astype(jnp.float32)

    params = {
        "in_w": rnd(ks[0], (M, R), M),
        "in_b": rnd(ks[1], (R,), M),
        "mlp_w1": rnd(ks[2], (R, 4 * R), R),
        "mlp_w2": rnd(ks[3], (4 * R, R), 4 * R),
        "dproj_w": rnd(ks[4], (L, R, R), R),
        "conv_w": rnd(ks[5], (L, 3, R, 2 * R), 3 * R),
        "conv_b": rnd(ks[6], (L, 2 * R), 3 * R),
        "cond_w": rnd(ks[7], (L, E, 2 * R), E),
        "cond_b": rnd(ks[8], (L, 2 * R), E),
        "out_w": rnd(ks[9], (L, R, 2 * R), R),
        "out_b": rnd(ks[10], (L, 2 * R), R),
        "skip_w": rnd(ks[11], (R, R), R),
        "skip_b": rnd(ks[12], (R,), R),
        "outp_w": rnd(ks[13], (R, M), R),   # random (not zero-init) so the check is meaningful
        "outp_b": rnd(ks[14], (M,), R),
    }
    kx, kc = jax.random.split(ks[15])
    x = jax.random.normal(kx, (B, M, T), jnp.float32)
    cond = jax.random.normal(kc, (B, E, T), jnp.float32)
    tstep = jnp.array([3.0, 47.0], jnp.float32)

    out = wavenet_denoiser_forward(x, tstep, cond, params)
    out = jax.block_until_ready(out)
    assert out.shape == (B, M, T), out.shape

    # Reference in float64, with the matmul weights rounded through bf16 exactly as
    # the kernel consumes them (accumulation stays high precision in both).
    p64 = {k: np.asarray(v, np.float64) for k, v in params.items()}
    for k in ("conv_w", "cond_w", "out_w", "in_w", "skip_w", "outp_w"):
        p64[k] = np.asarray(
            jnp.asarray(params[k]).astype(jnp.bfloat16).astype(jnp.float32), np.float64)
    ref = _ref_forward(np.asarray(x, np.float64), np.asarray(tstep, np.float64),
                       np.asarray(cond, np.float64), p64, L)
    np.testing.assert_allclose(np.asarray(out), ref, rtol=5e-2, atol=5e-2)

    print("KERNEL_OK")
</pallas_src>

<mosaic_0001>
module attributes {stable_mosaic.version = 11 : i64} {
  func.func @kernel(%arg0: i32, %arg1: i32, %arg2: memref<128x128xf32, #tpu.memory_space<vmem>>, %arg3: memref<128x32xf32, #tpu.memory_space<vmem>>, %arg4: memref<2x1x1x128xf32, #tpu.memory_space<vmem>>, %arg5: memref<1x3x128x256xbf16, #tpu.memory_space<vmem>>, %arg6: memref<1x32x256xbf16, #tpu.memory_space<vmem>>, %arg7: memref<1x128x256xbf16, #tpu.memory_space<vmem>>, %arg8: memref<1x2x256xf32, #tpu.memory_space<vmem>>, %arg9: memref<128x128xbf16, #tpu.memory_space<vmem>>, %arg10: memref<1x128xf32, #tpu.memory_space<vmem>>, %arg11: memref<128x128xbf16, #tpu.memory_space<vmem>>, %arg12: memref<1x128xf32, #tpu.memory_space<vmem>>, %arg13: memref<128x128xbf16, #tpu.memory_space<vmem>>, %arg14: memref<1x128xf32, #tpu.memory_space<vmem>>, %arg15: memref<128x128xf32, #tpu.memory_space<vmem>>, %arg16: memref<128x128xf32, #tpu.memory_space<vmem>>, %arg17: memref<128x128xf32, #tpu.memory_space<vmem>>) attributes {dimension_semantics = [#tpu.dimension_semantics<parallel>, #tpu.dimension_semantics<arbitrary>], iteration_bounds = array<i64: 1, 4>, scalar_prefetch = 0 : i64, scratch_operands = 2 : i64, tpu.core_type = #tpu.core_type<tc>, window_params = [{transform_indices = @transform_0, window_bounds = array<i64: 128, 128>}, {transform_indices = @transform_1, window_bounds = array<i64: 128, 32>}, {transform_indices = @transform_2, window_bounds = array<i64: 2, 1, 1, 128>}, {transform_indices = @transform_3, window_bounds = array<i64: 1, 3, 128, 256>}, {transform_indices = @transform_4, window_bounds = array<i64: 1, 32, 256>}, {transform_indices = @transform_5, window_bounds = array<i64: 1, 128, 256>}, {transform_indices = @transform_6, window_bounds = array<i64: 1, 2, 256>}, {pipeline_mode = #tpu.pipeline_mode<synchronous>, transform_indices = @transform_7, window_bounds = array<i64: 128, 128>}, {pipeline_mode = #tpu.pipeline_mode<synchronous>, transform_indices = @transform_8, window_bounds = array<i64: 1, 128>}, {pipeline_mode = #tpu.pipeline_mode<synchronous>, transform_indices = @transform_9, window_bounds = array<i64: 128, 128>}, {pipeline_mode = #tpu.pipeline_mode<synchronous>, transform_indices = @transform_10, window_bounds = array<i64: 1, 128>}, {pipeline_mode = #tpu.pipeline_mode<synchronous>, transform_indices = @transform_11, window_bounds = array<i64: 128, 128>}, {pipeline_mode = #tpu.pipeline_mode<synchronous>, transform_indices = @transform_12, window_bounds = array<i64: 1, 128>}, {transform_indices = @transform_13, window_bounds = array<i64: 128, 128>}]} {
    %c0_i32 = arith.constant 0 : i32
    %0 = arith.cmpi eq, %arg1, %c0_i32 : i32
    %1 = arith.extui %0 : i1 to i32
    %c0_i32_0 = arith.constant 0 : i32
    %2 = arith.cmpi ne, %1, %c0_i32_0 : i32
    scf.if %2 {
      %c0_50 = arith.constant 0 : index
      %c0_51 = arith.constant 0 : index
      %91 = vector.load %arg2[%c0_50, %c0_51] : memref<128x128xf32, #tpu.memory_space<vmem>>, vector<128x128xf32>
      %92 = arith.truncf %91 : vector<128x128xf32> to vector<128x128xbf16>
      %c0_52 = arith.constant 0 : index
      %c0_53 = arith.constant 0 : index
      %93 = vector.load %arg9[%c0_52, %c0_53] : memref<128x128xbf16, #tpu.memory_space<vmem>>, vector<128x128xbf16>
      %cst_54 = arith.constant dense<0.000000e+00> : vector<128x128xf32>
      %94 = tpu.matmul %92, %93, %cst_54 {dimension_numbers = #tpu.dot_dimension_numbers<[1], [0], [0], [1], [0, 0, 1, 1], [], []>} : vector<128x128xbf16>, vector<128x128xbf16>, vector<128x128xf32> -> vector<128x128xf32>
      %c0_55 = arith.constant 0 : index
      %c0_56 = arith.constant 0 : index
      %95 = vector.load %arg10[%c0_55, %c0_56] : memref<1x128xf32, #tpu.memory_space<vmem>>, vector<1x128xf32>
      %96 = vector.broadcast %95 : vector<1x128xf32> to vector<128x128xf32>
      %97 = arith.addf %94, %96 : vector<128x128xf32>
      %cst_57 = arith.constant 0.000000e+00 : f32
      %98 = vector.broadcast %cst_57 : f32 to vector<128x128xf32>
      %99 = arith.maximumf %97, %98 : vector<128x128xf32>
      %c0_58 = arith.constant 0 : index
      %c0_59 = arith.constant 0 : index
      %100 = vector.load %arg16[%c0_58, %c0_59] : memref<128x128xf32, #tpu.memory_space<vmem>>, vector<128x128xf32>
      tpu.vector_store %arg16[%c0_58, %c0_59], %99 {strides = array<i32>} : memref<128x128xf32, #tpu.memory_space<vmem>>, vector<128x128xf32>,
      %cst_60 = arith.constant 0.000000e+00 : f32
      %101 = vector.broadcast %cst_60 : f32 to vector<128x128xf32>
      %c0_61 = arith.constant 0 : index
      %c0_62 = arith.constant 0 : index
      %102 = vector.load %arg17[%c0_61, %c0_62] : memref<128x128xf32, #tpu.memory_space<vmem>>, vector<128x128xf32>
      tpu.vector_store %arg17[%c0_61, %c0_62], %101 {strides = array<i32>} : memref<128x128xf32, #tpu.memory_space<vmem>>, vector<128x128xf32>,
    } else {
    }
    %c0 = arith.constant 0 : index
    %c0_1 = arith.constant 0 : index
    %3 = vector.load %arg16[%c0, %c0_1] : memref<128x128xf32, #tpu.memory_space<vmem>>, vector<128x128xf32>
    %4 = vector.extract_strided_slice %3 {offsets = [0, 0], sizes = [64, 128], strides = [1, 1]} : vector<128x128xf32> to vector<64x128xf32>
    %c0_2 = arith.constant 0 : index
    %c0_3 = arith.constant 0 : index
    %c0_4 = arith.constant 0 : index
    %c0_5 = arith.constant 0 : index
    %5 = vector.load %arg4[%c0_2, %c0_3, %c0_4, %c0_5] : memref<2x1x1x128xf32, #tpu.memory_space<vmem>>, vector<1x1x1x128xf32>
    %6 = vector.shape_cast %5 : vector<1x1x1x128xf32> to vector<1x128xf32>
    %7 = vector.broadcast %6 : vector<1x128xf32> to vector<64x128xf32>
    %8 = arith.addf %4, %7 : vector<64x128xf32>
    %9 = vector.extract_strided_slice %3 {offsets = [64, 0], sizes = [64, 128], strides = [1, 1]} : vector<128x128xf32> to vector<64x128xf32>
    %c1 = arith.constant 1 : index
    %c0_6 = arith.constant 0 : index
    %c0_7 = arith.constant 0 : index
    %c0_8 = arith.constant 0 : index
    %10 = vector.load %arg4[%c1, %c0_6, %c0_7, %c0_8] : memref<2x1x1x128xf32, #tpu.memory_space<vmem>>, vector<1x1x1x128xf32>
    %11 = vector.shape_cast %10 : vector<1x1x1x128xf32> to vector<1x128xf32>
    %12 = vector.broadcast %11 : vector<1x128xf32> to vector<64x128xf32>
    %13 = arith.addf %9, %12 : vector<64x128xf32>
    %14 = tpu.concatenate %8, %13 in 0 : vector<64x128xf32>, vector<64x128xf32> -> vector<128x128xf32>
    %15 = tpu.iota {dimensions = array<i32: 0>} : vector<128x1xi32>
    %c0_i32_9 = arith.constant 0 : i32
    %16 = vector.broadcast %c0_i32_9 : i32 to vector<128x1xi32>
    %17 = arith.cmpi eq, %15, %16 : vector<128x1xi32>
    %c63_i32 = arith.constant 63 : i32
    %18 = vector.broadcast %c63_i32 : i32 to vector<128x1xi32>
    %19 = arith.cmpi eq, %15, %18 : vector<128x1xi32>
    %c64_i32 = arith.constant 64 : i32
    %20 = vector.broadcast %c64_i32 : i32 to vector<128x1xi32>
    %21 = arith.cmpi eq, %15, %20 : vector<128x1xi32>
    %22 = arith.ori %17, %21 : vector<128x1xi1>
    %c127_i32 = arith.constant 127 : i32
    %23 = vector.broadcast %c127_i32 : i32 to vector<128x1xi32>
    %24 = arith.cmpi eq, %15, %23 : vector<128x1xi32>
    %25 = arith.ori %19, %24 : vector<128x1xi1>
    %c1_i32 = arith.constant 1 : i32
    %26 = tpu.dynamic_rotate %14 by %c1_i32 dim 0 : vector<128x128xf32>, i32 -> vector<128x128xf32>
    %cst = arith.constant 0.000000e+00 : f32
    %cst_10 = arith.constant 1.000000e+00 : f32
    %27 = vector.broadcast %cst : f32 to vector<128x1xf32>
    %28 = vector.broadcast %cst_10 : f32 to vector<128x1xf32>
    %29 = arith.select %22, %27, %28 : vector<128x1xi1>, vector<128x1xf32>
    %30 = vector.broadcast %29 : vector<128x1xf32> to vector<128x128xf32>
    %31 = arith.mulf %26, %30 : vector<128x128xf32>
    %c127_i32_11 = arith.constant 127 : i32
    %32 = tpu.dynamic_rotate %14 by %c127_i32_11 dim 0 : vector<128x128xf32>, i32 -> vector<128x128xf32>
    %cst_12 = arith.constant 0.000000e+00 : f32
    %cst_13 = arith.constant 1.000000e+00 : f32
    %33 = vector.broadcast %cst_12 : f32 to vector<128x1xf32>
    %34 = vector.broadcast %cst_13 : f32 to vector<128x1xf32>
    %35 = arith.select %25, %33, %34 : vector<128x1xi1>, vector<128x1xf32>
    %36 = vector.broadcast %35 : vector<128x1xf32> to vector<128x128xf32>
    %37 = arith.mulf %32, %36 : vector<128x128xf32>
    %c0_14 = arith.constant 0 : index
    %c0_15 = arith.constant 0 : index
    %c0_16 = arith.constant 0 : index
    %38 = vector.load %arg8[%c0_14, %c0_15, %c0_16] : memref<1x2x256xf32, #tpu.memory_space<vmem>>, vector<1x2x256xf32>
    %39 = vector.shape_cast %38 : vector<1x2x256xf32> to vector<2x256xf32>
    %40 = arith.truncf %31 : vector<128x128xf32> to vector<128x128xbf16>
    %c0_17 = arith.constant 0 : index
    %c0_18 = arith.constant 0 : index
    %c0_19 = arith.constant 0 : index
    %c0_20 = arith.constant 0 : index
    %41 = vector.load %arg5[%c0_17, %c0_18, %c0_19, %c0_20] : memref<1x3x128x256xbf16, #tpu.memory_space<vmem>>, vector<1x1x128x256xbf16>
    %42 = vector.shape_cast %41 : vector<1x1x128x256xbf16> to vector<128x256xbf16>
    %cst_21 = arith.constant dense<0.000000e+00> : vector<128x256xf32>
    %43 = tpu.matmul %40, %42, %cst_21 {dimension_numbers = #tpu.dot_dimension_numbers<[1], [0], [0], [1], [0, 0, 1, 1], [], []>} : vector<128x128xbf16>, vector<128x256xbf16>, vector<128x256xf32> -> vector<128x256xf32>
    %44 = arith.truncf %14 : vector<128x128xf32> to vector<128x128xbf16>
    %c0_22 = arith.constant 0 : index
    %c1_23 = arith.constant 1 : index
    %c0_24 = arith.constant 0 : index
    %c0_25 = arith.constant 0 : index
    %45 = vector.load %arg5[%c0_22, %c1_23, %c0_24, %c0_25] : memref<1x3x128x256xbf16, #tpu.memory_space<vmem>>, vector<1x1x128x256xbf16>
    %46 = vector.shape_cast %45 : vector<1x1x128x256xbf16> to vector<128x256xbf16>
    %cst_26 = arith.constant dense<0.000000e+00> : vector<128x256xf32>
    %47 = tpu.matmul %44, %46, %cst_26 {dimension_numbers = #tpu.dot_dimension_numbers<[1], [0], [0], [1], [0, 0, 1, 1], [], []>} : vector<128x128xbf16>, vector<128x256xbf16>, vector<128x256xf32> -> vector<128x256xf32>
    %48 = arith.addf %43, %47 : vector<128x256xf32>
    %49 = arith.truncf %37 : vector<128x128xf32> to vector<128x128xbf16>
    %c0_27 = arith.constant 0 : index
    %c2 = arith.constant 2 : index
    %c0_28 = arith.constant 0 : index
    %c0_29 = arith.constant 0 : index
    %50 = vector.load %arg5[%c0_27, %c2, %c0_28, %c0_29] : memref<1x3x128x256xbf16, #tpu.memory_space<vmem>>, vector<1x1x128x256xbf16>
    %51 = vector.shape_cast %50 : vector<1x1x128x256xbf16> to vector<128x256xbf16>
    %cst_30 = arith.constant dense<0.000000e+00> : vector<128x256xf32>
    %52 = tpu.matmul %49, %51, %cst_30 {dimension_numbers = #tpu.dot_dimension_numbers<[1], [0], [0], [1], [0, 0, 1, 1], [], []>} : vector<128x128xbf16>, vector<128x256xbf16>, vector<128x256xf32> -> vector<128x256xf32>
    %53 = arith.addf %48, %52 : vector<128x256xf32>
    %c0_31 = arith.constant 0 : index
    %c0_32 = arith.constant 0 : index
    %54 = vector.load %arg3[%c0_31, %c0_32] : memref<128x32xf32, #tpu.memory_space<vmem>>, vector<128x32xf32>
    %55 = arith.truncf %54 : vector<128x32xf32> to vector<128x32xbf16>
    %c0_33 = arith.constant 0 : index
    %c0_34 = arith.constant 0 : index
    %c0_35 = arith.constant 0 : index
    %56 = vector.load %arg6[%c0_33, %c0_34, %c0_35] : memref<1x32x256xbf16, #tpu.memory_space<vmem>>, vector<1x32x256xbf16>
    %57 = vector.shape_cast %56 : vector<1x32x256xbf16> to vector<32x256xbf16>
    %cst_36 = arith.constant dense<0.000000e+00> : vector<128x256xf32>
    %58 = tpu.matmul %55, %57, %cst_36 {dimension_numbers = #tpu.dot_dimension_numbers<[1], [0], [0], [1], [0, 0, 1, 1], [], []>} : vector<128x32xbf16>, vector<32x256xbf16>, vector<128x256xf32> -> vector<128x256xf32>
    %59 = arith.addf %53, %58 : vector<128x256xf32>
    %60 = vector.extract_strided_slice %39 {offsets = [0, 0], sizes = [1, 256], strides = [1, 1]} : vector<2x256xf32> to vector<1x256xf32>
    %61 = vector.broadcast %60 : vector<1x256xf32> to vector<128x256xf32>
    %62 = arith.addf %59, %61 : vector<128x256xf32>
    %63 = vector.extract_strided_slice %62 {offsets = [0, 0], sizes = [128, 128], strides = [1, 1]} : vector<128x256xf32> to vector<128x128xf32>
    %64 = arith.negf %63 : vector<128x128xf32>
    %65 = math.exp %64 : vector<128x128xf32>
    %cst_37 = arith.constant 1.000000e+00 : f32
    %66 = vector.broadcast %cst_37 : f32 to vector<128x128xf32>
    %67 = arith.addf %66, %65 : vector<128x128xf32>
    %68 = arith.divf %66, %67 : vector<128x128xf32>
    %69 = vector.extract_strided_slice %62 {offsets = [0, 128], sizes = [128, 128], strides = [1, 1]} : vector<128x256xf32> to vector<128x128xf32>
    %70 = math.tanh %69 : vector<128x128xf32>
    %71 = arith.mulf %68, %70 : vector<128x128xf32>
    %72 = arith.truncf %71 : vector<128x128xf32> to vector<128x128xbf16>
    %c0_38 = arith.constant 0 : index
    %c0_39 = arith.constant 0 : index
    %c0_40 = arith.constant 0 : index
    %73 = vector.load %arg7[%c0_38, %c0_39, %c0_40] : memref<1x128x256xbf16, #tpu.memory_space<vmem>>, vector<1x128x256xbf16>
    %74 = vector.shape_cast %73 : vector<1x128x256xbf16> to vector<128x256xbf16>
    %cst_41 = arith.constant dense<0.000000e+00> : vector<128x256xf32>
    %75 = tpu.matmul %72, %74, %cst_41 {dimension_numbers = #tpu.dot_dimension_numbers<[1], [0], [0], [1], [0, 0, 1, 1], [], []>} : vector<128x128xbf16>, vector<128x256xbf16>, vector<128x256xf32> -> vector<128x256xf32>
    %76 = vector.extract_strided_slice %39 {offsets = [1, 0], sizes = [1, 256], strides = [1, 1]} : vector<2x256xf32> to vector<1x256xf32>
    %77 = vector.broadcast %76 : vector<1x256xf32> to vector<128x256xf32>
    %78 = arith.addf %75, %77 : vector<128x256xf32>
    %79 = vector.extract_strided_slice %78 {offsets = [0, 0], sizes = [128, 128], strides = [1, 1]} : vector<128x256xf32> to vector<128x128xf32>
    %80 = arith.addf %3, %79 : vector<128x128xf32>
    %cst_42 = arith.constant 0.707106769 : f32
    %81 = vector.broadcast %cst_42 : f32 to vector<128x128xf32>
    %82 = arith.mulf %80, %81 : vector<128x128xf32>
    %c0_43 = arith.constant 0 : index
    %c0_44 = arith.constant 0 : index
    %83 = vector.load %arg16[%c0_43, %c0_44] : memref<128x128xf32, #tpu.memory_space<vmem>>, vector<128x128xf32>
    tpu.vector_store %arg16[%c0_43, %c0_44], %82 {strides = array<i32>} : memref<128x128xf32, #tpu.memory_space<vmem>>, vector<128x128xf32>,
    %c0_45 = arith.constant 0 : index
    %c0_46 = arith.constant 0 : index
    %84 = vector.load %arg17[%c0_45, %c0_46] : memref<128x128xf32, #tpu.memory_space<vmem>>, vector<128x128xf32>
    %85 = vector.extract_strided_slice %78 {offsets = [0, 128], sizes = [128, 128], strides = [1, 1]} : vector<128x256xf32> to vector<128x128xf32>
    %86 = arith.addf %84, %85 : vector<128x128xf32>
    %c0_47 = arith.constant 0 : index
    %c0_48 = arith.constant 0 : index
    %87 = vector.load %arg17[%c0_47, %c0_48] : memref<128x128xf32, #tpu.memory_space<vmem>>, vector<128x128xf32>
    tpu.vector_store %arg17[%c0_47, %c0_48], %86 {strides = array<i32>} : memref<128x128xf32, #tpu.memory_space<vmem>>, vector<128x128xf32>,
    %c3_i32 = arith.constant 3 : i32
    %88 = arith.cmpi eq, %arg1, %c3_i32 : i32
    %89 = arith.extui %88 : i1 to i32
    %c0_i32_49 = arith.constant 0 : i32
    %90 = arith.cmpi ne, %89, %c0_i32_49 : i32
    scf.if %90 {
      %c0_50 = arith.constant 0 : index
      %c0_51 = arith.constant 0 : index
      %91 = vector.load %arg17[%c0_50, %c0_51] : memref<128x128xf32, #tpu.memory_space<vmem>>, vector<128x128xf32>
      %cst_52 = arith.constant 5.000000e-01 : f32
      %92 = vector.broadcast %cst_52 : f32 to vector<128x128xf32>
      %93 = arith.mulf %91, %92 : vector<128x128xf32>
      %94 = arith.truncf %93 : vector<128x128xf32> to vector<128x128xbf16>
      %c0_53 = arith.constant 0 : index
      %c0_54 = arith.constant 0 : index
      %95 = vector.load %arg11[%c0_53, %c0_54] : memref<128x128xbf16, #tpu.memory_space<vmem>>, vector<128x128xbf16>
      %cst_55 = arith.constant dense<0.000000e+00> : vector<128x128xf32>
      %96 = tpu.matmul %94, %95, %cst_55 {dimension_numbers = #tpu.dot_dimension_numbers<[1], [0], [0], [1], [0, 0, 1, 1], [], []>} : vector<128x128xbf16>, vector<128x128xbf16>, vector<128x128xf32> -> vector<128x128xf32>
      %c0_56 = arith.constant 0 : index
      %c0_57 = arith.constant 0 : index
      %97 = vector.load %arg12[%c0_56, %c0_57] : memref<1x128xf32, #tpu.memory_space<vmem>>, vector<1x128xf32>
      %98 = vector.broadcast %97 : vector<1x128xf32> to vector<128x128xf32>
      %99 = arith.addf %96, %98 : vector<128x128xf32>
      %cst_58 = arith.constant 0.000000e+00 : f32
      %100 = vector.broadcast %cst_58 : f32 to vector<128x128xf32>
      %101 = arith.maximumf %99, %100 : vector<128x128xf32>
      %102 = arith.truncf %101 : vector<128x128xf32> to vector<128x128xbf16>
      %c0_59 = arith.constant 0 : index
      %c0_60 = arith.constant 0 : index
      %103 = vector.load %arg13[%c0_59, %c0_60] : memref<128x128xbf16, #tpu.memory_space<vmem>>, vector<128x128xbf16>
      %cst_61 = arith.constant dense<0.000000e+00> : vector<128x128xf32>
      %104 = tpu.matmul %102, %103, %cst_61 {dimension_numbers = #tpu.dot_dimension_numbers<[1], [0], [0], [1], [0, 0, 1, 1], [], []>} : vector<128x128xbf16>, vector<128x128xbf16>, vector<128x128xf32> -> vector<128x128xf32>
      %c0_62 = arith.constant 0 : index
      %c0_63 = arith.constant 0 : index
      %105 = vector.load %arg14[%c0_62, %c0_63] : memref<1x128xf32, #tpu.memory_space<vmem>>, vector<1x128xf32>
      %106 = vector.broadcast %105 : vector<1x128xf32> to vector<128x128xf32>
      %107 = arith.addf %104, %106 : vector<128x128xf32>
      %c0_64 = arith.constant 0 : index
      %c0_65 = arith.constant 0 : index
      %108 = vector.load %arg15[%c0_64, %c0_65] : memref<128x128xf32, #tpu.memory_space<vmem>>, vector<128x128xf32>
      tpu.vector_store %arg15[%c0_64, %c0_65], %107 {strides = array<i32>} : memref<128x128xf32, #tpu.memory_space<vmem>>, vector<128x128xf32>,
    } else {
    }
    return
  }
  func.func @transform_0(%arg0: i32, %arg1: i32) -> (i32, i32) {
    %c0_i32 = arith.constant 0 : i32
    %c0_i32_0 = arith.constant 0 : i32
    return %arg0, %c0_i32 : i32, i32
  }
  func.func @transform_1(%arg0: i32, %arg1: i32) -> (i32, i32) {
    %c0_i32 = arith.constant 0 : i32
    %c0_i32_0 = arith.constant 0 : i32
    return %arg0, %c0_i32 : i32, i32
  }
  func.func @transform_2(%arg0: i32, %arg1: i32) -> (i32, i32, i32, i32) {
    %c0_i32 = arith.constant 0 : i32
    %c0_i32_0 = arith.constant 0 : i32
    %c0_i32_1 = arith.constant 0 : i32
    return %arg0, %arg1, %c0_i32, %c0_i32_0 : i32, i32, i32, i32
  }
  func.func @transform_3(%arg0: i32, %arg1: i32) -> (i32, i32, i32, i32) {
    %c0_i32 = arith.constant 0 : i32
    %c0_i32_0 = arith.constant 0 : i32
    %c0_i32_1 = arith.constant 0 : i32
    %c0_i32_2 = arith.constant 0 : i32
    return %arg1, %c0_i32, %c0_i32_0, %c0_i32_1 : i32, i32, i32, i32
  }
  func.func @transform_4(%arg0: i32, %arg1: i32) -> (i32, i32, i32) {
    %c0_i32 = arith.constant 0 : i32
    %c0_i32_0 = arith.constant 0 : i32
    %c0_i32_1 = arith.constant 0 : i32
    return %arg1, %c0_i32, %c0_i32_0 : i32, i32, i32
  }
  func.func @transform_5(%arg0: i32, %arg1: i32) -> (i32, i32, i32) {
    %c0_i32 = arith.constant 0 : i32
    %c0_i32_0 = arith.constant 0 : i32
    %c0_i32_1 = arith.constant 0 : i32
    return %arg1, %c0_i32, %c0_i32_0 : i32, i32, i32
  }
  func.func @transform_6(%arg0: i32, %arg1: i32) -> (i32, i32, i32) {
    %c0_i32 = arith.constant 0 : i32
    %c0_i32_0 = arith.constant 0 : i32
    %c0_i32_1 = arith.constant 0 : i32
    return %arg1, %c0_i32, %c0_i32_0 : i32, i32, i32
  }
  func.func @transform_7(%arg0: i32, %arg1: i32) -> (i32, i32) {
    %c0_i32 = arith.constant 0 : i32
    %c0_i32_0 = arith.constant 0 : i32
    %c0_i32_1 = arith.constant 0 : i32
    return %c0_i32, %c0_i32_0 : i32, i32
  }
  func.func @transform_8(%arg0: i32, %arg1: i32) -> (i32, i32) {
    %c0_i32 = arith.constant 0 : i32
    %c0_i32_0 = arith.constant 0 : i32
    %c0_i32_1 = arith.constant 0 : i32
    return %c0_i32, %c0_i32_0 : i32, i32
  }
  func.func @transform_9(%arg0: i32, %arg1: i32) -> (i32, i32) {
    %c0_i32 = arith.constant 0 : i32
    %c0_i32_0 = arith.constant 0 : i32
    %c0_i32_1 = arith.constant 0 : i32
    return %c0_i32, %c0_i32_0 : i32, i32
  }
  func.func @transform_10(%arg0: i32, %arg1: i32) -> (i32, i32) {
    %c0_i32 = arith.constant 0 : i32
    %c0_i32_0 = arith.constant 0 : i32
    %c0_i32_1 = arith.constant 0 : i32
    return %c0_i32, %c0_i32_0 : i32, i32
  }
  func.func @transform_11(%arg0: i32, %arg1: i32) -> (i32, i32) {
    %c0_i32 = arith.constant 0 : i32
    %c0_i32_0 = arith.constant 0 : i32
    %c0_i32_1 = arith.constant 0 : i32
    return %c0_i32, %c0_i32_0 : i32, i32
  }
  func.func @transform_12(%arg0: i32, %arg1: i32) -> (i32, i32) {
    %c0_i32 = arith.constant 0 : i32
    %c0_i32_0 = arith.constant 0 : i32
    %c0_i32_1 = arith.constant 0 : i32
    return %c0_i32, %c0_i32_0 : i32, i32
  }
  func.func @transform_13(%arg0: i32, %arg1: i32) -> (i32, i32) {
    %c0_i32 = arith.constant 0 : i32
    %c0_i32_0 = arith.constant 0 : i32
    return %arg0, %c0_i32 : i32, i32
  }
}

</mosaic_0001>

<llo_original>
// kernel: tpu_custom_call.1
$region0: #{tpu_custom_call.1}
  #allocation0 [shape = 'u32[]', space=smem, size = 0x4, offset = 0x4, fixed_abs, tag = 'smem constant byte address 0x4 - core index']
  #allocation1 [shape = 'u32[144,128]{1,0:T(1,128)}', space=vmem, size = 0x12000, scoped, tag = 'internal scratch']
  #allocation2 [shape = 'f32[128,128]{1,0:T(8,128)}', space=vmem, size = 0x10000, scoped, tag = 'scratch operand']
  #allocation3 [shape = 'f32[128,128]{1,0:T(8,128)}', space=vmem, size = 0x10000, scoped, tag = 'scratch operand']
  %s0 = inlined_call_operand.vmem [shape: f32[128,128], index: 0, kind: input, shape index: {}]
  %s1 = inlined_call_operand.vmem [shape: f32[128,32], index: 1, kind: input, shape index: {}]
  %s2 = inlined_call_operand.vmem [shape: f32[2,4,1,128], index: 2, kind: input, shape index: {}]
  %s3 = inlined_call_operand.hbm [shape: bf16[4,3,128,256], index: 3, kind: input, shape index: {}]
  %s4 = inlined_call_operand.hbm [shape: bf16[4,32,256], index: 4, kind: input, shape index: {}]
  %s5 = inlined_call_operand.hbm [shape: bf16[4,128,256], index: 5, kind: input, shape index: {}]
  %s6 = inlined_call_operand.vmem [shape: f32[4,2,256], index: 6, kind: input, shape index: {}]
  %s7 = inlined_call_operand.hbm [shape: bf16[128,128], index: 7, kind: input, shape index: {}]
  %s8 = inlined_call_operand.vmem [shape: f32[1,128], index: 8, kind: input, shape index: {}]
  %s9 = inlined_call_operand.hbm [shape: bf16[128,128], index: 9, kind: input, shape index: {}]
  %s10 = inlined_call_operand.vmem [shape: f32[1,128], index: 10, kind: input, shape index: {}]
  %s11 = inlined_call_operand.hbm [shape: bf16[128,128], index: 11, kind: input, shape index: {}]
  %s12 = inlined_call_operand.vmem [shape: f32[1,128], index: 12, kind: input, shape index: {}]
  %s13 = inlined_call_operand.hbm [shape: f32[128,128], index: 13, kind: output, shape index: {}]
  %s14 = sld [smem:[#allocation0]]
  $region151: #{tpu_custom_call.1} parent=0
    _
  %s16 = ssub.s32 1, %s14
  %s17 = scalar_select 0, %s16, %s14
  $region1: #{tpu_custom_call.1} parent=0
    #allocation4 [shape = 'u8[2048]{0}', space=vmem, size = 0x800, scoped, tag = 'input window, operand 2']
    #allocation5 [shape = 'u8[393216]{0}', space=vmem, size = 0x60000, scoped, tag = 'input window, operand 3']
    #allocation6 [shape = 's32[2]{0}', space=sflag, size = 0x8, scoped, tag = 'scoped memory for tpu_custom_call.1']
    #allocation7 [shape = 's32[2]{0}', space=sflag, size = 0x8, scoped, tag = 'scoped memory for tpu_custom_call.1']
    #allocation8 [shape = 'u8[32768]{0}', space=vmem, size = 0x8000, scoped, tag = 'input window, operand 4']
    #allocation9 [shape = 's32[2]{0}', space=sflag, size = 0x8, scoped, tag = 'scoped memory for tpu_custom_call.1']
    #allocation10 [shape = 'u8[131072]{0}', space=vmem, size = 0x20000, scoped, tag = 'input window, operand 5']
    #allocation11 [shape = 'u8[32768]{0}', space=vmem, size = 0x8000, scoped, tag = 'input window, operand 7, single buffered']
    #allocation12 [shape = 's32[1]{0}', space=sflag, size = 0x4, scoped, tag = 'scoped memory for tpu_custom_call.1']
    #allocation13 [shape = 'u8[32768]{0}', space=vmem, size = 0x8000, scoped, tag = 'input window, operand 9, single buffered']
    #allocation14 [shape = 'u8[32768]{0}', space=vmem, size = 0x8000, scoped, tag = 'input window, operand 11, single buffered']
    #allocation15 [shape = 's32[1]{0}', space=sflag, size = 0x4, scoped, tag = 'scoped memory for tpu_custom_call.1']
    #allocation16 [shape = 'u8[65536]{0}', space=vmem, size = 0x10000, scoped, tag = 'output window, operand 0, single buffered']
    %18 = vsyncpa [#allocation6], 0
    %s19 = scalar_lea.sflag [#allocation6], 1
    %20 = vsyncpa %s19, 0
    %21 = vsyncpa [#allocation9], 0
    %s22 = scalar_lea.sflag [#allocation9], 1
    %23 = vsyncpa %s22, 0
    %24 = vsyncpa [#allocation12], 0
    %25 = vsyncpa [#allocation15], 0
    %26 = vsyncpa [#allocation7], 0
    loop: start=0, step=1, limit=6
    $region2: #{tpu_custom_call.1} parent=1 // loop_pre_header
      _
    $region3: #{tpu_custom_call.1} parent=1 // loop_header
      %s28 = sphi 0, %s32
      %p29 = scmp.ge.s32.totalorder %s28, 6
      %s35 = sphi 0, %s47
      %s36 = sphi 0, %s43
      %s37 = sphi 0, %s35
      %s38 = sphi 0, %s36
      %s39 = sphi 0, %s37
      %s40 = sphi 0, %s38
      %s50 = sphi 0, %s52
      %s53 = sphi 0, %s50
      %s54 = sphi 0, %s53
      %s70 = sphi 0, %s54
      %s76 = sphi 0, %s78
      %s79 = sphi 0, %s76
      %s80 = sphi 0, %s79
      %s96 = sphi 0, %s80
      %s104 = sphi 0, %s106
      %s107 = sphi 0, %s104
      %s108 = sphi 0, %s107
      %s124 = sphi 0, %s108
      %s130 = sphi 0, %s132
      %s133 = sphi 0, %s130
      %s134 = sphi 0, %s133
      %s150 = sphi 0, %s134
      %s156 = sphi 0, %s158
      %s159 = sphi 0, %s156
      %s160 = sphi 0, %s159
      %s176 = sphi 0, %s160
      %s182 = sphi 0, %s184
      %s185 = sphi 0, %s182
      %s186 = sphi 0, %s185
      %s202 = sphi 0, %s186
      %s208 = sphi 0, %s210
      %s211 = sphi 0, %s208
      %s212 = sphi 0, %s211
      %s228 = sphi 0, %s212
      %s232 = sphi 0, %s232
      %s234 = sphi 0, %s232
      %s235 = sphi 0, %s234
      %s249 = sphi 0, %s235
      %s253 = sphi 0, %s253
      %s255 = sphi 0, %s253
      %s256 = sphi 0, %s255
      %s270 = sphi 0, %s256
      %s274 = sphi 0, %s274
      %s276 = sphi 0, %s274
      %s277 = sphi 0, %s276
      %s291 = sphi 0, %s277
      %s295 = sphi 0, %s295
      %s297 = sphi 0, %s295
      %s298 = sphi 0, %s297
      %s312 = sphi 0, %s298
      %s316 = sphi 0, %s316
      %s318 = sphi 0, %s316
      %s319 = sphi 0, %s318
      %s333 = sphi 0, %s319
      %s337 = sphi 0, %s337
      %s339 = sphi 0, %s337
      %s340 = sphi 0, %s339
      %s354 = sphi 0, %s340
      %s360 = sphi 0, %s362
      %s363 = sphi 0, %s360
      %s364 = sphi 0, %s363
      %s380 = sphi 0, %s364
    $region4: #{tpu_custom_call.1} parent=1 // loop_header_branch
      %31 = sbr.rel (%p29) target = $region8
    $region5: #{tpu_custom_call.1} parent=1 // loop_body
      %s33 = ssub.s32 %s28, 1
      %s34 = ssub.s32 %s28, 2
      %s41 = sadd.s32 1, %s36
      %p42 = scmp.ge.s32.totalorder %s41, 4
      %s43 = scalar_select %p42, 0, %s41
      %s44 = sadd.s32 1, %s35
      %s45 = scalar_select %p42, %s44, %s35
      %p46 = scmp.ge.s32.totalorder %s45, 1
      %s47 = scalar_select %p46, 0, %s45
      %s48 = ssub.s32 %s35, %s47
      %p49 = scmp.eq.s32.totalorder %s48, 0
      %s51 = sadd.s32 %s50, 1
      %s52 = scalar_select %p49, %s50, %s51
      %p55 = pneg %p49
      %p56 = scmp.eq.s32.totalorder %s28, 3
      %p57 = por %p55, %p56
      %p58 = scmp.ne.s32.totalorder %s50, %s53
      %p59 = scmp.eq.s32.totalorder %s28, 0
      %p60 = por %p58, %p59
      %p61 = scmp.ne.s32.totalorder %s50, %s53
      %p62 = scmp.eq.s32.totalorder %s33, 3
      %p63 = por %p61, %p62
      %p64 = scmp.ne.s32.totalorder %s53, %s54
      %p65 = scmp.eq.s32.totalorder %s33, 0
      %p66 = por %p64, %p65
      %p67 = scmp.ne.s32.totalorder %s53, %s54
      %p68 = scmp.eq.s32.totalorder %s34, 3
      %p69 = por %p67, %p68
      %p71 = scmp.ne.s32.totalorder %s54, %s70
      %p72 = scmp.eq.s32.totalorder %s34, 0
      %p73 = por %p71, %p72
      %s74 = ssub.s32 %s35, %s47
      %p75 = scmp.eq.s32.totalorder %s74, 0
      %s77 = sadd.s32 %s76, 1
      %s78 = scalar_select %p75, %s76, %s77
      %p81 = pneg %p75
      %p82 = scmp.eq.s32.totalorder %s28, 3
      %p83 = por %p81, %p82
      %p84 = scmp.ne.s32.totalorder %s76, %s79
      %p85 = scmp.eq.s32.totalorder %s28, 0
      %p86 = por %p84, %p85
      %p87 = scmp.ne.s32.totalorder %s76, %s79
      %p88 = scmp.eq.s32.totalorder %s33, 3
      %p89 = por %p87, %p88
      %p90 = scmp.ne.s32.totalorder %s79, %s80
      %p91 = scmp.eq.s32.totalorder %s33, 0
      %p92 = por %p90, %p91
      %p93 = scmp.ne.s32.totalorder %s79, %s80
      %p94 = scmp.eq.s32.totalorder %s34, 3
      %p95 = por %p93, %p94
      %p97 = scmp.ne.s32.totalorder %s80, %s96
      %p98 = scmp.eq.s32.totalorder %s34, 0
      %p99 = por %p97, %p98
      %s100 = ssub.s32 %s35, %s47
      %s101 = ssub.s32 %s36, %s43
      %s102 = sor.u32 %s100, %s101
      %p103 = scmp.eq.s32.totalorder %s102, 0
      %s105 = sadd.s32 %s104, 1
      %s106 = scalar_select %p103, %s104, %s105
      %p109 = pneg %p103
      %p110 = scmp.eq.s32.totalorder %s28, 3
      %p111 = por %p109, %p110
      %p112 = scmp.ne.s32.totalorder %s104, %s107
      %p113 = scmp.eq.s32.totalorder %s28, 0
      %p114 = por %p112, %p113
      %p115 = scmp.ne.s32.totalorder %s104, %s107
      %p116 = scmp.eq.s32.totalorder %s33, 3
      %p117 = por %p115, %p116
      %p118 = scmp.ne.s32.totalorder %s107, %s108
      %p119 = scmp.eq.s32.totalorder %s33, 0
      %p120 = por %p118, %p119
      %p121 = scmp.ne.s32.totalorder %s107, %s108
      %p122 = scmp.eq.s32.totalorder %s34, 3
      %p123 = por %p121, %p122
      %p125 = scmp.ne.s32.totalorder %s108, %s124
      %p126 = scmp.eq.s32.totalorder %s34, 0
      %p127 = por %p125, %p126
      %s128 = ssub.s32 %s36, %s43
      %p129 = scmp.eq.s32.totalorder %s128, 0
      %s131 = sadd.s32 %s130, 1
      %s132 = scalar_select %p129, %s130, %s131
      %p135 = pneg %p129
      %p136 = scmp.eq.s32.totalorder %s28, 3
      %p137 = por %p135, %p136
      %p138 = scmp.ne.s32.totalorder %s130, %s133
      %p139 = scmp.eq.s32.totalorder %s28, 0
      %p140 = por %p138, %p139
      %p141 = scmp.ne.s32.totalorder %s130, %s133
      %p142 = scmp.eq.s32.totalorder %s33, 3
      %p143 = por %p141, %p142
      %p144 = scmp.ne.s32.totalorder %s133, %s134
      %p145 = scmp.eq.s32.totalorder %s33, 0
      %p146 = por %p144, %p145
      %p147 = scmp.ne.s32.totalorder %s133, %s134
      %p148 = scmp.eq.s32.totalorder %s34, 3
      %p149 = por %p147, %p148
      %p151 = scmp.ne.s32.totalorder %s134, %s150
      %p152 = scmp.eq.s32.totalorder %s34, 0
      %p153 = por %p151, %p152
      %s154 = ssub.s32 %s36, %s43
      %p155 = scmp.eq.s32.totalorder %s154, 0
      %s157 = sadd.s32 %s156, 1
      %s158 = scalar_select %p155, %s156, %s157
      %p161 = pneg %p155
      %p162 = scmp.eq.s32.totalorder %s28, 3
      %p163 = por %p161, %p162
      %p164 = scmp.ne.s32.totalorder %s156, %s159
      %p165 = scmp.eq.s32.totalorder %s28, 0
      %p166 = por %p164, %p165
      %p167 = scmp.ne.s32.totalorder %s156, %s159
      %p168 = scmp.eq.s32.totalorder %s33, 3
      %p169 = por %p167, %p168
      %p170 = scmp.ne.s32.totalorder %s159, %s160
      %p171 = scmp.eq.s32.totalorder %s33, 0
      %p172 = por %p170, %p171
      %p173 = scmp.ne.s32.totalorder %s159, %s160
      %p174 = scmp.eq.s32.totalorder %s34, 3
      %p175 = por %p173, %p174
      %p177 = scmp.ne.s32.totalorder %s160, %s176
      %p178 = scmp.eq.s32.totalorder %s34, 0
      %p179 = por %p177, %p178
      %s180 = ssub.s32 %s36, %s43
      %p181 = scmp.eq.s32.totalorder %s180, 0
      %s183 = sadd.s32 %s182, 1
      %s184 = scalar_select %p181, %s182, %s183
      %p187 = pneg %p181
      %p188 = scmp.eq.s32.totalorder %s28, 3
      %p189 = por %p187, %p188
      %p190 = scmp.ne.s32.totalorder %s182, %s185
      %p191 = scmp.eq.s32.totalorder %s28, 0
      %p192 = por %p190, %p191
      %p193 = scmp.ne.s32.totalorder %s182, %s185
      %p194 = scmp.eq.s32.totalorder %s33, 3
      %p195 = por %p193, %p194
      %p196 = scmp.ne.s32.totalorder %s185, %s186
      %p197 = scmp.eq.s32.totalorder %s33, 0
      %p198 = por %p196, %p197
      %p199 = scmp.ne.s32.totalorder %s185, %s186
      %p200 = scmp.eq.s32.totalorder %s34, 3
      %p201 = por %p199, %p200
      %p203 = scmp.ne.s32.totalorder %s186, %s202
      %p204 = scmp.eq.s32.totalorder %s34, 0
      %p205 = por %p203, %p204
      %s206 = ssub.s32 %s36, %s43
      %p207 = scmp.eq.s32.totalorder %s206, 0
      %s209 = sadd.s32 %s208, 1
      %s210 = scalar_select %p207, %s208, %s209
      %p213 = pneg %p207
      %p214 = scmp.eq.s32.totalorder %s28, 3
      %p215 = por %p213, %p214
      %p216 = scmp.ne.s32.totalorder %s208, %s211
      %p217 = scmp.eq.s32.totalorder %s28, 0
      %p218 = por %p216, %p217
      %p219 = scmp.ne.s32.totalorder %s208, %s211
      %p220 = scmp.eq.s32.totalorder %s33, 3
      %p221 = por %p219, %p220
      %p222 = scmp.ne.s32.totalorder %s211, %s212
      %p223 = scmp.eq.s32.totalorder %s33, 0
      %p224 = por %p222, %p223
      %p225 = scmp.ne.s32.totalorder %s211, %s212
      %p226 = scmp.eq.s32.totalorder %s34, 3
      %p227 = por %p225, %p226
      %p229 = scmp.ne.s32.totalorder %s212, %s228
      %p230 = scmp.eq.s32.totalorder %s34, 0
      %p231 = por %p229, %p230
      %s233 = sadd.s32 %s232, 1
      %p236 = scmp.eq.s32.totalorder %s28, 3
      %p237 = scmp.ne.s32.totalorder %s232, %s234
      %p238 = scmp.eq.s32.totalorder %s28, 0
      %p239 = por %p237, %p238
      %p240 = scmp.ne.s32.totalorder %s232, %s234
      %p241 = scmp.eq.s32.totalorder %s33, 3
      %p242 = por %p240, %p241
      %p243 = scmp.ne.s32.totalorder %s234, %s235
      %p244 = scmp.eq.s32.totalorder %s33, 0
      %p245 = por %p243, %p244
      %p246 = scmp.ne.s32.totalorder %s234, %s235
      %p247 = scmp.eq.s32.totalorder %s34, 3
      %p248 = por %p246, %p247
      %p250 = scmp.ne.s32.totalorder %s235, %s249
      %p251 = scmp.eq.s32.totalorder %s34, 0
      %p252 = por %p250, %p251
      %s254 = sadd.s32 %s253, 1
      %p257 = scmp.eq.s32.totalorder %s28, 3
      %p258 = scmp.ne.s32.totalorder %s253, %s255
      %p259 = scmp.eq.s32.totalorder %s28, 0
      %p260 = por %p258, %p259
      %p261 = scmp.ne.s32.totalorder %s253, %s255
      %p262 = scmp.eq.s32.totalorder %s33, 3
      %p263 = por %p261, %p262
      %p264 = scmp.ne.s32.totalorder %s255, %s256
      %p265 = scmp.eq.s32.totalorder %s33, 0
      %p266 = por %p264, %p265
      %p267 = scmp.ne.s32.totalorder %s255, %s256
      %p268 = scmp.eq.s32.totalorder %s34, 3
      %p269 = por %p267, %p268
      %p271 = scmp.ne.s32.totalorder %s256, %s270
      %p272 = scmp.eq.s32.totalorder %s34, 0
      %p273 = por %p271, %p272
      %s275 = sadd.s32 %s274, 1
      %p278 = scmp.eq.s32.totalorder %s28, 3
      %p279 = scmp.ne.s32.totalorder %s274, %s276
      %p280 = scmp.eq.s32.totalorder %s28, 0
      %p281 = por %p279, %p280
      %p282 = scmp.ne.s32.totalorder %s274, %s276
      %p283 = scmp.eq.s32.totalorder %s33, 3
      %p284 = por %p282, %p283
      %p285 = scmp.ne.s32.totalorder %s276, %s277
      %p286 = scmp.eq.s32.totalorder %s33, 0
      %p287 = por %p285, %p286
      %p288 = scmp.ne.s32.totalorder %s276, %s277
      %p289 = scmp.eq.s32.totalorder %s34, 3
      %p290 = por %p288, %p289
      %p292 = scmp.ne.s32.totalorder %s277, %s291
      %p293 = scmp.eq.s32.totalorder %s34, 0
      %p294 = por %p292, %p293
      %s296 = sadd.s32 %s295, 1
      %p299 = scmp.eq.s32.totalorder %s28, 3
      %p300 = scmp.ne.s32.totalorder %s295, %s297
      %p301 = scmp.eq.s32.totalorder %s28, 0
      %p302 = por %p300, %p301
      %p303 = scmp.ne.s32.totalorder %s295, %s297
      %p304 = scmp.eq.s32.totalorder %s33, 3
      %p305 = por %p303, %p304
      %p306 = scmp.ne.s32.totalorder %s297, %s298
      %p307 = scmp.eq.s32.totalorder %s33, 0
      %p308 = por %p306, %p307
      %p309 = scmp.ne.s32.totalorder %s297, %s298
      %p310 = scmp.eq.s32.totalorder %s34, 3
      %p311 = por %p309, %p310
      %p313 = scmp.ne.s32.totalorder %s298, %s312
      %p314 = scmp.eq.s32.totalorder %s34, 0
      %p315 = por %p313, %p314
      %s317 = sadd.s32 %s316, 1
      %p320 = scmp.eq.s32.totalorder %s28, 3
      %p321 = scmp.ne.s32.totalorder %s316, %s318
      %p322 = scmp.eq.s32.totalorder %s28, 0
      %p323 = por %p321, %p322
      %p324 = scmp.ne.s32.totalorder %s316, %s318
      %p325 = scmp.eq.s32.totalorder %s33, 3
      %p326 = por %p324, %p325
      %p327 = scmp.ne.s32.totalorder %s318, %s319
      %p328 = scmp.eq.s32.totalorder %s33, 0
      %p329 = por %p327, %p328
      %p330 = scmp.ne.s32.totalorder %s318, %s319
      %p331 = scmp.eq.s32.totalorder %s34, 3
      %p332 = por %p330, %p331
      %p334 = scmp.ne.s32.totalorder %s319, %s333
      %p335 = scmp.eq.s32.totalorder %s34, 0
      %p336 = por %p334, %p335
      %s338 = sadd.s32 %s337, 1
      %p341 = scmp.eq.s32.totalorder %s28, 3
      %p342 = scmp.ne.s32.totalorder %s337, %s339
      %p343 = scmp.eq.s32.totalorder %s28, 0
      %p344 = por %p342, %p343
      %p345 = scmp.ne.s32.totalorder %s337, %s339
      %p346 = scmp.eq.s32.totalorder %s33, 3
      %p347 = por %p345, %p346
      %p348 = scmp.ne.s32.totalorder %s339, %s340
      %p349 = scmp.eq.s32.totalorder %s33, 0
      %p350 = por %p348, %p349
      %p351 = scmp.ne.s32.totalorder %s339, %s340
      %p352 = scmp.eq.s32.totalorder %s34, 3
      %p353 = por %p351, %p352
      %p355 = scmp.ne.s32.totalorder %s340, %s354
      %p356 = scmp.eq.s32.totalorder %s34, 0
      %p357 = por %p355, %p356
      %s358 = ssub.s32 %s35, %s47
      %p359 = scmp.eq.s32.totalorder %s358, 0
      %s361 = sadd.s32 %s360, 1
      %s362 = scalar_select %p359, %s360, %s361
      %p365 = pneg %p359
      %p366 = scmp.eq.s32.totalorder %s28, 3
      %p367 = por %p365, %p366
      %p368 = scmp.ne.s32.totalorder %s360, %s363
      %p369 = scmp.eq.s32.totalorder %s28, 0
      %p370 = por %p368, %p369
      %p371 = scmp.ne.s32.totalorder %s360, %s363
      %p372 = scmp.eq.s32.totalorder %s33, 3
      %p373 = por %p371, %p372
      %p374 = scmp.ne.s32.totalorder %s363, %s364
      %p375 = scmp.eq.s32.totalorder %s33, 0
      %p376 = por %p374, %p375
      %p377 = scmp.ne.s32.totalorder %s363, %s364
      %p378 = scmp.eq.s32.totalorder %s34, 3
      %p379 = por %p377, %p378
      %p381 = scmp.ne.s32.totalorder %s364, %s380
      %p382 = scmp.eq.s32.totalorder %s34, 0
      %p383 = por %p381, %p382
      %p384 = scmp.le.s32.totalorder 1, %s28
      %p385 = scmp.lt.s32.totalorder %s28, 5
      %p386 = pnand %p384, %p385
      %p387 = pneg %p386
      // Predicated region
      $region9: #{tpu_custom_call.1} parent=5 // pred_check
        _
      $region10: #{tpu_custom_call.1} parent=5 // pred_check_branch
        %389 = sbr.rel (%p386) target = $region12
      $region11: #{tpu_custom_call.1} parent=5 // pred_region
        %s390 = ssub.s32 %s28, 1
        // Predicated region
        $region13: #{tpu_custom_call.1} parent=11 // pred_check
          %p391 = pneg %p66
        $region14: #{tpu_custom_call.1} parent=11 // pred_check_branch
          %393 = sbr.rel (%p391) target = $region16
        $region15: #{tpu_custom_call.1} parent=11 // pred_region
          %s394 = smul.u32 16, %s37
          %p395 = scmp.lt.s32.totalorder %s394, 15
          %s396 = scalar_select %p395, %s394, 15
          %s397 = smul.addr %s396, 8
          %s398 = scalar_lea.vmem %s0, %s397
          %s399 = smul.u32 16, %s37
        $region16: #{tpu_custom_call.1} parent=11 // pred_fallthru
          _
        // Predicated region
        $region17: #{tpu_custom_call.1} parent=11 // pred_check
          %p400 = pneg %p92
        $region18: #{tpu_custom_call.1} parent=11 // pred_check_branch
          %402 = sbr.rel (%p400) target = $region20
        $region19: #{tpu_custom_call.1} parent=11 // pred_region
          %s403 = smul.u32 16, %s37
          %p404 = scmp.lt.s32.totalorder %s403, 15
          %s405 = scalar_select %p404, %s403, 15
          %s406 = smul.addr %s405, 8
          %s407 = scalar_lea.vmem %s1, %s406
          %s408 = smul.u32 16, %s37
        $region20: #{tpu_custom_call.1} parent=11 // pred_fallthru
          _
        // Predicated region
        $region21: #{tpu_custom_call.1} parent=11 // pred_check
          %p409 = pneg %p245
        $region22: #{tpu_custom_call.1} parent=11 // pred_check_branch
          %411 = sbr.rel (%p409) target = $region24
        $region23: #{tpu_custom_call.1} parent=11 // pred_region
          %s413 = ssub.s32 1024, 1024
          %414 = vsyncadd [#allocation12], %s413
          %s415 = sshll.u32 [#allocation11], 4
          %s416 = int_to_ptr.vmem [resolvable:$true] %s415
          %421 = dma.hbm_to_vmem [thread:$0]  %s7, 1024, %s416, [#allocation12], 64, 64, 4
        $region24: #{tpu_custom_call.1} parent=11 // pred_fallthru
          _
        // Predicated region
        $region25: #{tpu_custom_call.1} parent=11 // pred_check
          %p422 = pneg %p266
        $region26: #{tpu_custom_call.1} parent=11 // pred_check_branch
          %424 = sbr.rel (%p422) target = $region28
        $region27: #{tpu_custom_call.1} parent=11 // pred_region
          _
        $region28: #{tpu_custom_call.1} parent=11 // pred_fallthru
          _
        // Predicated region
        $region29: #{tpu_custom_call.1} parent=11 // pred_check
          %p425 = pneg %p287
        $region30: #{tpu_custom_call.1} parent=11 // pred_check_branch
          %427 = sbr.rel (%p425) target = $region32
        $region31: #{tpu_custom_call.1} parent=11 // pred_region
          %s429 = ssub.s32 1024, 1024
          %430 = vsyncadd [#allocation12], %s429
          %s431 = sshll.u32 [#allocation13], 4
          %s432 = int_to_ptr.vmem [resolvable:$true] %s431
          %437 = dma.hbm_to_vmem [thread:$0]  %s9, 1024, %s432, [#allocation12], 64, 64, 4
        $region32: #{tpu_custom_call.1} parent=11 // pred_fallthru
          _
        // Predicated region
        $region33: #{tpu_custom_call.1} parent=11 // pred_check
          %p438 = pneg %p308
        $region34: #{tpu_custom_call.1} parent=11 // pred_check_branch
          %440 = sbr.rel (%p438) target = $region36
        $region35: #{tpu_custom_call.1} parent=11 // pred_region
          _
        $region36: #{tpu_custom_call.1} parent=11 // pred_fallthru
          _
        // Predicated region
        $region37: #{tpu_custom_call.1} parent=11 // pred_check
          %p441 = pneg %p329
        $region38: #{tpu_custom_call.1} parent=11 // pred_check_branch
          %443 = sbr.rel (%p441) target = $region40
        $region39: #{tpu_custom_call.1} parent=11 // pred_region
          %s445 = ssub.s32 1024, 1024
          %446 = vsyncadd [#allocation15], %s445
          %s447 = sshll.u32 [#allocation14], 4
          %s448 = int_to_ptr.vmem [resolvable:$true] %s447
          %453 = dma.hbm_to_vmem [thread:$0]  %s11, 1024, %s448, [#allocation15], 64, 64, 4
        $region40: #{tpu_custom_call.1} parent=11 // pred_fallthru
          _
        // Predicated region
        $region41: #{tpu_custom_call.1} parent=11 // pred_check
          %p454 = pneg %p350
        $region42: #{tpu_custom_call.1} parent=11 // pred_check_branch
          %456 = sbr.rel (%p454) target = $region44
        $region43: #{tpu_custom_call.1} parent=11 // pred_region
          _
        $region44: #{tpu_custom_call.1} parent=11 // pred_fallthru
          _
      $region12: #{tpu_custom_call.1} parent=5 // pred_fallthru
        _
      %p457 = scmp.lt.s32.totalorder %s28, 4
      // Predicated region
      $region45: #{tpu_custom_call.1} parent=5 // pred_check
        %p458 = pneg %p457
      $region46: #{tpu_custom_call.1} parent=5 // pred_check_branch
        %460 = sbr.rel (%p458) target = $region48
      $region47: #{tpu_custom_call.1} parent=5 // pred_region
        // Predicated region
        $region49: #{tpu_custom_call.1} parent=47 // pred_check
          %p461 = pneg %p114
        $region50: #{tpu_custom_call.1} parent=47 // pred_check_branch
          %463 = sbr.rel (%p461) target = $region52
        $region51: #{tpu_custom_call.1} parent=47 // pred_region
          %s464 = sand.u32 %s104, 1
          %s465 = sand.u32 %s104, 1
          %s466 = smul.addr %s465, 2
          %s467 = scalar_lea.vmem [#allocation4], %s466
          %s468 = smul.u32 2, %s35
          %s469 = smul.addr %s468, 4
          %s470 = sadd.s32 %s36, %s469
          %s471 = scalar_lea.vmem %s2, %s470
          // Predicated region
          $region53: #{tpu_custom_call.1} parent=51 // pred_check
            _
          $region54: #{tpu_custom_call.1} parent=51 // pred_check_branch
            %473 = sbr.rel (0) target = $region56
          $region55: #{tpu_custom_call.1} parent=51 // pred_region
            // Predicated region
            $region57: #{tpu_custom_call.1} parent=55 // pred_check
              _
            $region58: #{tpu_custom_call.1} parent=55 // pred_check_branch
              %475 = sbr.rel target = $region60
            $region59: #{tpu_custom_call.1} parent=55 // pred_region
              // Predicated region
              $region72: #{tpu_custom_call.1} parent=59 // pred_check
                _
              $region73: #{tpu_custom_call.1} parent=59 // pred_check_branch
                %493 = sbr.rel (0) target = $region75
              $region74: #{tpu_custom_call.1} parent=59 // pred_region
                %s495 = ssub.s32 2, 1
                loop: start=0, step=1, limit=1
                $region76: #{tpu_custom_call.1} parent=74 // loop_pre_header
                  _
                $region77: #{tpu_custom_call.1} parent=74 // loop_header
                  %s497 = sphi 0, %s501
                  %p498 = scmp.ge.s32.totalorder %s497, 1
                  %s502 = sphi %s471, %s471
                  %s503 = sphi %s467, %s467
                $region78: #{tpu_custom_call.1} parent=74 // loop_header_branch
                  %500 = sbr.rel (%p498) target = $region82
                $region79: #{tpu_custom_call.1} parent=74 // loop_body
                  %v504 = vld [vmem:[%s502] sm:%s495]
                  %505 = vst [vmem:[%s503] sm:%s495] %v504
                  %v506 = vld [vmem:[%s502 + $0x4] sm:%s495]
                  %507 = vst [vmem:[%s503 + $0x1] sm:%s495] %v506
                $region80: #{tpu_custom_call.1} parent=74 // loop_footer
                  %s501 = sadd.s32 1, %s497
                $region81: #{tpu_custom_call.1} parent=74 // loop_footer_branch
                  %496 = sbr.rel target = $region77
                $region82: #{tpu_custom_call.1} parent=74 // loop_exit
                  _
              $region75: #{tpu_custom_call.1} parent=59 // pred_fallthru
                _
            $region60: #{tpu_custom_call.1} parent=55 // pred_fallthru
              _
            // Predicated region
            $region61: #{tpu_custom_call.1} parent=55 // pred_check
              _
            $region62: #{tpu_custom_call.1} parent=55 // pred_check_branch
              %477 = sbr.rel (0) target = $region64
            $region63: #{tpu_custom_call.1} parent=55 // pred_region
              %s479 = ssub.s32 2, 1
              loop: start=0, step=1, limit=1
              $region65: #{tpu_custom_call.1} parent=63 // loop_pre_header
                _
              $region66: #{tpu_custom_call.1} parent=63 // loop_header
                %s481 = sphi 0, %s485
                %p482 = scmp.ge.s32.totalorder %s481, 1
                %s486 = sphi %s471, %s471
                %s487 = sphi %s467, %s467
              $region67: #{tpu_custom_call.1} parent=63 // loop_header_branch
                %484 = sbr.rel (%p482) target = $region71
              $region68: #{tpu_custom_call.1} parent=63 // loop_body
                %v488 = vld [vmem:[%s486] sm:%s479]
                %489 = vst [vmem:[%s487] sm:%s479] %v488
                %v490 = vld [vmem:[%s486 + $0x4] sm:%s479]
                %491 = vst [vmem:[%s487 + $0x1] sm:%s479] %v490
              $region69: #{tpu_custom_call.1} parent=63 // loop_footer
                %s485 = sadd.s32 1, %s481
              $region70: #{tpu_custom_call.1} parent=63 // loop_footer_branch
                %480 = sbr.rel target = $region66
              $region71: #{tpu_custom_call.1} parent=63 // loop_exit
                _
            $region64: #{tpu_custom_call.1} parent=55 // pred_fallthru
              _
          $region56: #{tpu_custom_call.1} parent=51 // pred_fallthru
            _
          %508 = vnop
        $region52: #{tpu_custom_call.1} parent=47 // pred_fallthru
          _
        // Predicated region
        $region83: #{tpu_custom_call.1} parent=47 // pred_check
          %p509 = pneg %p140
        $region84: #{tpu_custom_call.1} parent=47 // pred_check_branch
          %511 = sbr.rel (%p509) target = $region86
        $region85: #{tpu_custom_call.1} parent=47 // pred_region
          %s512 = sand.u32 %s130, 1
          %s513 = scalar_lea.sflag [#allocation6], %s512
          %s514 = sand.u32 %s130, 1
          %s515 = smul.addr %s514, 384
          %s516 = scalar_lea.vmem [#allocation5], %s515
          %s518 = ssub.s32 6144, 6144
          %519 = vsyncadd %s513, %s518
          %s520 = smul.addr %s36, 96
          %s521 = smul.addr %s520, 64
          %s522 = scalar_lea.hbm %s3, %s521
          %s523 = sshll.u32 %s516, 4
          %s524 = int_to_ptr.vmem [resolvable:$true] %s523
          %529 = dma.hbm_to_vmem [thread:$0]  %s522, 6144, %s524, %s513, 128, 128, 8
        $region86: #{tpu_custom_call.1} parent=47 // pred_fallthru
          _
        // Predicated region
        $region87: #{tpu_custom_call.1} parent=47 // pred_check
          %p530 = pneg %p166
        $region88: #{tpu_custom_call.1} parent=47 // pred_check_branch
          %532 = sbr.rel (%p530) target = $region90
        $region89: #{tpu_custom_call.1} parent=47 // pred_region
          %s533 = sand.u32 %s28, 1
          %s534 = scalar_lea.sflag [#allocation9], %s533
          %s535 = sand.u32 %s156, 1
          %s536 = smul.addr %s535, 32
          %s537 = scalar_lea.vmem [#allocation8], %s536
          %s539 = ssub.s32 512, 512
          %540 = vsyncadd %s534, %s539
          %s541 = smul.addr %s36, 8
          %s542 = smul.addr %s541, 64
          %s543 = scalar_lea.hbm %s4, %s542
          %s544 = sshll.u32 %s537, 4
          %s545 = int_to_ptr.vmem [resolvable:$true] %s544
          %550 = dma.hbm_to_vmem [thread:$0]  %s543, 512, %s545, %s534, 128, 128, 8
        $region90: #{tpu_custom_call.1} parent=47 // pred_fallthru
          _
        // Predicated region
        $region91: #{tpu_custom_call.1} parent=47 // pred_check
          %p551 = pneg %p192
        $region92: #{tpu_custom_call.1} parent=47 // pred_check_branch
          %553 = sbr.rel (%p551) target = $region94
        $region93: #{tpu_custom_call.1} parent=47 // pred_region
          %s554 = sand.u32 %s28, 1
          %s555 = scalar_lea.sflag [#allocation9], %s554
          %s556 = sand.u32 %s182, 1
          %s557 = smul.addr %s556, 128
          %s558 = scalar_lea.vmem [#allocation10], %s557
          %s560 = ssub.s32 2048, 2048
          %561 = vsyncadd %s555, %s560
          %s562 = smul.addr %s36, 32
          %s563 = smul.addr %s562, 64
          %s564 = scalar_lea.hbm %s5, %s563
          %s565 = sshll.u32 %s558, 4
          %s566 = int_to_ptr.vmem [resolvable:$true] %s565
          %571 = dma.hbm_to_vmem [thread:$0]  %s564, 2048, %s566, %s555, 128, 128, 8
        $region94: #{tpu_custom_call.1} parent=47 // pred_fallthru
          _
        // Predicated region
        $region95: #{tpu_custom_call.1} parent=47 // pred_check
          %p572 = pneg %p218
        $region96: #{tpu_custom_call.1} parent=47 // pred_check_branch
          %574 = sbr.rel (%p572) target = $region98
        $region97: #{tpu_custom_call.1} parent=47 // pred_region
          %p575 = scmp.lt.s32.totalorder %s36, 3
          %s576 = scalar_select %p575, %s36, 3
          %s577 = smul.addr %s576, 2
          %s578 = smul.addr %s577, 2
          %s579 = scalar_lea.vmem %s6, %s578
        $region98: #{tpu_custom_call.1} parent=47 // pred_fallthru
          _
      $region48: #{tpu_custom_call.1} parent=5 // pred_fallthru
        _
      %p580 = scmp.le.s32.totalorder 1, %s28
      %p581 = scmp.lt.s32.totalorder %s28, 5
      %p582 = pnand %p580, %p581
      %p583 = pneg %p582
      // Predicated region
      $region99: #{tpu_custom_call.1} parent=5 // pred_check
        _
      $region100: #{tpu_custom_call.1} parent=5 // pred_check_branch
        %585 = sbr.rel (%p582) target = $region102
      $region101: #{tpu_custom_call.1} parent=5 // pred_region
        %s586 = ssub.s32 %s28, 1
        %s587 = sand.u32 %s107, 1
        %s588 = sand.u32 %s107, 1
        %s589 = smul.addr %s588, 2
        %s590 = scalar_lea.vmem [#allocation4], %s589
        // Predicated region
        $region103: #{tpu_custom_call.1} parent=101 // pred_check
          %p591 = pneg %p120
        $region104: #{tpu_custom_call.1} parent=101 // pred_check_branch
          %593 = sbr.rel (%p591) target = $region106
        $region105: #{tpu_custom_call.1} parent=101 // pred_region
          _
        $region106: #{tpu_custom_call.1} parent=101 // pred_fallthru
          _
        %s594 = sand.u32 %s133, 1
        %s595 = scalar_lea.sflag [#allocation6], %s594
        %s596 = sand.u32 %s133, 1
        %s597 = smul.addr %s596, 384
        %s598 = scalar_lea.vmem [#allocation5], %s597
        // Predicated region
        $region107: #{tpu_custom_call.1} parent=101 // pred_check
          %p599 = pneg %p146
        $region108: #{tpu_custom_call.1} parent=101 // pred_check_branch
          %601 = sbr.rel (%p599) target = $region110
        $region109: #{tpu_custom_call.1} parent=101 // pred_region
          %602 = dma.done %s595, 6144
        $region110: #{tpu_custom_call.1} parent=101 // pred_fallthru
          _
        %s603 = sand.u32 %s33, 1
        %s604 = scalar_lea.sflag [#allocation9], %s603
        %s605 = sand.u32 %s159, 1
        %s606 = smul.addr %s605, 32
        %s607 = scalar_lea.vmem [#allocation8], %s606
        // Predicated region
        $region111: #{tpu_custom_call.1} parent=101 // pred_check
          %p608 = pneg %p172
        $region112: #{tpu_custom_call.1} parent=101 // pred_check_branch
          %610 = sbr.rel (%p608) target = $region114
        $region113: #{tpu_custom_call.1} parent=101 // pred_region
          %611 = dma.done %s604, 512
        $region114: #{tpu_custom_call.1} parent=101 // pred_fallthru
          _
        %s612 = sand.u32 %s33, 1
        %s613 = scalar_lea.sflag [#allocation9], %s612
        %s614 = sand.u32 %s185, 1
        %s615 = smul.addr %s614, 128
        %s616 = scalar_lea.vmem [#allocation10], %s615
        // Predicated region
        $region115: #{tpu_custom_call.1} parent=101 // pred_check
          %p617 = pneg %p198
        $region116: #{tpu_custom_call.1} parent=101 // pred_check_branch
          %619 = sbr.rel (%p617) target = $region118
        $region117: #{tpu_custom_call.1} parent=101 // pred_region
          %620 = dma.done %s613, 2048
        $region118: #{tpu_custom_call.1} parent=101 // pred_fallthru
          _
        // Predicated region
        $region119: #{tpu_custom_call.1} parent=101 // pred_check
          %p621 = pneg %p245
        $region120: #{tpu_custom_call.1} parent=101 // pred_check_branch
          %623 = sbr.rel (%p621) target = $region122
        $region121: #{tpu_custom_call.1} parent=101 // pred_region
          %624 = dma.done [#allocation12], 1024
        $region122: #{tpu_custom_call.1} parent=101 // pred_fallthru
          _
        // Predicated region
        $region123: #{tpu_custom_call.1} parent=101 // pred_check
          %p625 = pneg %p287
        $region124: #{tpu_custom_call.1} parent=101 // pred_check_branch
          %627 = sbr.rel (%p625) target = $region126
        $region125: #{tpu_custom_call.1} parent=101 // pred_region
          %628 = dma.done [#allocation12], 1024
        $region126: #{tpu_custom_call.1} parent=101 // pred_fallthru
          _
        // Predicated region
        $region127: #{tpu_custom_call.1} parent=101 // pred_check
          %p629 = pneg %p329
        $region128: #{tpu_custom_call.1} parent=101 // pred_check_branch
          %631 = sbr.rel (%p629) target = $region130
        $region129: #{tpu_custom_call.1} parent=101 // pred_region
          %632 = dma.done [#allocation15], 1024
        $region130: #{tpu_custom_call.1} parent=101 // pred_fallthru
          _
        %s633 = smul.u32 16, %s37
        %p634 = scmp.lt.s32.totalorder %s633, 15
        %s635 = scalar_select %p634, %s633, 15
        %s636 = smul.addr %s635, 8
        %s637 = scalar_lea.vmem %s0, %s636
        %p638 = pneg %p66
        %p639 = pneg %p63
        %s640 = smul.u32 16, %s37
        %p641 = scmp.lt.s32.totalorder %s640, 15
        %s642 = scalar_select %p641, %s640, 15
        %s643 = smul.addr %s642, 8
        %s644 = scalar_lea.vmem %s1, %s643
        %p645 = pneg %p92
        %p646 = pneg %p89
        %s647 = sand.u32 %s107, 1
        %s648 = sand.u32 %s107, 1
        %s649 = smul.addr %s648, 2
        %s650 = scalar_lea.vmem [#allocation4], %s649
        %p651 = pneg %p120
        %p652 = pneg %p117
        %s653 = sand.u32 %s133, 1
        %s654 = scalar_lea.sflag [#allocation6], %s653
        %s655 = sand.u32 %s133, 1
        %s656 = smul.addr %s655, 384
        %s657 = scalar_lea.vmem [#allocation5], %s656
        %p658 = pneg %p146
        %p659 = pneg %p143
        %s660 = sand.u32 %s33, 1
        %s661 = scalar_lea.sflag [#allocation9], %s660
        %s662 = sand.u32 %s159, 1
        %s663 = smul.addr %s662, 32
        %s664 = scalar_lea.vmem [#allocation8], %s663
        %p665 = pneg %p172
        %p666 = pneg %p169
        %s667 = sand.u32 %s33, 1
        %s668 = scalar_lea.sflag [#allocation9], %s667
        %s669 = sand.u32 %s185, 1
        %s670 = smul.addr %s669, 128
        %s671 = scalar_lea.vmem [#allocation10], %s670
        %p672 = pneg %p198
        %p673 = pneg %p195
        %p674 = scmp.lt.s32.totalorder %s38, 3
        %s675 = scalar_select %p674, %s38, 3
        %s676 = smul.addr %s675, 2
        %s677 = smul.addr %s676, 2
        %s678 = scalar_lea.vmem %s6, %s677
        %p679 = pneg %p224
        %p680 = pneg %p221
        %p681 = pneg %p245
        %p682 = pneg %p242
        %p683 = pneg %p266
        %p684 = pneg %p263
        %p685 = pneg %p287
        %p686 = pneg %p284
        %p687 = pneg %p308
        %p688 = pneg %p305
        %p689 = pneg %p329
        %p690 = pneg %p326
        %p691 = pneg %p350
        %p692 = pneg %p347
        %p693 = pneg %p376
        %p694 = pneg %p373
        %s695 = smul.u32 16, %s37
        %p696 = scmp.lt.s32.totalorder %s695, 15
        %s697 = scalar_select %p696, %s695, 15
        %s698 = smul.addr %s697, 8
        %s699 = scalar_lea.vmem %s0, %s698
        %s700 = smul.u32 16, %s37
        %s701 = smul.u32 16, %s37
        %p702 = scmp.lt.s32.totalorder %s701, 15
        %s703 = scalar_select %p702, %s701, 15
        %s704 = smul.addr %s703, 8
        %s705 = scalar_lea.vmem %s1, %s704
        %s706 = smul.u32 16, %s37
        %s707 = smul.u32 2, %s37
        %p708 = scmp.lt.s32.totalorder %s38, 3
        %s709 = scalar_select %p708, %s38, 3
        %s710 = smul.addr %s709, 2
        %s711 = smul.addr %s710, 2
        %s712 = scalar_lea.vmem %s6, %s711
        %s713 = smul.u32 16, %s37
        %p715 = scmp.eq.s32.totalorder %s38, 0
        // Predicated region
        $region131: #{tpu_custom_call.1} parent=101 // pred_check
          %p716 = pneg %p715
        $region132: #{tpu_custom_call.1} parent=101 // pred_check_branch
          %718 = sbr.rel (%p716) target = $region134
        $region133: #{tpu_custom_call.1} parent=101 // pred_region
          %v719 = vld [vmem:[%s699] sm:$0xff]
          %v720 = vld [vmem:[%s699 + $0x8] sm:$0xff]
          %v721 = vld [vmem:[%s699 + $0x10] sm:$0xff]
          %v722 = vld [vmem:[%s699 + $0x18] sm:$0xff]
          %v723 = vld [vmem:[%s699 + $0x20] sm:$0xff]
          %v724 = vld [vmem:[%s699 + $0x28] sm:$0xff]
          %v725 = vld [vmem:[%s699 + $0x30] sm:$0xff]
          %v726 = vld [vmem:[%s699 + $0x38] sm:$0xff]
          %v727 = vld [vmem:[%s699 + $0x40] sm:$0xff]
          %v728 = vld [vmem:[%s699 + $0x48] sm:$0xff]
          %v729 = vld [vmem:[%s699 + $0x50] sm:$0xff]
          %v730 = vld [vmem:[%s699 + $0x58] sm:$0xff]
          %v731 = vld [vmem:[%s699 + $0x60] sm:$0xff]
          %v732 = vld [vmem:[%s699 + $0x68] sm:$0xff]
          %v733 = vld [vmem:[%s699 + $0x70] sm:$0xff]
          %v734 = vld [vmem:[%s699 + $0x78] sm:$0xff]
          %v735 = vpack.c.bf16 %v720, %v719
          %v736 = vpack.c.bf16 %v722, %v721
          %v737 = vpack.c.bf16 %v724, %v723
          %v738 = vpack.c.bf16 %v726, %v725
          %v739 = vpack.c.bf16 %v728, %v727
          %v740 = vpack.c.bf16 %v730, %v729
          %v741 = vpack.c.bf16 %v732, %v731
          %v742 = vpack.c.bf16 %v734, %v733
          %v743 = vld [vmem:[#allocation11] sm:$0xf]
          %v744 = vld [vmem:[#allocation11 + $0x4] sm:$0xf]
          %v745 = vld [vmem:[#allocation11 + $0x8] sm:$0xf]
          %v746 = vld [vmem:[#allocation11 + $0xc] sm:$0xf]
          %v747 = vld [vmem:[#allocation11 + $0x10] sm:$0xf]
          %v748 = vld [vmem:[#allocation11 + $0x14] sm:$0xf]
          %v749 = vld [vmem:[#allocation11 + $0x18] sm:$0xf]
          %v750 = vld [vmem:[#allocation11 + $0x1c] sm:$0xf]
          %v751 = vld [vmem:[#allocation11 + $0x20] sm:$0xf]
          %v752 = vld [vmem:[#allocation11 + $0x24] sm:$0xf]
          %v753 = vld [vmem:[#allocation11 + $0x28] sm:$0xf]
          %v754 = vld [vmem:[#allocation11 + $0x2c] sm:$0xf]
          %v755 = vld [vmem:[#allocation11 + $0x30] sm:$0xf]
          %v756 = vld [vmem:[#allocation11 + $0x34] sm:$0xf]
          %v757 = vld [vmem:[#allocation11 + $0x38] sm:$0xf]
          %v758 = vld [vmem:[#allocation11 + $0x3c] sm:$0xf]
          %v759 = vld [vmem:[%s8] sm:$0x1]
          %v761 = vlaneseq
          %v762 = vshrl.u32 %v761, 7
          %v763 = vsub.s32 0, %v762
          %v764 = vrot.slane %v759, %v763
          %v782 = vunpack.c.l.b16 %v743
          %v783 = vunpack.c.l.b16 %v744
          %v784 = vunpack.c.l.b16 %v745
          %v785 = vunpack.c.l.b16 %v746
          %v786 = vunpack.c.l.b16 %v747
          %v787 = vunpack.c.l.b16 %v748
          %v788 = vunpack.c.l.b16 %v749
          %v789 = vunpack.c.l.b16 %v750
          %v790 = vunpack.c.l.b16 %v751
          %v791 = vunpack.c.l.b16 %v752
          %v792 = vunpack.c.l.b16 %v753
          %v793 = vunpack.c.l.b16 %v754
          %v794 = vunpack.c.l.b16 %v755
          %v795 = vunpack.c.l.b16 %v756
          %v796 = vunpack.c.l.b16 %v757
          %v797 = vunpack.c.l.b16 %v758
          %v798 = vpack.c.b16 %v783, %v782
          %v799 = vpack.c.b16 %v785, %v784
          %v800 = vpack.c.b16 %v787, %v786
          %v801 = vpack.c.b16 %v789, %v788
          %v802 = vpack.c.b16 %v791, %v790
          %v803 = vpack.c.b16 %v793, %v792
          %v804 = vpack.c.b16 %v795, %v794
          %v805 = vpack.c.b16 %v797, %v796
          %814 = vmatprep.subr.bf16.mxu0 0
          %815 = vmatpush1.bf16.msra.mxu0 %v805
          %816 = vmatprep.subr.bf16.mxu0 0
          %817 = vmatpush1.bf16.msra.mxu0 %v804
          %818 = vmatprep.subr.bf16.mxu0 0
          %819 = vmatpush1.bf16.msra.mxu0 %v803
          %820 = vmatprep.subr.bf16.mxu0 0
          %821 = vmatpush1.bf16.msra.mxu0 %v802
          %822 = vmatprep.subr.bf16.mxu0 0
          %823 = vmatpush1.bf16.msra.mxu0 %v801
          %824 = vmatprep.subr.bf16.mxu0 0
          %825 = vmatpush1.bf16.msra.mxu0 %v800
          %826 = vmatprep.subr.bf16.mxu0 0
          %827 = vmatpush1.bf16.msra.mxu0 %v799
          %828 = vmatprep.subr.bf16.mxu0 0
          %829 = vmatpush1.bf16.msra.mxu0 %v798
          %830 = vmatprep.subr.bf16.mxu0 0
          %831 = vmatpush2.bf16.msra.mxu0 0
          %832 = vmatprep.subr.bf16.mxu0 0
          %833 = vmatpush2.bf16.msra.mxu0 0
          %834 = vmatprep.subr.bf16.mxu0 0
          %835 = vmatpush2.bf16.msra.mxu0 0
          %836 = vmatprep.subr.bf16.mxu0 0
          %837 = vmatpush2.bf16.msra.mxu0 0
          %838 = vmatprep.subr.bf16.mxu0 0
          %839 = vmatpush2.bf16.msra.mxu0 0
          %840 = vmatprep.subr.bf16.mxu0 0
          %841 = vmatpush2.bf16.msra.mxu0 0
          %842 = vmatprep.subr.bf16.mxu0 0
          %843 = vmatpush2.bf16.msra.mxu0 0
          %844 = vmatprep.subr.bf16.mxu0 0
          %845 = vmatpush2.bf16.msra.mxu0 0
          %846 = vmatprep.mubr.bf16.mxu0 0
          %847 = vmatmul.mubr.bf16.gmra.mxu0 %v735
          %v848 = vpop.f32.mrf.mxu0
          %v849 = vadd.f32 %v764, %v848
          %v850 = vpop.f32.mrf.mxu0
          %v851 = vpop.f32.mrf.mxu0
          %v852 = vadd.f32 %v764, %v851
          %v853 = vpop.f32.mrf.mxu0
          %854 = vmatprep.mubr.bf16.mxu0 0
          %855 = vmatmul.mubr.bf16.gmra.mxu0 %v736
          %v856 = vpop.f32.mrf.mxu0
          %v857 = vadd.f32 %v764, %v856
          %v858 = vpop.f32.mrf.mxu0
          %v859 = vpop.f32.mrf.mxu0
          %v860 = vadd.f32 %v764, %v859
          %v861 = vpop.f32.mrf.mxu0
          %862 = vmatprep.mubr.bf16.mxu0 0
          %863 = vmatmul.mubr.bf16.gmra.mxu0 %v737
          %v864 = vpop.f32.mrf.mxu0
          %v865 = vadd.f32 %v764, %v864
          %v866 = vpop.f32.mrf.mxu0
          %v867 = vpop.f32.mrf.mxu0
          %v868 = vadd.f32 %v764, %v867
          %v869 = vpop.f32.mrf.mxu0
          %870 = vmatprep.mubr.bf16.mxu0 0
          %871 = vmatmul.mubr.bf16.gmra.mxu0 %v738
          %v872 = vpop.f32.mrf.mxu0
          %v873 = vadd.f32 %v764, %v872
          %v874 = vpop.f32.mrf.mxu0
          %v875 = vpop.f32.mrf.mxu0
          %v876 = vadd.f32 %v764, %v875
          %v877 = vpop.f32.mrf.mxu0
          %878 = vmatprep.mubr.bf16.mxu0 0
          %879 = vmatmul.mubr.bf16.gmra.mxu0 %v739
          %v880 = vpop.f32.mrf.mxu0
          %v881 = vadd.f32 %v764, %v880
          %v882 = vpop.f32.mrf.mxu0
          %v883 = vpop.f32.mrf.mxu0
          %v884 = vadd.f32 %v764, %v883
          %v885 = vpop.f32.mrf.mxu0
          %886 = vmatprep.mubr.bf16.mxu0 0
          %887 = vmatmul.mubr.bf16.gmra.mxu0 %v740
          %v888 = vpop.f32.mrf.mxu0
          %v889 = vadd.f32 %v764, %v888
          %v890 = vpop.f32.mrf.mxu0
          %v891 = vpop.f32.mrf.mxu0
          %v892 = vadd.f32 %v764, %v891
          %v893 = vpop.f32.mrf.mxu0
          %894 = vmatprep.mubr.bf16.mxu0 0
          %895 = vmatmul.mubr.bf16.gmra.mxu0 %v741
          %v896 = vpop.f32.mrf.mxu0
          %v897 = vadd.f32 %v764, %v896
          %v898 = vpop.f32.mrf.mxu0
          %v899 = vpop.f32.mrf.mxu0
          %v900 = vadd.f32 %v764, %v899
          %v901 = vpop.f32.mrf.mxu0
          %902 = vmatprep.mubr.bf16.mxu0 0
          %903 = vmatmul.mubr.bf16.gmra.mxu0 %v742
          %v904 = vpop.f32.mrf.mxu0
          %v905 = vadd.f32 %v764, %v904
          %v906 = vpop.f32.mrf.mxu0
          %v907 = vpop.f32.mrf.mxu0
          %v908 = vadd.f32 %v764, %v907
          %v909 = vpop.f32.mrf.mxu0
          %910 = vdwg.mxu0
          %v911 = vmax.f32 %v849, 0.0
          %v912 = vmax.f32 %v852, 0.0
          %v913 = vmax.f32 %v857, 0.0
          %v914 = vmax.f32 %v860, 0.0
          %v915 = vmax.f32 %v865, 0.0
          %v916 = vmax.f32 %v868, 0.0
          %v917 = vmax.f32 %v873, 0.0
          %v918 = vmax.f32 %v876, 0.0
          %v919 = vmax.f32 %v881, 0.0
          %v920 = vmax.f32 %v884, 0.0
          %v921 = vmax.f32 %v889, 0.0
          %v922 = vmax.f32 %v892, 0.0
          %v923 = vmax.f32 %v897, 0.0
          %v924 = vmax.f32 %v900, 0.0
          %v925 = vmax.f32 %v905, 0.0
          %v926 = vmax.f32 %v908, 0.0
          %927 = vst [vmem:[#allocation2] sm:$0xff] %v911
          %928 = vst [vmem:[#allocation2 + $0x8] sm:$0xff] %v912
          %929 = vst [vmem:[#allocation2 + $0x10] sm:$0xff] %v913
          %930 = vst [vmem:[#allocation2 + $0x18] sm:$0xff] %v914
          %931 = vst [vmem:[#allocation2 + $0x20] sm:$0xff] %v915
          %932 = vst [vmem:[#allocation2 + $0x28] sm:$0xff] %v916
          %933 = vst [vmem:[#allocation2 + $0x30] sm:$0xff] %v917
          %934 = vst [vmem:[#allocation2 + $0x38] sm:$0xff] %v918
          %935 = vst [vmem:[#allocation2 + $0x40] sm:$0xff] %v919
          %936 = vst [vmem:[#allocation2 + $0x48] sm:$0xff] %v920
          %937 = vst [vmem:[#allocation2 + $0x50] sm:$0xff] %v921
          %938 = vst [vmem:[#allocation2 + $0x58] sm:$0xff] %v922
          %939 = vst [vmem:[#allocation2 + $0x60] sm:$0xff] %v923
          %940 = vst [vmem:[#allocation2 + $0x68] sm:$0xff] %v924
          %941 = vst [vmem:[#allocation2 + $0x70] sm:$0xff] %v925
          %942 = vst [vmem:[#allocation2 + $0x78] sm:$0xff] %v926
          %943 = vst [vmem:[#allocation3] sm:$0xff] 0.0
          %944 = vst [vmem:[#allocation3 + $0x8] sm:$0xff] 0.0
          %945 = vst [vmem:[#allocation3 + $0x10] sm:$0xff] 0.0
          %946 = vst [vmem:[#allocation3 + $0x18] sm:$0xff] 0.0
          %947 = vst [vmem:[#allocation3 + $0x20] sm:$0xff] 0.0
          %948 = vst [vmem:[#allocation3 + $0x28] sm:$0xff] 0.0
          %949 = vst [vmem:[#allocation3 + $0x30] sm:$0xff] 0.0
          %950 = vst [vmem:[#allocation3 + $0x38] sm:$0xff] 0.0
          %951 = vst [vmem:[#allocation3 + $0x40] sm:$0xff] 0.0
          %952 = vst [vmem:[#allocation3 + $0x48] sm:$0xff] 0.0
          %953 = vst [vmem:[#allocation3 + $0x50] sm:$0xff] 0.0
          %954 = vst [vmem:[#allocation3 + $0x58] sm:$0xff] 0.0
          %955 = vst [vmem:[#allocation3 + $0x60] sm:$0xff] 0.0
          %956 = vst [vmem:[#allocation3 + $0x68] sm:$0xff] 0.0
          %957 = vst [vmem:[#allocation3 + $0x70] sm:$0xff] 0.0
          %958 = vst [vmem:[#allocation3 + $0x78] sm:$0xff] 0.0
        $region134: #{tpu_custom_call.1} parent=101 // pred_fallthru
          _
        %v959 = vld [vmem:[#allocation2] sm:$0xff]
        %v960 = vld [vmem:[#allocation2 + $0x8] sm:$0xff]
        %v961 = vld [vmem:[#allocation2 + $0x10] sm:$0xff]
        %v962 = vld [vmem:[#allocation2 + $0x18] sm:$0xff]
        %v963 = vld [vmem:[#allocation2 + $0x20] sm:$0xff]
        %v964 = vld [vmem:[#allocation2 + $0x28] sm:$0xff]
        %v965 = vld [vmem:[#allocation2 + $0x30] sm:$0xff]
        %v966 = vld [vmem:[#allocation2 + $0x38] sm:$0xff]
        %v967 = vld [vmem:[#allocation2 + $0x40] sm:$0xff]
        %v968 = vld [vmem:[#allocation2 + $0x48] sm:$0xff]
        %v969 = vld [vmem:[#allocation2 + $0x50] sm:$0xff]
        %v970 = vld [vmem:[#allocation2 + $0x58] sm:$0xff]
        %v971 = vld [vmem:[#allocation2 + $0x60] sm:$0xff]
        %v972 = vld [vmem:[#allocation2 + $0x68] sm:$0xff]
        %v973 = vld [vmem:[#allocation2 + $0x70] sm:$0xff]
        %v974 = vld [vmem:[#allocation2 + $0x78] sm:$0xff]
        %v975 = vld [vmem:[%s590] sm:$0x1]
        %v977 = vlaneseq
        %v978 = vshrl.u32 %v977, 7
        %v979 = vsub.s32 0, %v978
        %v980 = vrot.slane %v975, %v979
        %v982 = vadd.f32 %v959, %v980
        %v983 = vadd.f32 %v960, %v980
        %v984 = vadd.f32 %v961, %v980
        %v985 = vadd.f32 %v962, %v980
        %v986 = vadd.f32 %v963, %v980
        %v987 = vadd.f32 %v964, %v980
        %v988 = vadd.f32 %v965, %v980
        %v989 = vadd.f32 %v966, %v980
        %s990 = scalar_lea.vmem %s590, 1 [#allocation4]
        %v991 = vld [vmem:[%s990] sm:$0x1]
        %v993 = vlaneseq
        %v994 = vshrl.u32 %v993, 7
        %v995 = vsub.s32 0, %v994
        %v996 = vrot.slane %v991, %v995
        %v998 = vadd.f32 %v967, %v996
        %v999 = vadd.f32 %v968, %v996
        %v1000 = vadd.f32 %v969, %v996
        %v1001 = vadd.f32 %v970, %v996
        %v1002 = vadd.f32 %v971, %v996
        %v1003 = vadd.f32 %v972, %v996
        %v1004 = vadd.f32 %v973, %v996
        %v1005 = vadd.f32 %v974, %v996
        %v1006 = vlaneseq
        %v1007 = vshrl.u32 %v1006, 7
        %v1008 = vadd.s32 %v1007, 8
        %v1009 = vadd.s32 %v1007, 16
        %v1010 = vadd.s32 %v1007, 24
        %v1011 = vadd.s32 %v1007, 32
        %v1012 = vadd.s32 %v1007, 40
        %v1013 = vadd.s32 %v1007, 48
        %v1014 = vadd.s32 %v1007, 56
        %v1015 = vadd.s32 %v1007, 64
        %v1016 = vadd.s32 %v1007, 72
        %v1017 = vadd.s32 %v1007, 80
        %v1018 = vadd.s32 %v1007, 88
        %v1019 = vadd.s32 %v1007, 96
        %v1020 = vadd.s32 %v1007, 104
        %v1021 = vadd.s32 %v1007, 112
        %v1022 = vadd.s32 %v1007, 120
        %vm1023 = vcmp.eq.s32.totalorder %v1007, 0
        %vm1024 = vcmp.eq.s32.totalorder %v1008, 0
        %vm1025 = vcmp.eq.s32.totalorder %v1009, 0
        %vm1026 = vcmp.eq.s32.totalorder %v1010, 0
        %vm1027 = vcmp.eq.s32.totalorder %v1011, 0
        %vm1028 = vcmp.eq.s32.totalorder %v1012, 0
        %vm1029 = vcmp.eq.s32.totalorder %v1013, 0
        %vm1030 = vcmp.eq.s32.totalorder %v1014, 0
        %vm1031 = vcmp.eq.s32.totalorder %v1015, 0
        %vm1032 = vcmp.eq.s32.totalorder %v1016, 0
        %vm1033 = vcmp.eq.s32.totalorder %v1017, 0
        %vm1034 = vcmp.eq.s32.totalorder %v1018, 0
        %vm1035 = vcmp.eq.s32.totalorder %v1019, 0
        %vm1036 = vcmp.eq.s32.totalorder %v1020, 0
        %vm1037 = vcmp.eq.s32.totalorder %v1021, 0
        %vm1038 = vcmp.eq.s32.totalorder %v1022, 0
        %vm1039 = vcmp.eq.s32.totalorder %v1007, 63
        %vm1040 = vcmp.eq.s32.totalorder %v1008, 63
        %vm1041 = vcmp.eq.s32.totalorder %v1009, 63
        %vm1042 = vcmp.eq.s32.totalorder %v1010, 63
        %vm1043 = vcmp.eq.s32.totalorder %v1011, 63
        %vm1044 = vcmp.eq.s32.totalorder %v1012, 63
        %vm1045 = vcmp.eq.s32.totalorder %v1013, 63
        %vm1046 = vcmp.eq.s32.totalorder %v1014, 63
        %vm1047 = vcmp.eq.s32.totalorder %v1015, 63
        %vm1048 = vcmp.eq.s32.totalorder %v1016, 63
        %vm1049 = vcmp.eq.s32.totalorder %v1017, 63
        %vm1050 = vcmp.eq.s32.totalorder %v1018, 63
        %vm1051 = vcmp.eq.s32.totalorder %v1019, 63
        %vm1052 = vcmp.eq.s32.totalorder %v1020, 63
        %vm1053 = vcmp.eq.s32.totalorder %v1021, 63
        %vm1054 = vcmp.eq.s32.totalorder %v1022, 63
        %vm1055 = vcmp.eq.s32.totalorder %v1007, 64
        %vm1056 = vcmp.eq.s32.totalorder %v1008, 64
        %vm1057 = vcmp.eq.s32.totalorder %v1009, 64
        %vm1058 = vcmp.eq.s32.totalorder %v1010, 64
        %vm1059 = vcmp.eq.s32.totalorder %v1011, 64
        %vm1060 = vcmp.eq.s32.totalorder %v1012, 64
        %vm1061 = vcmp.eq.s32.totalorder %v1013, 64
        %vm1062 = vcmp.eq.s32.totalorder %v1014, 64
        %vm1063 = vcmp.eq.s32.totalorder %v1015, 64
        %vm1064 = vcmp.eq.s32.totalorder %v1016, 64
        %vm1065 = vcmp.eq.s32.totalorder %v1017, 64
        %vm1066 = vcmp.eq.s32.totalorder %v1018, 64
        %vm1067 = vcmp.eq.s32.totalorder %v1019, 64
        %vm1068 = vcmp.eq.s32.totalorder %v1020, 64
        %vm1069 = vcmp.eq.s32.totalorder %v1021, 64
        %vm1070 = vcmp.eq.s32.totalorder %v1022, 64
        %vm1071 = vmor %vm1023, %vm1055
        %vm1072 = vmor %vm1024, %vm1056
        %vm1073 = vmor %vm1025, %vm1057
        %vm1074 = vmor %vm1026, %vm1058
        %vm1075 = vmor %vm1027, %vm1059
        %vm1076 = vmor %vm1028, %vm1060
        %vm1077 = vmor %vm1029, %vm1061
        %vm1078 = vmor %vm1030, %vm1062
        %vm1079 = vmor %vm1031, %vm1063
        %vm1080 = vmor %vm1032, %vm1064
        %vm1081 = vmor %vm1033, %vm1065
        %vm1082 = vmor %vm1034, %vm1066
        %vm1083 = vmor %vm1035, %vm1067
        %vm1084 = vmor %vm1036, %vm1068
        %vm1085 = vmor %vm1037, %vm1069
        %vm1086 = vmor %vm1038, %vm1070
        %vm1087 = vcmp.eq.s32.totalorder %v1007, 127
        %vm1088 = vcmp.eq.s32.totalorder %v1008, 127
        %vm1089 = vcmp.eq.s32.totalorder %v1009, 127
        %vm1090 = vcmp.eq.s32.totalorder %v1010, 127
        %vm1091 = vcmp.eq.s32.totalorder %v1011, 127
        %vm1092 = vcmp.eq.s32.totalorder %v1012, 127
        %vm1093 = vcmp.eq.s32.totalorder %v1013, 127
        %vm1094 = vcmp.eq.s32.totalorder %v1014, 127
        %vm1095 = vcmp.eq.s32.totalorder %v1015, 127
        %vm1096 = vcmp.eq.s32.totalorder %v1016, 127
        %vm1097 = vcmp.eq.s32.totalorder %v1017, 127
        %vm1098 = vcmp.eq.s32.totalorder %v1018, 127
        %vm1099 = vcmp.eq.s32.totalorder %v1019, 127
        %vm1100 = vcmp.eq.s32.totalorder %v1020, 127
        %vm1101 = vcmp.eq.s32.totalorder %v1021, 127
        %vm1102 = vcmp.eq.s32.totalorder %v1022, 127
        %vm1103 = vmor %vm1039, %vm1087
        %vm1104 = vmor %vm1040, %vm1088
        %vm1105 = vmor %vm1041, %vm1089
        %vm1106 = vmor %vm1042, %vm1090
        %vm1107 = vmor %vm1043, %vm1091
        %vm1108 = vmor %vm1044, %vm1092
        %vm1109 = vmor %vm1045, %vm1093
        %vm1110 = vmor %vm1046, %vm1094
        %vm1111 = vmor %vm1047, %vm1095
        %vm1112 = vmor %vm1048, %vm1096
        %vm1113 = vmor %vm1049, %vm1097
        %vm1114 = vmor %vm1050, %vm1098
        %vm1115 = vmor %vm1051, %vm1099
        %vm1116 = vmor %vm1052, %vm1100
        %vm1117 = vmor %vm1053, %vm1101
        %vm1118 = vmor %vm1054, %vm1102
        %v1119 = vrot.slane %v982, 7
        %v1120 = vrot.slane %v983, 7
        %v1121 = vrot.slane %v984, 7
        %v1122 = vrot.slane %v985, 7
        %v1123 = vrot.slane %v986, 7
        %v1124 = vrot.slane %v987, 7
        %v1125 = vrot.slane %v988, 7
        %v1126 = vrot.slane %v989, 7
        %v1127 = vrot.slane %v998, 7
        %v1128 = vrot.slane %v999, 7
        %v1129 = vrot.slane %v1000, 7
        %v1130 = vrot.slane %v1001, 7
        %v1131 = vrot.slane %v1002, 7
        %v1132 = vrot.slane %v1003, 7
        %v1133 = vrot.slane %v1004, 7
        %v1134 = vrot.slane %v1005, 7
        %vm1135 = vcmp.lt.s32.totalorder %v1007, 1
        %v1136 = vsel %vm1135, %v1133, %v1134
        %v1137 = vsel %vm1135, %v1132, %v1133
        %v1138 = vsel %vm1135, %v1131, %v1132
        %v1139 = vsel %vm1135, %v1130, %v1131
        %v1140 = vsel %vm1135, %v1129, %v1130
        %v1141 = vsel %vm1135, %v1128, %v1129
        %v1142 = vsel %vm1135, %v1127, %v1128
        %v1143 = vsel %vm1135, %v1126, %v1127
        %v1144 = vsel %vm1135, %v1125, %v1126
        %v1145 = vsel %vm1135, %v1124, %v1125
        %v1146 = vsel %vm1135, %v1123, %v1124
        %v1147 = vsel %vm1135, %v1122, %v1123
        %v1148 = vsel %vm1135, %v1121, %v1122
        %v1149 = vsel %vm1135, %v1120, %v1121
        %v1150 = vsel %vm1135, %v1119, %v1120
        %v1151 = vsel %vm1135, %v1134, %v1119
        %v1152 = vsel %vm1071, 0.0, 1.0
        %v1153 = vsel %vm1072, 0.0, 1.0
        %v1154 = vsel %vm1073, 0.0, 1.0
        %v1155 = vsel %vm1074, 0.0, 1.0
        %v1156 = vsel %vm1075, 0.0, 1.0
        %v1157 = vsel %vm1076, 0.0, 1.0
        %v1158 = vsel %vm1077, 0.0, 1.0
        %v1159 = vsel %vm1078, 0.0, 1.0
        %v1160 = vsel %vm1079, 0.0, 1.0
        %v1161 = vsel %vm1080, 0.0, 1.0
        %v1162 = vsel %vm1081, 0.0, 1.0
        %v1163 = vsel %vm1082, 0.0, 1.0
        %v1164 = vsel %vm1083, 0.0, 1.0
        %v1165 = vsel %vm1084, 0.0, 1.0
        %v1166 = vsel %vm1085, 0.0, 1.0
        %v1167 = vsel %vm1086, 0.0, 1.0
        %v1168 = vmul.f32 %v1151, %v1152
        %v1169 = vmul.f32 %v1150, %v1153
        %v1170 = vmul.f32 %v1149, %v1154
        %v1171 = vmul.f32 %v1148, %v1155
        %v1172 = vmul.f32 %v1147, %v1156
        %v1173 = vmul.f32 %v1146, %v1157
        %v1174 = vmul.f32 %v1145, %v1158
        %v1175 = vmul.f32 %v1144, %v1159
        %v1176 = vmul.f32 %v1143, %v1160
        %v1177 = vmul.f32 %v1142, %v1161
        %v1178 = vmul.f32 %v1141, %v1162
        %v1179 = vmul.f32 %v1140, %v1163
        %v1180 = vmul.f32 %v1139, %v1164
        %v1181 = vmul.f32 %v1138, %v1165
        %v1182 = vmul.f32 %v1137, %v1166
        %v1183 = vmul.f32 %v1136, %v1167
        %v1184 = vrot.slane %v982, 1
        %v1185 = vrot.slane %v983, 1
        %v1186 = vrot.slane %v984, 1
        %v1187 = vrot.slane %v985, 1
        %v1188 = vrot.slane %v986, 1
        %v1189 = vrot.slane %v987, 1
        %v1190 = vrot.slane %v988, 1
        %v1191 = vrot.slane %v989, 1
        %v1192 = vrot.slane %v998, 1
        %v1193 = vrot.slane %v999, 1
        %v1194 = vrot.slane %v1000, 1
        %v1195 = vrot.slane %v1001, 1
        %v1196 = vrot.slane %v1002, 1
        %v1197 = vrot.slane %v1003, 1
        %v1198 = vrot.slane %v1004, 1
        %v1199 = vrot.slane %v1005, 1
        %vm1200 = vcmp.lt.s32.totalorder %v1007, 7
        %v1201 = vsel %vm1200, %v1198, %v1199
        %v1202 = vsel %vm1200, %v1197, %v1198
        %v1203 = vsel %vm1200, %v1196, %v1197
        %v1204 = vsel %vm1200, %v1195, %v1196
        %v1205 = vsel %vm1200, %v1194, %v1195
        %v1206 = vsel %vm1200, %v1193, %v1194
        %v1207 = vsel %vm1200, %v1192, %v1193
        %v1208 = vsel %vm1200, %v1191, %v1192
        %v1209 = vsel %vm1200, %v1190, %v1191
        %v1210 = vsel %vm1200, %v1189, %v1190
        %v1211 = vsel %vm1200, %v1188, %v1189
        %v1212 = vsel %vm1200, %v1187, %v1188
        %v1213 = vsel %vm1200, %v1186, %v1187
        %v1214 = vsel %vm1200, %v1185, %v1186
        %v1215 = vsel %vm1200, %v1184, %v1185
        %v1216 = vsel %vm1200, %v1199, %v1184
        %v1217 = vsel %vm1103, 0.0, 1.0
        %v1218 = vsel %vm1104, 0.0, 1.0
        %v1219 = vsel %vm1105, 0.0, 1.0
        %v1220 = vsel %vm1106, 0.0, 1.0
        %v1221 = vsel %vm1107, 0.0, 1.0
        %v1222 = vsel %vm1108, 0.0, 1.0
        %v1223 = vsel %vm1109, 0.0, 1.0
        %v1224 = vsel %vm1110, 0.0, 1.0
        %v1225 = vsel %vm1111, 0.0, 1.0
        %v1226 = vsel %vm1112, 0.0, 1.0
        %v1227 = vsel %vm1113, 0.0, 1.0
        %v1228 = vsel %vm1114, 0.0, 1.0
        %v1229 = vsel %vm1115, 0.0, 1.0
        %v1230 = vsel %vm1116, 0.0, 1.0
        %v1231 = vsel %vm1117, 0.0, 1.0
        %v1232 = vsel %vm1118, 0.0, 1.0
        %v1233 = vmul.f32 %v1215, %v1217
        %v1234 = vmul.f32 %v1214, %v1218
        %v1235 = vmul.f32 %v1213, %v1219
        %v1236 = vmul.f32 %v1212, %v1220
        %v1237 = vmul.f32 %v1211, %v1221
        %v1238 = vmul.f32 %v1210, %v1222
        %v1239 = vmul.f32 %v1209, %v1223
        %v1240 = vmul.f32 %v1208, %v1224
        %v1241 = vmul.f32 %v1207, %v1225
        %v1242 = vmul.f32 %v1206, %v1226
        %v1243 = vmul.f32 %v1205, %v1227
        %v1244 = vmul.f32 %v1204, %v1228
        %v1245 = vmul.f32 %v1203, %v1229
        %v1246 = vmul.f32 %v1202, %v1230
        %v1247 = vmul.f32 %v1201, %v1231
        %v1248 = vmul.f32 %v1216, %v1232
        %v1249 = vld [vmem:[%s712] sm:$0xf]
        %v1250 = vpack.c.bf16 %v1169, %v1168
        %v1251 = vpack.c.bf16 %v1171, %v1170
        %v1252 = vpack.c.bf16 %v1173, %v1172
        %v1253 = vpack.c.bf16 %v1175, %v1174
        %v1254 = vpack.c.bf16 %v1177, %v1176
        %v1255 = vpack.c.bf16 %v1179, %v1178
        %v1256 = vpack.c.bf16 %v1181, %v1180
        %v1257 = vpack.c.bf16 %v1183, %v1182
        %v1258 = vld [vmem:[%s598] sm:$0xff]
        %v1259 = vld [vmem:[%s598 + $0x8] sm:$0xff]
        %v1260 = vld [vmem:[%s598 + $0x10] sm:$0xff]
        %v1261 = vld [vmem:[%s598 + $0x18] sm:$0xff]
        %v1262 = vld [vmem:[%s598 + $0x20] sm:$0xff]
        %v1263 = vld [vmem:[%s598 + $0x28] sm:$0xff]
        %v1264 = vld [vmem:[%s598 + $0x30] sm:$0xff]
        %v1265 = vld [vmem:[%s598 + $0x38] sm:$0xff]
        %v1266 = vld [vmem:[%s598 + $0x40] sm:$0xff]
        %v1267 = vld [vmem:[%s598 + $0x48] sm:$0xff]
        %v1268 = vld [vmem:[%s598 + $0x50] sm:$0xff]
        %v1269 = vld [vmem:[%s598 + $0x58] sm:$0xff]
        %v1270 = vld [vmem:[%s598 + $0x60] sm:$0xff]
        %v1271 = vld [vmem:[%s598 + $0x68] sm:$0xff]
        %v1272 = vld [vmem:[%s598 + $0x70] sm:$0xff]
        %v1273 = vld [vmem:[%s598 + $0x78] sm:$0xff]
        %v1274 = vpack.c.bf16 %v983, %v982
        %v1275 = vpack.c.bf16 %v985, %v984
        %v1276 = vpack.c.bf16 %v987, %v986
        %v1277 = vpack.c.bf16 %v989, %v988
        %v1278 = vpack.c.bf16 %v999, %v998
        %v1279 = vpack.c.bf16 %v1001, %v1000
        %v1280 = vpack.c.bf16 %v1003, %v1002
        %v1281 = vpack.c.bf16 %v1005, %v1004
        %s1282 = scalar_lea.vmem %s598, 128 [#allocation5]
        %v1283 = vld [vmem:[%s1282] sm:$0xff]
        %v1284 = vld [vmem:[%s1282 + $0x8] sm:$0xff]
        %v1285 = vld [vmem:[%s1282 + $0x10] sm:$0xff]
        %v1286 = vld [vmem:[%s1282 + $0x18] sm:$0xff]
        %v1287 = vld [vmem:[%s1282 + $0x20] sm:$0xff]
        %v1288 = vld [vmem:[%s1282 + $0x28] sm:$0xff]
        %v1289 = vld [vmem:[%s1282 + $0x30] sm:$0xff]
        %v1290 = vld [vmem:[%s1282 + $0x38] sm:$0xff]
        %v1291 = vld [vmem:[%s1282 + $0x40] sm:$0xff]
        %v1292 = vld [vmem:[%s1282 + $0x48] sm:$0xff]
        %v1293 = vld [vmem:[%s1282 + $0x50] sm:$0xff]
        %v1294 = vld [vmem:[%s1282 + $0x58] sm:$0xff]
        %v1295 = vld [vmem:[%s1282 + $0x60] sm:$0xff]
        %v1296 = vld [vmem:[%s1282 + $0x68] sm:$0xff]
        %v1297 = vld [vmem:[%s1282 + $0x70] sm:$0xff]
        %v1298 = vld [vmem:[%s1282 + $0x78] sm:$0xff]
        %v1315 = vunpack.c.l.b16 %v1283
        %v1316 = vunpack.c.h.b16 %v1283
        %v1317 = vunpack.c.l.b16 %v1284
        %v1318 = vunpack.c.h.b16 %v1284
        %v1319 = vunpack.c.l.b16 %v1285
        %v1320 = vunpack.c.h.b16 %v1285
        %v1321 = vunpack.c.l.b16 %v1286
        %v1322 = vunpack.c.h.b16 %v1286
        %v1323 = vunpack.c.l.b16 %v1287
        %v1324 = vunpack.c.h.b16 %v1287
        %v1325 = vunpack.c.l.b16 %v1288
        %v1326 = vunpack.c.h.b16 %v1288
        %v1327 = vunpack.c.l.b16 %v1289
        %v1328 = vunpack.c.h.b16 %v1289
        %v1329 = vunpack.c.l.b16 %v1290
        %v1330 = vunpack.c.h.b16 %v1290
        %v1331 = vunpack.c.l.b16 %v1291
        %v1332 = vunpack.c.h.b16 %v1291
        %v1333 = vunpack.c.l.b16 %v1292
        %v1334 = vunpack.c.h.b16 %v1292
        %v1335 = vunpack.c.l.b16 %v1293
        %v1336 = vunpack.c.h.b16 %v1293
        %v1337 = vunpack.c.l.b16 %v1294
        %v1338 = vunpack.c.h.b16 %v1294
        %v1339 = vunpack.c.l.b16 %v1295
        %v1340 = vunpack.c.h.b16 %v1295
        %v1341 = vunpack.c.l.b16 %v1296
        %v1342 = vunpack.c.h.b16 %v1296
        %v1343 = vunpack.c.l.b16 %v1297
        %v1344 = vunpack.c.h.b16 %v1297
        %v1345 = vunpack.c.l.b16 %v1298
        %v1346 = vunpack.c.h.b16 %v1298
        %v1347 = vpack.c.b16 %v1317, %v1315
        %v1348 = vpack.c.b16 %v1318, %v1316
        %v1349 = vpack.c.b16 %v1321, %v1319
        %v1350 = vpack.c.b16 %v1322, %v1320
        %v1351 = vpack.c.b16 %v1325, %v1323
        %v1352 = vpack.c.b16 %v1326, %v1324
        %v1353 = vpack.c.b16 %v1329, %v1327
        %v1354 = vpack.c.b16 %v1330, %v1328
        %v1355 = vpack.c.b16 %v1333, %v1331
        %v1356 = vpack.c.b16 %v1334, %v1332
        %v1357 = vpack.c.b16 %v1337, %v1335
        %v1358 = vpack.c.b16 %v1338, %v1336
        %v1359 = vpack.c.b16 %v1341, %v1339
        %v1360 = vpack.c.b16 %v1342, %v1340
        %v1361 = vpack.c.b16 %v1345, %v1343
        %v1362 = vpack.c.b16 %v1346, %v1344
        %1379 = vmatprep.subr.bf16.mxu0 %v1362
        %1380 = vmatpush1.bf16.msra.mxu0 %v1361
        %1381 = vmatprep.subr.bf16.mxu0 %v1360
        %1382 = vmatpush1.bf16.msra.mxu0 %v1359
        %1383 = vmatprep.subr.bf16.mxu0 %v1358
        %1384 = vmatpush1.bf16.msra.mxu0 %v1357
        %1385 = vmatprep.subr.bf16.mxu0 %v1356
        %1386 = vmatpush1.bf16.msra.mxu0 %v1355
        %1387 = vmatprep.subr.bf16.mxu0 %v1354
        %1388 = vmatpush1.bf16.msra.mxu0 %v1353
        %1389 = vmatprep.subr.bf16.mxu0 %v1352
        %1390 = vmatpush1.bf16.msra.mxu0 %v1351
        %1391 = vmatprep.subr.bf16.mxu0 %v1350
        %1392 = vmatpush1.bf16.msra.mxu0 %v1349
        %1393 = vmatprep.subr.bf16.mxu0 %v1348
        %1394 = vmatpush1.bf16.msra.mxu0 %v1347
        %1395 = vmatprep.subr.bf16.mxu0 0
        %1396 = vmatpush2.bf16.msra.mxu0 0
        %1397 = vmatprep.subr.bf16.mxu0 0
        %1398 = vmatpush2.bf16.msra.mxu0 0
        %1399 = vmatprep.subr.bf16.mxu0 0
        %1400 = vmatpush2.bf16.msra.mxu0 0
        %1401 = vmatprep.subr.bf16.mxu0 0
        %1402 = vmatpush2.bf16.msra.mxu0 0
        %1403 = vmatprep.subr.bf16.mxu0 0
        %1404 = vmatpush2.bf16.msra.mxu0 0
        %1405 = vmatprep.subr.bf16.mxu0 0
        %1406 = vmatpush2.bf16.msra.mxu0 0
        %1407 = vmatprep.subr.bf16.mxu0 0
        %1408 = vmatpush2.bf16.msra.mxu0 0
        %1409 = vmatprep.subr.bf16.mxu0 0
        %1410 = vmatpush2.bf16.msra.mxu0 0
        %1411 = vmatprep.mubr.bf16.mxu0 0
        %1412 = vmatmul.mubr.bf16.gmra.mxu0 %v1274
        %v1413 = vpop.f32.mrf.mxu0
        %v1414 = vadd.f32 0.0, %v1413
        %v1415 = vpop.f32.mrf.mxu0
        %v1416 = vadd.f32 0.0, %v1415
        %v1417 = vpop.f32.mrf.mxu0
        %v1418 = vadd.f32 0.0, %v1417
        %v1419 = vpop.f32.mrf.mxu0
        %v1420 = vadd.f32 0.0, %v1419
        %1421 = vmatprep.mubr.bf16.mxu0 0
        %1422 = vmatmul.mubr.bf16.gmra.mxu0 %v1275
        %v1423 = vpop.f32.mrf.mxu0
        %v1424 = vadd.f32 0.0, %v1423
        %v1425 = vpop.f32.mrf.mxu0
        %v1426 = vadd.f32 0.0, %v1425
        %v1427 = vpop.f32.mrf.mxu0
        %v1428 = vadd.f32 0.0, %v1427
        %v1429 = vpop.f32.mrf.mxu0
        %v1430 = vadd.f32 0.0, %v1429
        %1431 = vmatprep.mubr.bf16.mxu0 0
        %1432 = vmatmul.mubr.bf16.gmra.mxu0 %v1276
        %v1433 = vpop.f32.mrf.mxu0
        %v1434 = vadd.f32 0.0, %v1433
        %v1435 = vpop.f32.mrf.mxu0
        %v1436 = vadd.f32 0.0, %v1435
        %v1437 = vpop.f32.mrf.mxu0
        %v1438 = vadd.f32 0.0, %v1437
        %v1439 = vpop.f32.mrf.mxu0
        %v1440 = vadd.f32 0.0, %v1439
        %1441 = vmatprep.mubr.bf16.mxu0 0
        %1442 = vmatmul.mubr.bf16.gmra.mxu0 %v1277
        %v1443 = vpop.f32.mrf.mxu0
        %v1444 = vadd.f32 0.0, %v1443
        %v1445 = vpop.f32.mrf.mxu0
        %v1446 = vadd.f32 0.0, %v1445
        %v1447 = vpop.f32.mrf.mxu0
        %v1448 = vadd.f32 0.0, %v1447
        %v1449 = vpop.f32.mrf.mxu0
        %v1450 = vadd.f32 0.0, %v1449
        %1451 = vmatprep.mubr.bf16.mxu0 0
        %1452 = vmatmul.mubr.bf16.gmra.mxu0 %v1278
        %v1453 = vpop.f32.mrf.mxu0
        %v1454 = vadd.f32 0.0, %v1453
        %v1455 = vpop.f32.mrf.mxu0
        %v1456 = vadd.f32 0.0, %v1455
        %v1457 = vpop.f32.mrf.mxu0
        %v1458 = vadd.f32 0.0, %v1457
        %v1459 = vpop.f32.mrf.mxu0
        %v1460 = vadd.f32 0.0, %v1459
        %1461 = vmatprep.mubr.bf16.mxu0 0
        %1462 = vmatmul.mubr.bf16.gmra.mxu0 %v1279
        %v1463 = vpop.f32.mrf.mxu0
        %v1464 = vadd.f32 0.0, %v1463
        %v1465 = vpop.f32.mrf.mxu0
        %v1466 = vadd.f32 0.0, %v1465
        %v1467 = vpop.f32.mrf.mxu0
        %v1468 = vadd.f32 0.0, %v1467
        %v1469 = vpop.f32.mrf.mxu0
        %v1470 = vadd.f32 0.0, %v1469
        %1471 = vmatprep.mubr.bf16.mxu0 0
        %1472 = vmatmul.mubr.bf16.gmra.mxu0 %v1280
        %v1473 = vpop.f32.mrf.mxu0
        %v1474 = vadd.f32 0.0, %v1473
        %v1475 = vpop.f32.mrf.mxu0
        %v1476 = vadd.f32 0.0, %v1475
        %v1477 = vpop.f32.mrf.mxu0
        %v1478 = vadd.f32 0.0, %v1477
        %v1479 = vpop.f32.mrf.mxu0
        %v1480 = vadd.f32 0.0, %v1479
        %1481 = vmatprep.mubr.bf16.mxu0 0
        %1482 = vmatmul.mubr.bf16.gmra.mxu0 %v1281
        %v1483 = vpop.f32.mrf.mxu0
        %v1484 = vadd.f32 0.0, %v1483
        %v1485 = vpop.f32.mrf.mxu0
        %v1486 = vadd.f32 0.0, %v1485
        %v1487 = vpop.f32.mrf.mxu0
        %v1488 = vadd.f32 0.0, %v1487
        %v1489 = vpop.f32.mrf.mxu0
        %v1490 = vadd.f32 0.0, %v1489
        %1491 = vdwg.mxu0
        %v1508 = vunpack.c.l.b16 %v1258
        %v1509 = vunpack.c.h.b16 %v1258
        %v1510 = vunpack.c.l.b16 %v1259
        %v1511 = vunpack.c.h.b16 %v1259
        %v1512 = vunpack.c.l.b16 %v1260
        %v1513 = vunpack.c.h.b16 %v1260
        %v1514 = vunpack.c.l.b16 %v1261
        %v1515 = vunpack.c.h.b16 %v1261
        %v1516 = vunpack.c.l.b16 %v1262
        %v1517 = vunpack.c.h.b16 %v1262
        %v1518 = vunpack.c.l.b16 %v1263
        %v1519 = vunpack.c.h.b16 %v1263
        %v1520 = vunpack.c.l.b16 %v1264
        %v1521 = vunpack.c.h.b16 %v1264
        %v1522 = vunpack.c.l.b16 %v1265
        %v1523 = vunpack.c.h.b16 %v1265
        %v1524 = vunpack.c.l.b16 %v1266
        %v1525 = vunpack.c.h.b16 %v1266
        %v1526 = vunpack.c.l.b16 %v1267
        %v1527 = vunpack.c.h.b16 %v1267
        %v1528 = vunpack.c.l.b16 %v1268
        %v1529 = vunpack.c.h.b16 %v1268
        %v1530 = vunpack.c.l.b16 %v1269
        %v1531 = vunpack.c.h.b16 %v1269
        %v1532 = vunpack.c.l.b16 %v1270
        %v1533 = vunpack.c.h.b16 %v1270
        %v1534 = vunpack.c.l.b16 %v1271
        %v1535 = vunpack.c.h.b16 %v1271
        %v1536 = vunpack.c.l.b16 %v1272
        %v1537 = vunpack.c.h.b16 %v1272
        %v1538 = vunpack.c.l.b16 %v1273
        %v1539 = vunpack.c.h.b16 %v1273
        %v1540 = vpack.c.b16 %v1510, %v1508
        %v1541 = vpack.c.b16 %v1511, %v1509
        %v1542 = vpack.c.b16 %v1514, %v1512
        %v1543 = vpack.c.b16 %v1515, %v1513
        %v1544 = vpack.c.b16 %v1518, %v1516
        %v1545 = vpack.c.b16 %v1519, %v1517
        %v1546 = vpack.c.b16 %v1522, %v1520
        %v1547 = vpack.c.b16 %v1523, %v1521
        %v1548 = vpack.c.b16 %v1526, %v1524
        %v1549 = vpack.c.b16 %v1527, %v1525
        %v1550 = vpack.c.b16 %v1530, %v1528
        %v1551 = vpack.c.b16 %v1531, %v1529
        %v1552 = vpack.c.b16 %v1534, %v1532
        %v1553 = vpack.c.b16 %v1535, %v1533
        %v1554 = vpack.c.b16 %v1538, %v1536
        %v1555 = vpack.c.b16 %v1539, %v1537
        %1572 = vmatprep.subr.bf16.mxu0 %v1555
        %1573 = vmatpush1.bf16.msra.mxu0 %v1554
        %1574 = vmatprep.subr.bf16.mxu0 %v1553
        %1575 = vmatpush1.bf16.msra.mxu0 %v1552
        %1576 = vmatprep.subr.bf16.mxu0 %v1551
        %1577 = vmatpush1.bf16.msra.mxu0 %v1550
        %1578 = vmatprep.subr.bf16.mxu0 %v1549
        %1579 = vmatpush1.bf16.msra.mxu0 %v1548
        %1580 = vmatprep.subr.bf16.mxu0 %v1547
        %1581 = vmatpush1.bf16.msra.mxu0 %v1546
        %1582 = vmatprep.subr.bf16.mxu0 %v1545
        %1583 = vmatpush1.bf16.msra.mxu0 %v1544
        %1584 = vmatprep.subr.bf16.mxu0 %v1543
        %1585 = vmatpush1.bf16.msra.mxu0 %v1542
        %1586 = vmatprep.subr.bf16.mxu0 %v1541
        %1587 = vmatpush1.bf16.msra.mxu0 %v1540
        %1588 = vmatprep.subr.bf16.mxu0 0
        %1589 = vmatpush2.bf16.msra.mxu0 0
        %1590 = vmatprep.subr.bf16.mxu0 0
        %1591 = vmatpush2.bf16.msra.mxu0 0
        %1592 = vmatprep.subr.bf16.mxu0 0
        %1593 = vmatpush2.bf16.msra.mxu0 0
        %1594 = vmatprep.subr.bf16.mxu0 0
        %1595 = vmatpush2.bf16.msra.mxu0 0
        %1596 = vmatprep.subr.bf16.mxu0 0
        %1597 = vmatpush2.bf16.msra.mxu0 0
        %1598 = vmatprep.subr.bf16.mxu0 0
        %1599 = vmatpush2.bf16.msra.mxu0 0
        %1600 = vmatprep.subr.bf16.mxu0 0
        %1601 = vmatpush2.bf16.msra.mxu0 0
        %1602 = vmatprep.subr.bf16.mxu0 0
        %1603 = vmatpush2.bf16.msra.mxu0 0
        %1604 = vmatprep.mubr.bf16.mxu0 0
        %1605 = vmatmul.mubr.bf16.gmra.mxu0 %v1250
        %v1606 = vpop.f32.mrf.mxu0
        %v1607 = vadd.f32 %v1414, %v1606
        %v1608 = vpop.f32.mrf.mxu0
        %v1609 = vadd.f32 %v1416, %v1608
        %v1610 = vpop.f32.mrf.mxu0
        %v1611 = vadd.f32 %v1418, %v1610
        %v1612 = vpop.f32.mrf.mxu0
        %v1613 = vadd.f32 %v1420, %v1612
        %1614 = vmatprep.mubr.bf16.mxu0 0
        %1615 = vmatmul.mubr.bf16.gmra.mxu0 %v1251
        %v1616 = vpop.f32.mrf.mxu0
        %v1617 = vadd.f32 %v1424, %v1616
        %v1618 = vpop.f32.mrf.mxu0
        %v1619 = vadd.f32 %v1426, %v1618
        %v1620 = vpop.f32.mrf.mxu0
        %v1621 = vadd.f32 %v1428, %v1620
        %v1622 = vpop.f32.mrf.mxu0
        %v1623 = vadd.f32 %v1430, %v1622
        %1624 = vmatprep.mubr.bf16.mxu0 0
        %1625 = vmatmul.mubr.bf16.gmra.mxu0 %v1252
        %v1626 = vpop.f32.mrf.mxu0
        %v1627 = vadd.f32 %v1434, %v1626
        %v1628 = vpop.f32.mrf.mxu0
        %v1629 = vadd.f32 %v1436, %v1628
        %v1630 = vpop.f32.mrf.mxu0
        %v1631 = vadd.f32 %v1438, %v1630
        %v1632 = vpop.f32.mrf.mxu0
        %v1633 = vadd.f32 %v1440, %v1632
        %1634 = vmatprep.mubr.bf16.mxu0 0
        %1635 = vmatmul.mubr.bf16.gmra.mxu0 %v1253
        %v1636 = vpop.f32.mrf.mxu0
        %v1637 = vadd.f32 %v1444, %v1636
        %v1638 = vpop.f32.mrf.mxu0
        %v1639 = vadd.f32 %v1446, %v1638
        %v1640 = vpop.f32.mrf.mxu0
        %v1641 = vadd.f32 %v1448, %v1640
        %v1642 = vpop.f32.mrf.mxu0
        %v1643 = vadd.f32 %v1450, %v1642
        %1644 = vmatprep.mubr.bf16.mxu0 0
        %1645 = vmatmul.mubr.bf16.gmra.mxu0 %v1254
        %v1646 = vpop.f32.mrf.mxu0
        %v1647 = vadd.f32 %v1454, %v1646
        %v1648 = vpop.f32.mrf.mxu0
        %v1649 = vadd.f32 %v1456, %v1648
        %v1650 = vpop.f32.mrf.mxu0
        %v1651 = vadd.f32 %v1458, %v1650
        %v1652 = vpop.f32.mrf.mxu0
        %v1653 = vadd.f32 %v1460, %v1652
        %1654 = vmatprep.mubr.bf16.mxu0 0
        %1655 = vmatmul.mubr.bf16.gmra.mxu0 %v1255
        %v1656 = vpop.f32.mrf.mxu0
        %v1657 = vadd.f32 %v1464, %v1656
        %v1658 = vpop.f32.mrf.mxu0
        %v1659 = vadd.f32 %v1466, %v1658
        %v1660 = vpop.f32.mrf.mxu0
        %v1661 = vadd.f32 %v1468, %v1660
        %v1662 = vpop.f32.mrf.mxu0
        %v1663 = vadd.f32 %v1470, %v1662
        %1664 = vmatprep.mubr.bf16.mxu0 0
        %1665 = vmatmul.mubr.bf16.gmra.mxu0 %v1256
        %v1666 = vpop.f32.mrf.mxu0
        %v1667 = vadd.f32 %v1474, %v1666
        %v1668 = vpop.f32.mrf.mxu0
        %v1669 = vadd.f32 %v1476, %v1668
        %v1670 = vpop.f32.mrf.mxu0
        %v1671 = vadd.f32 %v1478, %v1670
        %v1672 = vpop.f32.mrf.mxu0
        %v1673 = vadd.f32 %v1480, %v1672
        %1674 = vmatprep.mubr.bf16.mxu0 0
        %1675 = vmatmul.mubr.bf16.gmra.mxu0 %v1257
        %v1676 = vpop.f32.mrf.mxu0
        %v1677 = vadd.f32 %v1484, %v1676
        %v1678 = vpop.f32.mrf.mxu0
        %v1679 = vadd.f32 %v1486, %v1678
        %v1680 = vpop.f32.mrf.mxu0
        %v1681 = vadd.f32 %v1488, %v1680
        %v1682 = vpop.f32.mrf.mxu0
        %v1683 = vadd.f32 %v1490, %v1682
        %1684 = vdwg.mxu0
        %v1685 = vpack.c.bf16 %v1234, %v1233
        %v1686 = vpack.c.bf16 %v1236, %v1235
        %v1687 = vpack.c.bf16 %v1238, %v1237
        %v1688 = vpack.c.bf16 %v1240, %v1239
        %v1689 = vpack.c.bf16 %v1242, %v1241
        %v1690 = vpack.c.bf16 %v1244, %v1243
        %v1691 = vpack.c.bf16 %v1246, %v1245
        %v1692 = vpack.c.bf16 %v1248, %v1247
        %s1693 = scalar_lea.vmem %s598, 256 [#allocation5]
        %v1694 = vld [vmem:[%s1693] sm:$0xff]
        %v1695 = vld [vmem:[%s1693 + $0x8] sm:$0xff]
        %v1696 = vld [vmem:[%s1693 + $0x10] sm:$0xff]
        %v1697 = vld [vmem:[%s1693 + $0x18] sm:$0xff]
        %v1698 = vld [vmem:[%s1693 + $0x20] sm:$0xff]
        %v1699 = vld [vmem:[%s1693 + $0x28] sm:$0xff]
        %v1700 = vld [vmem:[%s1693 + $0x30] sm:$0xff]
        %v1701 = vld [vmem:[%s1693 + $0x38] sm:$0xff]
        %v1702 = vld [vmem:[%s1693 + $0x40] sm:$0xff]
        %v1703 = vld [vmem:[%s1693 + $0x48] sm:$0xff]
        %v1704 = vld [vmem:[%s1693 + $0x50] sm:$0xff]
        %v1705 = vld [vmem:[%s1693 + $0x58] sm:$0xff]
        %v1706 = vld [vmem:[%s1693 + $0x60] sm:$0xff]
        %v1707 = vld [vmem:[%s1693 + $0x68] sm:$0xff]
        %v1708 = vld [vmem:[%s1693 + $0x70] sm:$0xff]
        %v1709 = vld [vmem:[%s1693 + $0x78] sm:$0xff]
        %v1726 = vunpack.c.l.b16 %v1694
        %v1727 = vunpack.c.h.b16 %v1694
        %v1728 = vunpack.c.l.b16 %v1695
        %v1729 = vunpack.c.h.b16 %v1695
        %v1730 = vunpack.c.l.b16 %v1696
        %v1731 = vunpack.c.h.b16 %v1696
        %v1732 = vunpack.c.l.b16 %v1697
        %v1733 = vunpack.c.h.b16 %v1697
        %v1734 = vunpack.c.l.b16 %v1698
        %v1735 = vunpack.c.h.b16 %v1698
        %v1736 = vunpack.c.l.b16 %v1699
        %v1737 = vunpack.c.h.b16 %v1699
        %v1738 = vunpack.c.l.b16 %v1700
        %v1739 = vunpack.c.h.b16 %v1700
        %v1740 = vunpack.c.l.b16 %v1701
        %v1741 = vunpack.c.h.b16 %v1701
        %v1742 = vunpack.c.l.b16 %v1702
        %v1743 = vunpack.c.h.b16 %v1702
        %v1744 = vunpack.c.l.b16 %v1703
        %v1745 = vunpack.c.h.b16 %v1703
        %v1746 = vunpack.c.l.b16 %v1704
        %v1747 = vunpack.c.h.b16 %v1704
        %v1748 = vunpack.c.l.b16 %v1705
        %v1749 = vunpack.c.h.b16 %v1705
        %v1750 = vunpack.c.l.b16 %v1706
        %v1751 = vunpack.c.h.b16 %v1706
        %v1752 = vunpack.c.l.b16 %v1707
        %v1753 = vunpack.c.h.b16 %v1707
        %v1754 = vunpack.c.l.b16 %v1708
        %v1755 = vunpack.c.h.b16 %v1708
        %v1756 = vunpack.c.l.b16 %v1709
        %v1757 = vunpack.c.h.b16 %v1709
        %v1758 = vpack.c.b16 %v1728, %v1726
        %v1759 = vpack.c.b16 %v1729, %v1727
        %v1760 = vpack.c.b16 %v1732, %v1730
        %v1761 = vpack.c.b16 %v1733, %v1731
        %v1762 = vpack.c.b16 %v1736, %v1734
        %v1763 = vpack.c.b16 %v1737, %v1735
        %v1764 = vpack.c.b16 %v1740, %v1738
        %v1765 = vpack.c.b16 %v1741, %v1739
        %v1766 = vpack.c.b16 %v1744, %v1742
        %v1767 = vpack.c.b16 %v1745, %v1743
        %v1768 = vpack.c.b16 %v1748, %v1746
        %v1769 = vpack.c.b16 %v1749, %v1747
        %v1770 = vpack.c.b16 %v1752, %v1750
        %v1771 = vpack.c.b16 %v1753, %v1751
        %v1772 = vpack.c.b16 %v1756, %v1754
        %v1773 = vpack.c.b16 %v1757, %v1755
        %1790 = vmatprep.subr.bf16.mxu0 %v1773
        %1791 = vmatpush1.bf16.msra.mxu0 %v1772
        %1792 = vmatprep.subr.bf16.mxu0 %v1771
        %1793 = vmatpush1.bf16.msra.mxu0 %v1770
        %1794 = vmatprep.subr.bf16.mxu0 %v1769
        %1795 = vmatpush1.bf16.msra.mxu0 %v1768
        %1796 = vmatprep.subr.bf16.mxu0 %v1767
        %1797 = vmatpush1.bf16.msra.mxu0 %v1766
        %1798 = vmatprep.subr.bf16.mxu0 %v1765
        %1799 = vmatpush1.bf16.msra.mxu0 %v1764
        %1800 = vmatprep.subr.bf16.mxu0 %v1763
        %1801 = vmatpush1.bf16.msra.mxu0 %v1762
        %1802 = vmatprep.subr.bf16.mxu0 %v1761
        %1803 = vmatpush1.bf16.msra.mxu0 %v1760
        %1804 = vmatprep.subr.bf16.mxu0 %v1759
        %1805 = vmatpush1.bf16.msra.mxu0 %v1758
        %1806 = vmatprep.subr.bf16.mxu0 0
        %1807 = vmatpush2.bf16.msra.mxu0 0
        %1808 = vmatprep.subr.bf16.mxu0 0
        %1809 = vmatpush2.bf16.msra.mxu0 0
        %1810 = vmatprep.subr.bf16.mxu0 0
        %1811 = vmatpush2.bf16.msra.mxu0 0
        %1812 = vmatprep.subr.bf16.mxu0 0
        %1813 = vmatpush2.bf16.msra.mxu0 0
        %1814 = vmatprep.subr.bf16.mxu0 0
        %1815 = vmatpush2.bf16.msra.mxu0 0
        %1816 = vmatprep.subr.bf16.mxu0 0
        %1817 = vmatpush2.bf16.msra.mxu0 0
        %1818 = vmatprep.subr.bf16.mxu0 0
        %1819 = vmatpush2.bf16.msra.mxu0 0
        %1820 = vmatprep.subr.bf16.mxu0 0
        %1821 = vmatpush2.bf16.msra.mxu0 0
        %1822 = vmatprep.mubr.bf16.mxu0 0
        %1823 = vmatmul.mubr.bf16.gmra.mxu0 %v1685
        %v1824 = vpop.f32.mrf.mxu0
        %v1825 = vadd.f32 0.0, %v1824
        %v1826 = vpop.f32.mrf.mxu0
        %v1827 = vadd.f32 0.0, %v1826
        %v1828 = vpop.f32.mrf.mxu0
        %v1829 = vadd.f32 0.0, %v1828
        %v1830 = vpop.f32.mrf.mxu0
        %v1831 = vadd.f32 0.0, %v1830
        %1832 = vmatprep.mubr.bf16.mxu0 0
        %1833 = vmatmul.mubr.bf16.gmra.mxu0 %v1686
        %v1834 = vpop.f32.mrf.mxu0
        %v1835 = vadd.f32 0.0, %v1834
        %v1836 = vpop.f32.mrf.mxu0
        %v1837 = vadd.f32 0.0, %v1836
        %v1838 = vpop.f32.mrf.mxu0
        %v1839 = vadd.f32 0.0, %v1838
        %v1840 = vpop.f32.mrf.mxu0
        %v1841 = vadd.f32 0.0, %v1840
        %1842 = vmatprep.mubr.bf16.mxu0 0
        %1843 = vmatmul.mubr.bf16.gmra.mxu0 %v1687
        %v1844 = vpop.f32.mrf.mxu0
        %v1845 = vadd.f32 0.0, %v1844
        %v1846 = vpop.f32.mrf.mxu0
        %v1847 = vadd.f32 0.0, %v1846
        %v1848 = vpop.f32.mrf.mxu0
        %v1849 = vadd.f32 0.0, %v1848
        %v1850 = vpop.f32.mrf.mxu0
        %v1851 = vadd.f32 0.0, %v1850
        %1852 = vmatprep.mubr.bf16.mxu0 0
        %1853 = vmatmul.mubr.bf16.gmra.mxu0 %v1688
        %v1854 = vpop.f32.mrf.mxu0
        %v1855 = vadd.f32 0.0, %v1854
        %v1856 = vpop.f32.mrf.mxu0
        %v1857 = vadd.f32 0.0, %v1856
        %v1858 = vpop.f32.mrf.mxu0
        %v1859 = vadd.f32 0.0, %v1858
        %v1860 = vpop.f32.mrf.mxu0
        %v1861 = vadd.f32 0.0, %v1860
        %1862 = vmatprep.mubr.bf16.mxu0 0
        %1863 = vmatmul.mubr.bf16.gmra.mxu0 %v1689
        %v1864 = vpop.f32.mrf.mxu0
        %v1865 = vadd.f32 0.0, %v1864
        %v1866 = vpop.f32.mrf.mxu0
        %v1867 = vadd.f32 0.0, %v1866
        %v1868 = vpop.f32.mrf.mxu0
        %v1869 = vadd.f32 0.0, %v1868
        %v1870 = vpop.f32.mrf.mxu0
        %v1871 = vadd.f32 0.0, %v1870
        %1872 = vmatprep.mubr.bf16.mxu0 0
        %1873 = vmatmul.mubr.bf16.gmra.mxu0 %v1690
        %v1874 = vpop.f32.mrf.mxu0
        %v1875 = vadd.f32 0.0, %v1874
        %v1876 = vpop.f32.mrf.mxu0
        %v1877 = vadd.f32 0.0, %v1876
        %v1878 = vpop.f32.mrf.mxu0
        %v1879 = vadd.f32 0.0, %v1878
        %v1880 = vpop.f32.mrf.mxu0
        %v1881 = vadd.f32 0.0, %v1880
        %1882 = vmatprep.mubr.bf16.mxu0 0
        %1883 = vmatmul.mubr.bf16.gmra.mxu0 %v1691
        %v1884 = vpop.f32.mrf.mxu0
        %v1885 = vadd.f32 0.0, %v1884
        %v1886 = vpop.f32.mrf.mxu0
        %v1887 = vadd.f32 0.0, %v1886
        %v1888 = vpop.f32.mrf.mxu0
        %v1889 = vadd.f32 0.0, %v1888
        %v1890 = vpop.f32.mrf.mxu0
        %v1891 = vadd.f32 0.0, %v1890
        %1892 = vmatprep.mubr.bf16.mxu0 0
        %1893 = vmatmul.mubr.bf16.gmra.mxu0 %v1692
        %v1894 = vpop.f32.mrf.mxu0
        %v1895 = vadd.f32 0.0, %v1894
        %v1896 = vpop.f32.mrf.mxu0
        %v1897 = vadd.f32 0.0, %v1896
        %v1898 = vpop.f32.mrf.mxu0
        %v1899 = vadd.f32 0.0, %v1898
        %v1900 = vpop.f32.mrf.mxu0
        %v1901 = vadd.f32 0.0, %v1900
        %1902 = vdwg.mxu0
        %v1903 = vadd.f32 %v1607, %v1825
        %v1904 = vadd.f32 %v1609, %v1827
        %v1905 = vadd.f32 %v1611, %v1829
        %v1906 = vadd.f32 %v1613, %v1831
        %v1907 = vadd.f32 %v1617, %v1835
        %v1908 = vadd.f32 %v1619, %v1837
        %v1909 = vadd.f32 %v1621, %v1839
        %v1910 = vadd.f32 %v1623, %v1841
        %v1911 = vadd.f32 %v1627, %v1845
        %v1912 = vadd.f32 %v1629, %v1847
        %v1913 = vadd.f32 %v1631, %v1849
        %v1914 = vadd.f32 %v1633, %v1851
        %v1915 = vadd.f32 %v1637, %v1855
        %v1916 = vadd.f32 %v1639, %v1857
        %v1917 = vadd.f32 %v1641, %v1859
        %v1918 = vadd.f32 %v1643, %v1861
        %v1919 = vadd.f32 %v1647, %v1865
        %v1920 = vadd.f32 %v1649, %v1867
        %v1921 = vadd.f32 %v1651, %v1869
        %v1922 = vadd.f32 %v1653, %v1871
        %v1923 = vadd.f32 %v1657, %v1875
        %v1924 = vadd.f32 %v1659, %v1877
        %v1925 = vadd.f32 %v1661, %v1879
        %v1926 = vadd.f32 %v1663, %v1881
        %v1927 = vadd.f32 %v1667, %v1885
        %v1928 = vadd.f32 %v1669, %v1887
        %v1929 = vadd.f32 %v1671, %v1889
        %v1930 = vadd.f32 %v1673, %v1891
        %v1931 = vadd.f32 %v1677, %v1895
        %v1932 = vadd.f32 %v1679, %v1897
        %v1933 = vadd.f32 %v1681, %v1899
        %v1934 = vadd.f32 %v1683, %v1901
        %v1935 = vld [vmem:[%s705] sm:$0xff]
        %v1936 = vld [vmem:[%s705 + $0x8] sm:$0xff]
        %v1937 = vld [vmem:[%s705 + $0x10] sm:$0xff]
        %v1938 = vld [vmem:[%s705 + $0x18] sm:$0xff]
        %v1939 = vld [vmem:[%s705 + $0x20] sm:$0xff]
        %v1940 = vld [vmem:[%s705 + $0x28] sm:$0xff]
        %v1941 = vld [vmem:[%s705 + $0x30] sm:$0xff]
        %v1942 = vld [vmem:[%s705 + $0x38] sm:$0xff]
        %v1943 = vld [vmem:[%s705 + $0x40] sm:$0xff]
        %v1944 = vld [vmem:[%s705 + $0x48] sm:$0xff]
        %v1945 = vld [vmem:[%s705 + $0x50] sm:$0xff]
        %v1946 = vld [vmem:[%s705 + $0x58] sm:$0xff]
        %v1947 = vld [vmem:[%s705 + $0x60] sm:$0xff]
        %v1948 = vld [vmem:[%s705 + $0x68] sm:$0xff]
        %v1949 = vld [vmem:[%s705 + $0x70] sm:$0xff]
        %v1950 = vld [vmem:[%s705 + $0x78] sm:$0xff]
        %v1951 = vpack.c.bf16 %v1936, %v1935
        %v1952 = vpack.c.bf16 %v1938, %v1937
        %v1953 = vpack.c.bf16 %v1940, %v1939
        %v1954 = vpack.c.bf16 %v1942, %v1941
        %v1955 = vpack.c.bf16 %v1944, %v1943
        %v1956 = vpack.c.bf16 %v1946, %v1945
        %v1957 = vpack.c.bf16 %v1948, %v1947
        %v1958 = vpack.c.bf16 %v1950, %v1949
        %v1959 = vld [vmem:[%s607] sm:$0xff]
        %v1960 = vld [vmem:[%s607 + $0x8] sm:$0xff]
        %v1961 = vld [vmem:[%s607 + $0x10] sm:$0xff]
        %v1962 = vld [vmem:[%s607 + $0x18] sm:$0xff]
        %v1967 = vunpack.c.l.b16 %v1959
        %v1968 = vunpack.c.h.b16 %v1959
        %v1969 = vunpack.c.l.b16 %v1960
        %v1970 = vunpack.c.h.b16 %v1960
        %v1971 = vunpack.c.l.b16 %v1961
        %v1972 = vunpack.c.h.b16 %v1961
        %v1973 = vunpack.c.l.b16 %v1962
        %v1974 = vunpack.c.h.b16 %v1962
        %v1975 = vpack.c.b16 %v1969, %v1967
        %v1976 = vpack.c.b16 %v1970, %v1968
        %v1977 = vpack.c.b16 %v1973, %v1971
        %v1978 = vpack.c.b16 %v1974, %v1972
        %vm1983 = vcmask 261120
        %v1985 = vsel %vm1983, %v1951, 0
        %v1988 = vsel %vm1983, %v1952, 0
        %v1991 = vsel %vm1983, %v1953, 0
        %v1994 = vsel %vm1983, %v1954, 0
        %v1997 = vsel %vm1983, %v1955, 0
        %v2000 = vsel %vm1983, %v1956, 0
        %v2003 = vsel %vm1983, %v1957, 0
        %v2006 = vsel %vm1983, %v1958, 0
        %2008 = vmatprep.subr.bf16.mxu0 0
        %2009 = vmatpush1.bf16.msra.mxu0 0
        %2010 = vmatprep.subr.bf16.mxu0 0
        %2011 = vmatpush1.bf16.msra.mxu0 0
        %2012 = vmatprep.subr.bf16.mxu0 0
        %2013 = vmatpush1.bf16.msra.mxu0 0
        %2014 = vmatprep.subr.bf16.mxu0 0
        %2015 = vmatpush1.bf16.msra.mxu0 0
        %2016 = vmatprep.subr.bf16.mxu0 0
        %2017 = vmatpush1.bf16.msra.mxu0 0
        %2018 = vmatprep.subr.bf16.mxu0 0
        %2019 = vmatpush1.bf16.msra.mxu0 0
        %2020 = vmatprep.subr.bf16.mxu0 %v1978
        %2021 = vmatpush1.bf16.msra.mxu0 %v1977
        %2022 = vmatprep.subr.bf16.mxu0 %v1976
        %2023 = vmatpush1.bf16.msra.mxu0 %v1975
        %2024 = vmatprep.subr.bf16.mxu0 0
        %2025 = vmatpush2.bf16.msra.mxu0 0
        %2026 = vmatprep.subr.bf16.mxu0 0
        %2027 = vmatpush2.bf16.msra.mxu0 0
        %2028 = vmatprep.subr.bf16.mxu0 0
        %2029 = vmatpush2.bf16.msra.mxu0 0
        %2030 = vmatprep.subr.bf16.mxu0 0
        %2031 = vmatpush2.bf16.msra.mxu0 0
        %2032 = vmatprep.subr.bf16.mxu0 0
        %2033 = vmatpush2.bf16.msra.mxu0 0
        %2034 = vmatprep.subr.bf16.mxu0 0
        %2035 = vmatpush2.bf16.msra.mxu0 0
        %2036 = vmatprep.subr.bf16.mxu0 0
        %2037 = vmatpush2.bf16.msra.mxu0 0
        %2038 = vmatprep.subr.bf16.mxu0 0
        %2039 = vmatpush2.bf16.msra.mxu0 0
        %2040 = vmatprep.mubr.bf16.mxu0 0
        %2041 = vmatmul.mubr.bf16.gmra.mxu0 %v1985
        %v2042 = vpop.f32.mrf.mxu0
        %v2043 = vadd.f32 0.0, %v2042
        %v2044 = vpop.f32.mrf.mxu0
        %v2045 = vadd.f32 0.0, %v2044
        %v2046 = vpop.f32.mrf.mxu0
        %v2047 = vadd.f32 0.0, %v2046
        %v2048 = vpop.f32.mrf.mxu0
        %v2049 = vadd.f32 0.0, %v2048
        %2050 = vmatprep.mubr.bf16.mxu0 0
        %2051 = vmatmul.mubr.bf16.gmra.mxu0 %v1988
        %v2052 = vpop.f32.mrf.mxu0
        %v2053 = vadd.f32 0.0, %v2052
        %v2054 = vpop.f32.mrf.mxu0
        %v2055 = vadd.f32 0.0, %v2054
        %v2056 = vpop.f32.mrf.mxu0
        %v2057 = vadd.f32 0.0, %v2056
        %v2058 = vpop.f32.mrf.mxu0
        %v2059 = vadd.f32 0.0, %v2058
        %2060 = vmatprep.mubr.bf16.mxu0 0
        %2061 = vmatmul.mubr.bf16.gmra.mxu0 %v1991
        %v2062 = vpop.f32.mrf.mxu0
        %v2063 = vadd.f32 0.0, %v2062
        %v2064 = vpop.f32.mrf.mxu0
        %v2065 = vadd.f32 0.0, %v2064
        %v2066 = vpop.f32.mrf.mxu0
        %v2067 = vadd.f32 0.0, %v2066
        %v2068 = vpop.f32.mrf.mxu0
        %v2069 = vadd.f32 0.0, %v2068
        %2070 = vmatprep.mubr.bf16.mxu0 0
        %2071 = vmatmul.mubr.bf16.gmra.mxu0 %v1994
        %v2072 = vpop.f32.mrf.mxu0
        %v2073 = vadd.f32 0.0, %v2072
        %v2074 = vpop.f32.mrf.mxu0
        %v2075 = vadd.f32 0.0, %v2074
        %v2076 = vpop.f32.mrf.mxu0
        %v2077 = vadd.f32 0.0, %v2076
        %v2078 = vpop.f32.mrf.mxu0
        %v2079 = vadd.f32 0.0, %v2078
        %2080 = vmatprep.mubr.bf16.mxu0 0
        %2081 = vmatmul.mubr.bf16.gmra.mxu0 %v1997
        %v2082 = vpop.f32.mrf.mxu0
        %v2083 = vadd.f32 0.0, %v2082
        %v2084 = vpop.f32.mrf.mxu0
        %v2085 = vadd.f32 0.0, %v2084
        %v2086 = vpop.f32.mrf.mxu0
        %v2087 = vadd.f32 0.0, %v2086
        %v2088 = vpop.f32.mrf.mxu0
        %v2089 = vadd.f32 0.0, %v2088
        %2090 = vmatprep.mubr.bf16.mxu0 0
        %2091 = vmatmul.mubr.bf16.gmra.mxu0 %v2000
        %v2092 = vpop.f32.mrf.mxu0
        %v2093 = vadd.f32 0.0, %v2092
        %v2094 = vpop.f32.mrf.mxu0
        %v2095 = vadd.f32 0.0, %v2094
        %v2096 = vpop.f32.mrf.mxu0
        %v2097 = vadd.f32 0.0, %v2096
        %v2098 = vpop.f32.mrf.mxu0
        %v2099 = vadd.f32 0.0, %v2098
        %2100 = vmatprep.mubr.bf16.mxu0 0
        %2101 = vmatmul.mubr.bf16.gmra.mxu0 %v2003
        %v2102 = vpop.f32.mrf.mxu0
        %v2103 = vadd.f32 0.0, %v2102
        %v2104 = vpop.f32.mrf.mxu0
        %v2105 = vadd.f32 0.0, %v2104
        %v2106 = vpop.f32.mrf.mxu0
        %v2107 = vadd.f32 0.0, %v2106
        %v2108 = vpop.f32.mrf.mxu0
        %v2109 = vadd.f32 0.0, %v2108
        %2110 = vmatprep.mubr.bf16.mxu0 0
        %2111 = vmatmul.mubr.bf16.gmra.mxu0 %v2006
        %v2112 = vpop.f32.mrf.mxu0
        %v2113 = vadd.f32 0.0, %v2112
        %v2114 = vpop.f32.mrf.mxu0
        %v2115 = vadd.f32 0.0, %v2114
        %v2116 = vpop.f32.mrf.mxu0
        %v2117 = vadd.f32 0.0, %v2116
        %v2118 = vpop.f32.mrf.mxu0
        %v2119 = vadd.f32 0.0, %v2118
        %2120 = vdwg.mxu0
        %v2121 = vadd.f32 %v1903, %v2043
        %v2122 = vadd.f32 %v1904, %v2045
        %v2123 = vadd.f32 %v1905, %v2047
        %v2124 = vadd.f32 %v1906, %v2049
        %v2125 = vadd.f32 %v1907, %v2053
        %v2126 = vadd.f32 %v1908, %v2055
        %v2127 = vadd.f32 %v1909, %v2057
        %v2128 = vadd.f32 %v1910, %v2059
        %v2129 = vadd.f32 %v1911, %v2063
        %v2130 = vadd.f32 %v1912, %v2065
        %v2131 = vadd.f32 %v1913, %v2067
        %v2132 = vadd.f32 %v1914, %v2069
        %v2133 = vadd.f32 %v1915, %v2073
        %v2134 = vadd.f32 %v1916, %v2075
        %v2135 = vadd.f32 %v1917, %v2077
        %v2136 = vadd.f32 %v1918, %v2079
        %v2137 = vadd.f32 %v1919, %v2083
        %v2138 = vadd.f32 %v1920, %v2085
        %v2139 = vadd.f32 %v1921, %v2087
        %v2140 = vadd.f32 %v1922, %v2089
        %v2141 = vadd.f32 %v1923, %v2093
        %v2142 = vadd.f32 %v1924, %v2095
        %v2143 = vadd.f32 %v1925, %v2097
        %v2144 = vadd.f32 %v1926, %v2099
        %v2145 = vadd.f32 %v1927, %v2103
        %v2146 = vadd.f32 %v1928, %v2105
        %v2147 = vadd.f32 %v1929, %v2107
        %v2148 = vadd.f32 %v1930, %v2109
        %v2149 = vadd.f32 %v1931, %v2113
        %v2150 = vadd.f32 %v1932, %v2115
        %v2151 = vadd.f32 %v1933, %v2117
        %v2152 = vadd.f32 %v1934, %v2119
        %v2154 = vlaneseq
        %v2155 = vshrl.u32 %v2154, 7
        %v2156 = vsub.s32 0, %v2155
        %v2157 = vrot.slane %v1249, %v2156
        %v2158 = vlaneseq
        %v2159 = vshrl.u32 %v2158, 7
        %v2160 = vsub.s32 2, %v2159
        %v2161 = vrot.slane %v1249, %v2160
        %v2164 = vlaneseq
        %v2165 = vshrl.u32 %v2164, 7
        %v2166 = vsub.s32 0, %v2165
        %v2167 = vrot.slane %v2157, %v2166
        %v2168 = vlaneseq
        %v2169 = vshrl.u32 %v2168, 7
        %v2170 = vsub.s32 0, %v2169
        %v2171 = vrot.slane %v2161, %v2170
        %v2172 = vadd.f32 %v2121, %v2167
        %v2173 = vadd.f32 %v2122, %v2171
        %v2174 = vadd.f32 %v2123, %v2167
        %v2175 = vadd.f32 %v2124, %v2171
        %v2176 = vadd.f32 %v2125, %v2167
        %v2177 = vadd.f32 %v2126, %v2171
        %v2178 = vadd.f32 %v2127, %v2167
        %v2179 = vadd.f32 %v2128, %v2171
        %v2180 = vadd.f32 %v2129, %v2167
        %v2181 = vadd.f32 %v2130, %v2171
        %v2182 = vadd.f32 %v2131, %v2167
        %v2183 = vadd.f32 %v2132, %v2171
        %v2184 = vadd.f32 %v2133, %v2167
        %v2185 = vadd.f32 %v2134, %v2171
        %v2186 = vadd.f32 %v2135, %v2167
        %v2187 = vadd.f32 %v2136, %v2171
        %v2188 = vadd.f32 %v2137, %v2167
        %v2189 = vadd.f32 %v2138, %v2171
        %v2190 = vadd.f32 %v2139, %v2167
        %v2191 = vadd.f32 %v2140, %v2171
        %v2192 = vadd.f32 %v2141, %v2167
        %v2193 = vadd.f32 %v2142, %v2171
        %v2194 = vadd.f32 %v2143, %v2167
        %v2195 = vadd.f32 %v2144, %v2171
        %v2196 = vadd.f32 %v2145, %v2167
        %v2197 = vadd.f32 %v2146, %v2171
        %v2198 = vadd.f32 %v2147, %v2167
        %v2199 = vadd.f32 %v2148, %v2171
        %v2200 = vadd.f32 %v2149, %v2167
        %v2201 = vadd.f32 %v2150, %v2171
        %v2202 = vadd.f32 %v2151, %v2167
        %v2203 = vadd.f32 %v2152, %v2171
        %v2204 = vxor.u32 %v2172, 2147483648
        %v2205 = vxor.u32 %v2174, 2147483648
        %v2206 = vxor.u32 %v2176, 2147483648
        %v2207 = vxor.u32 %v2178, 2147483648
        %v2208 = vxor.u32 %v2180, 2147483648
        %v2209 = vxor.u32 %v2182, 2147483648
        %v2210 = vxor.u32 %v2184, 2147483648
        %v2211 = vxor.u32 %v2186, 2147483648
        %v2212 = vxor.u32 %v2188, 2147483648
        %v2213 = vxor.u32 %v2190, 2147483648
        %v2214 = vxor.u32 %v2192, 2147483648
        %v2215 = vxor.u32 %v2194, 2147483648
        %v2216 = vxor.u32 %v2196, 2147483648
        %v2217 = vxor.u32 %v2198, 2147483648
        %v2218 = vxor.u32 %v2200, 2147483648
        %v2219 = vxor.u32 %v2202, 2147483648
        %v2220 = vmul.f32 %v2204, 1.442695
        %v2221 = vpow.pop %v2220
        %v2222 = vmul.f32 %v2205, 1.442695
        %v2223 = vpow.pop %v2222
        %v2224 = vmul.f32 %v2206, 1.442695
        %v2225 = vpow.pop %v2224
        %v2226 = vmul.f32 %v2207, 1.442695
        %v2227 = vpow.pop %v2226
        %v2228 = vmul.f32 %v2208, 1.442695
        %v2229 = vpow.pop %v2228
        %v2230 = vmul.f32 %v2209, 1.442695
        %v2231 = vpow.pop %v2230
        %v2232 = vmul.f32 %v2210, 1.442695
        %v2233 = vpow.pop %v2232
        %v2234 = vmul.f32 %v2211, 1.442695
        %v2235 = vpow.pop %v2234
        %v2236 = vmul.f32 %v2212, 1.442695
        %v2237 = vpow.pop %v2236
        %v2238 = vmul.f32 %v2213, 1.442695
        %v2239 = vpow.pop %v2238
        %v2240 = vmul.f32 %v2214, 1.442695
        %v2241 = vpow.pop %v2240
        %v2242 = vmul.f32 %v2215, 1.442695
        %v2243 = vpow.pop %v2242
        %v2244 = vmul.f32 %v2216, 1.442695
        %v2245 = vpow.pop %v2244
        %v2246 = vmul.f32 %v2217, 1.442695
        %v2247 = vpow.pop %v2246
        %v2248 = vmul.f32 %v2218, 1.442695
        %v2249 = vpow.pop %v2248
        %v2250 = vmul.f32 %v2219, 1.442695
        %v2251 = vpow.pop %v2250
        %v2252 = vadd.f32 %v2221, 1.0
        %v2253 = vadd.f32 %v2223, 1.0
        %v2254 = vadd.f32 %v2225, 1.0
        %v2255 = vadd.f32 %v2227, 1.0
        %v2256 = vadd.f32 %v2229, 1.0
        %v2257 = vadd.f32 %v2231, 1.0
        %v2258 = vadd.f32 %v2233, 1.0
        %v2259 = vadd.f32 %v2235, 1.0
        %v2260 = vadd.f32 %v2237, 1.0
        %v2261 = vadd.f32 %v2239, 1.0
        %v2262 = vadd.f32 %v2241, 1.0
        %v2263 = vadd.f32 %v2243, 1.0
        %v2264 = vadd.f32 %v2245, 1.0
        %v2265 = vadd.f32 %v2247, 1.0
        %v2266 = vadd.f32 %v2249, 1.0
        %v2267 = vadd.f32 %v2251, 1.0
        %v2268 = vrcp.pop %v2252
        %v2269 = vmul.f32 1.0, %v2268
        %v2270 = vrcp.pop %v2253
        %v2271 = vmul.f32 1.0, %v2270
        %v2272 = vrcp.pop %v2254
        %v2273 = vmul.f32 1.0, %v2272
        %v2274 = vrcp.pop %v2255
        %v2275 = vmul.f32 1.0, %v2274
        %v2276 = vrcp.pop %v2256
        %v2277 = vmul.f32 1.0, %v2276
        %v2278 = vrcp.pop %v2257
        %v2279 = vmul.f32 1.0, %v2278
        %v2280 = vrcp.pop %v2258
        %v2281 = vmul.f32 1.0, %v2280
        %v2282 = vrcp.pop %v2259
        %v2283 = vmul.f32 1.0, %v2282
        %v2284 = vrcp.pop %v2260
        %v2285 = vmul.f32 1.0, %v2284
        %v2286 = vrcp.pop %v2261
        %v2287 = vmul.f32 1.0, %v2286
        %v2288 = vrcp.pop %v2262
        %v2289 = vmul.f32 1.0, %v2288
        %v2290 = vrcp.pop %v2263
        %v2291 = vmul.f32 1.0, %v2290
        %v2292 = vrcp.pop %v2264
        %v2293 = vmul.f32 1.0, %v2292
        %v2294 = vrcp.pop %v2265
        %v2295 = vmul.f32 1.0, %v2294
        %v2296 = vrcp.pop %v2266
        %v2297 = vmul.f32 1.0, %v2296
        %v2298 = vrcp.pop %v2267
        %v2299 = vmul.f32 1.0, %v2298
        %v2300 = vtanh.pop %v2173
        %v2301 = vtanh.pop %v2175
        %v2302 = vtanh.pop %v2177
        %v2303 = vtanh.pop %v2179
        %v2304 = vtanh.pop %v2181
        %v2305 = vtanh.pop %v2183
        %v2306 = vtanh.pop %v2185
        %v2307 = vtanh.pop %v2187
        %v2308 = vtanh.pop %v2189
        %v2309 = vtanh.pop %v2191
        %v2310 = vtanh.pop %v2193
        %v2311 = vtanh.pop %v2195
        %v2312 = vtanh.pop %v2197
        %v2313 = vtanh.pop %v2199
        %v2314 = vtanh.pop %v2201
        %v2315 = vtanh.pop %v2203
        %v2316 = vmul.f32 %v2269, %v2300
        %v2317 = vmul.f32 %v2271, %v2301
        %v2318 = vmul.f32 %v2273, %v2302
        %v2319 = vmul.f32 %v2275, %v2303
        %v2320 = vmul.f32 %v2277, %v2304
        %v2321 = vmul.f32 %v2279, %v2305
        %v2322 = vmul.f32 %v2281, %v2306
        %v2323 = vmul.f32 %v2283, %v2307
        %v2324 = vmul.f32 %v2285, %v2308
        %v2325 = vmul.f32 %v2287, %v2309
        %v2326 = vmul.f32 %v2289, %v2310
        %v2327 = vmul.f32 %v2291, %v2311
        %v2328 = vmul.f32 %v2293, %v2312
        %v2329 = vmul.f32 %v2295, %v2313
        %v2330 = vmul.f32 %v2297, %v2314
        %v2331 = vmul.f32 %v2299, %v2315
        %v2332 = vpack.c.bf16 %v2317, %v2316
        %v2333 = vpack.c.bf16 %v2319, %v2318
        %v2334 = vpack.c.bf16 %v2321, %v2320
        %v2335 = vpack.c.bf16 %v2323, %v2322
        %v2336 = vpack.c.bf16 %v2325, %v2324
        %v2337 = vpack.c.bf16 %v2327, %v2326
        %v2338 = vpack.c.bf16 %v2329, %v2328
        %v2339 = vpack.c.bf16 %v2331, %v2330
        %v2340 = vld [vmem:[%s616] sm:$0xff]
        %v2341 = vld [vmem:[%s616 + $0x8] sm:$0xff]
        %v2342 = vld [vmem:[%s616 + $0x10] sm:$0xff]
        %v2343 = vld [vmem:[%s616 + $0x18] sm:$0xff]
        %v2344 = vld [vmem:[%s616 + $0x20] sm:$0xff]
        %v2345 = vld [vmem:[%s616 + $0x28] sm:$0xff]
        %v2346 = vld [vmem:[%s616 + $0x30] sm:$0xff]
        %v2347 = vld [vmem:[%s616 + $0x38] sm:$0xff]
        %v2348 = vld [vmem:[%s616 + $0x40] sm:$0xff]
        %v2349 = vld [vmem:[%s616 + $0x48] sm:$0xff]
        %v2350 = vld [vmem:[%s616 + $0x50] sm:$0xff]
        %v2351 = vld [vmem:[%s616 + $0x58] sm:$0xff]
        %v2352 = vld [vmem:[%s616 + $0x60] sm:$0xff]
        %v2353 = vld [vmem:[%s616 + $0x68] sm:$0xff]
        %v2354 = vld [vmem:[%s616 + $0x70] sm:$0xff]
        %v2355 = vld [vmem:[%s616 + $0x78] sm:$0xff]
        %v2356 = vlaneseq
        %v2357 = vshrl.u32 %v2356, 7
        %v2358 = vsub.s32 1, %v2357
        %v2359 = vrot.slane %v1249, %v2358
        %v2360 = vlaneseq
        %v2361 = vshrl.u32 %v2360, 7
        %v2362 = vsub.s32 3, %v2361
        %v2363 = vrot.slane %v1249, %v2362
        %v2366 = vlaneseq
        %v2367 = vshrl.u32 %v2366, 7
        %v2368 = vsub.s32 1, %v2367
        %v2369 = vrot.slane %v2359, %v2368
        %v2370 = vlaneseq
        %v2371 = vshrl.u32 %v2370, 7
        %v2372 = vsub.s32 1, %v2371
        %v2373 = vrot.slane %v2363, %v2372
        %v2390 = vunpack.c.l.b16 %v2340
        %v2391 = vunpack.c.h.b16 %v2340
        %v2392 = vunpack.c.l.b16 %v2341
        %v2393 = vunpack.c.h.b16 %v2341
        %v2394 = vunpack.c.l.b16 %v2342
        %v2395 = vunpack.c.h.b16 %v2342
        %v2396 = vunpack.c.l.b16 %v2343
        %v2397 = vunpack.c.h.b16 %v2343
        %v2398 = vunpack.c.l.b16 %v2344
        %v2399 = vunpack.c.h.b16 %v2344
        %v2400 = vunpack.c.l.b16 %v2345
        %v2401 = vunpack.c.h.b16 %v2345
        %v2402 = vunpack.c.l.b16 %v2346
        %v2403 = vunpack.c.h.b16 %v2346
        %v2404 = vunpack.c.l.b16 %v2347
        %v2405 = vunpack.c.h.b16 %v2347
        %v2406 = vunpack.c.l.b16 %v2348
        %v2407 = vunpack.c.h.b16 %v2348
        %v2408 = vunpack.c.l.b16 %v2349
        %v2409 = vunpack.c.h.b16 %v2349
        %v2410 = vunpack.c.l.b16 %v2350
        %v2411 = vunpack.c.h.b16 %v2350
        %v2412 = vunpack.c.l.b16 %v2351
        %v2413 = vunpack.c.h.b16 %v2351
        %v2414 = vunpack.c.l.b16 %v2352
        %v2415 = vunpack.c.h.b16 %v2352
        %v2416 = vunpack.c.l.b16 %v2353
        %v2417 = vunpack.c.h.b16 %v2353
        %v2418 = vunpack.c.l.b16 %v2354
        %v2419 = vunpack.c.h.b16 %v2354
        %v2420 = vunpack.c.l.b16 %v2355
        %v2421 = vunpack.c.h.b16 %v2355
        %v2422 = vpack.c.b16 %v2392, %v2390
        %v2423 = vpack.c.b16 %v2393, %v2391
        %v2424 = vpack.c.b16 %v2396, %v2394
        %v2425 = vpack.c.b16 %v2397, %v2395
        %v2426 = vpack.c.b16 %v2400, %v2398
        %v2427 = vpack.c.b16 %v2401, %v2399
        %v2428 = vpack.c.b16 %v2404, %v2402
        %v2429 = vpack.c.b16 %v2405, %v2403
        %v2430 = vpack.c.b16 %v2408, %v2406
        %v2431 = vpack.c.b16 %v2409, %v2407
        %v2432 = vpack.c.b16 %v2412, %v2410
        %v2433 = vpack.c.b16 %v2413, %v2411
        %v2434 = vpack.c.b16 %v2416, %v2414
        %v2435 = vpack.c.b16 %v2417, %v2415
        %v2436 = vpack.c.b16 %v2420, %v2418
        %v2437 = vpack.c.b16 %v2421, %v2419
        %2454 = vmatprep.subr.bf16.mxu0 %v2437
        %2455 = vmatpush1.bf16.msra.mxu0 %v2436
        %2456 = vmatprep.subr.bf16.mxu0 %v2435
        %2457 = vmatpush1.bf16.msra.mxu0 %v2434
        %2458 = vmatprep.subr.bf16.mxu0 %v2433
        %2459 = vmatpush1.bf16.msra.mxu0 %v2432
        %2460 = vmatprep.subr.bf16.mxu0 %v2431
        %2461 = vmatpush1.bf16.msra.mxu0 %v2430
        %2462 = vmatprep.subr.bf16.mxu0 %v2429
        %2463 = vmatpush1.bf16.msra.mxu0 %v2428
        %2464 = vmatprep.subr.bf16.mxu0 %v2427
        %2465 = vmatpush1.bf16.msra.mxu0 %v2426
        %2466 = vmatprep.subr.bf16.mxu0 %v2425
        %2467 = vmatpush1.bf16.msra.mxu0 %v2424
        %2468 = vmatprep.subr.bf16.mxu0 %v2423
        %2469 = vmatpush1.bf16.msra.mxu0 %v2422
        %2470 = vmatprep.subr.bf16.mxu0 0
        %2471 = vmatpush2.bf16.msra.mxu0 0
        %2472 = vmatprep.subr.bf16.mxu0 0
        %2473 = vmatpush2.bf16.msra.mxu0 0
        %2474 = vmatprep.subr.bf16.mxu0 0
        %2475 = vmatpush2.bf16.msra.mxu0 0
        %2476 = vmatprep.subr.bf16.mxu0 0
        %2477 = vmatpush2.bf16.msra.mxu0 0
        %2478 = vmatprep.subr.bf16.mxu0 0
        %2479 = vmatpush2.bf16.msra.mxu0 0
        %2480 = vmatprep.subr.bf16.mxu0 0
        %2481 = vmatpush2.bf16.msra.mxu0 0
        %2482 = vmatprep.subr.bf16.mxu0 0
        %2483 = vmatpush2.bf16.msra.mxu0 0
        %2484 = vmatprep.subr.bf16.mxu0 0
        %2485 = vmatpush2.bf16.msra.mxu0 0
        %2486 = vmatprep.mubr.bf16.mxu0 0
        %2487 = vmatmul.mubr.bf16.gmra.mxu0 %v2332
        %v2488 = vpop.f32.mrf.mxu0
        %v2489 = vadd.f32 %v2369, %v2488
        %v2490 = vpop.f32.mrf.mxu0
        %v2491 = vadd.f32 %v2373, %v2490
        %v2492 = vpop.f32.mrf.mxu0
        %v2493 = vadd.f32 %v2369, %v2492
        %v2494 = vpop.f32.mrf.mxu0
        %v2495 = vadd.f32 %v2373, %v2494
        %2496 = vmatprep.mubr.bf16.mxu0 0
        %2497 = vmatmul.mubr.bf16.gmra.mxu0 %v2333
        %v2498 = vpop.f32.mrf.mxu0
        %v2499 = vadd.f32 %v2369, %v2498
        %v2500 = vpop.f32.mrf.mxu0
        %v2501 = vadd.f32 %v2373, %v2500
        %v2502 = vpop.f32.mrf.mxu0
        %v2503 = vadd.f32 %v2369, %v2502
        %v2504 = vpop.f32.mrf.mxu0
        %v2505 = vadd.f32 %v2373, %v2504
        %2506 = vmatprep.mubr.bf16.mxu0 0
        %2507 = vmatmul.mubr.bf16.gmra.mxu0 %v2334
        %v2508 = vpop.f32.mrf.mxu0
        %v2509 = vadd.f32 %v2369, %v2508
        %v2510 = vpop.f32.mrf.mxu0
        %v2511 = vadd.f32 %v2373, %v2510
        %v2512 = vpop.f32.mrf.mxu0
        %v2513 = vadd.f32 %v2369, %v2512
        %v2514 = vpop.f32.mrf.mxu0
        %v2515 = vadd.f32 %v2373, %v2514
        %2516 = vmatprep.mubr.bf16.mxu0 0
        %2517 = vmatmul.mubr.bf16.gmra.mxu0 %v2335
        %v2518 = vpop.f32.mrf.mxu0
        %v2519 = vadd.f32 %v2369, %v2518
        %v2520 = vpop.f32.mrf.mxu0
        %v2521 = vadd.f32 %v2373, %v2520
        %v2522 = vpop.f32.mrf.mxu0
        %v2523 = vadd.f32 %v2369, %v2522
        %v2524 = vpop.f32.mrf.mxu0
        %v2525 = vadd.f32 %v2373, %v2524
        %2526 = vmatprep.mubr.bf16.mxu0 0
        %2527 = vmatmul.mubr.bf16.gmra.mxu0 %v2336
        %v2528 = vpop.f32.mrf.mxu0
        %v2529 = vadd.f32 %v2369, %v2528
        %v2530 = vpop.f32.mrf.mxu0
        %v2531 = vadd.f32 %v2373, %v2530
        %v2532 = vpop.f32.mrf.mxu0
        %v2533 = vadd.f32 %v2369, %v2532
        %v2534 = vpop.f32.mrf.mxu0
        %v2535 = vadd.f32 %v2373, %v2534
        %2536 = vmatprep.mubr.bf16.mxu0 0
        %2537 = vmatmul.mubr.bf16.gmra.mxu0 %v2337
        %v2538 = vpop.f32.mrf.mxu0
        %v2539 = vadd.f32 %v2369, %v2538
        %v2540 = vpop.f32.mrf.mxu0
        %v2541 = vadd.f32 %v2373, %v2540
        %v2542 = vpop.f32.mrf.mxu0
        %v2543 = vadd.f32 %v2369, %v2542
        %v2544 = vpop.f32.mrf.mxu0
        %v2545 = vadd.f32 %v2373, %v2544
        %2546 = vmatprep.mubr.bf16.mxu0 0
        %2547 = vmatmul.mubr.bf16.gmra.mxu0 %v2338
        %v2548 = vpop.f32.mrf.mxu0
        %v2549 = vadd.f32 %v2369, %v2548
        %v2550 = vpop.f32.mrf.mxu0
        %v2551 = vadd.f32 %v2373, %v2550
        %v2552 = vpop.f32.mrf.mxu0
        %v2553 = vadd.f32 %v2369, %v2552
        %v2554 = vpop.f32.mrf.mxu0
        %v2555 = vadd.f32 %v2373, %v2554
        %2556 = vmatprep.mubr.bf16.mxu0 0
        %2557 = vmatmul.mubr.bf16.gmra.mxu0 %v2339
        %v2558 = vpop.f32.mrf.mxu0
        %v2559 = vadd.f32 %v2369, %v2558
        %v2560 = vpop.f32.mrf.mxu0
        %v2561 = vadd.f32 %v2373, %v2560
        %v2562 = vpop.f32.mrf.mxu0
        %v2563 = vadd.f32 %v2369, %v2562
        %v2564 = vpop.f32.mrf.mxu0
        %v2565 = vadd.f32 %v2373, %v2564
        %2566 = vdwg.mxu0
        %v2567 = vadd.f32 %v959, %v2489
        %v2568 = vadd.f32 %v960, %v2493
        %v2569 = vadd.f32 %v961, %v2499
        %v2570 = vadd.f32 %v962, %v2503
        %v2571 = vadd.f32 %v963, %v2509
        %v2572 = vadd.f32 %v964, %v2513
        %v2573 = vadd.f32 %v965, %v2519
        %v2574 = vadd.f32 %v966, %v2523
        %v2575 = vadd.f32 %v967, %v2529
        %v2576 = vadd.f32 %v968, %v2533
        %v2577 = vadd.f32 %v969, %v2539
        %v2578 = vadd.f32 %v970, %v2543
        %v2579 = vadd.f32 %v971, %v2549
        %v2580 = vadd.f32 %v972, %v2553
        %v2581 = vadd.f32 %v973, %v2559
        %v2582 = vadd.f32 %v974, %v2563
        %v2583 = vmul.f32 %v2567, 0.70710677
        %v2584 = vmul.f32 %v2568, 0.70710677
        %v2585 = vmul.f32 %v2569, 0.70710677
        %v2586 = vmul.f32 %v2570, 0.70710677
        %v2587 = vmul.f32 %v2571, 0.70710677
        %v2588 = vmul.f32 %v2572, 0.70710677
        %v2589 = vmul.f32 %v2573, 0.70710677
        %v2590 = vmul.f32 %v2574, 0.70710677
        %v2591 = vmul.f32 %v2575, 0.70710677
        %v2592 = vmul.f32 %v2576, 0.70710677
        %v2593 = vmul.f32 %v2577, 0.70710677
        %v2594 = vmul.f32 %v2578, 0.70710677
        %v2595 = vmul.f32 %v2579, 0.70710677
        %v2596 = vmul.f32 %v2580, 0.70710677
        %v2597 = vmul.f32 %v2581, 0.70710677
        %v2598 = vmul.f32 %v2582, 0.70710677
        %2599 = vst [vmem:[#allocation2] sm:$0xff] %v2583
        %2600 = vst [vmem:[#allocation2 + $0x8] sm:$0xff] %v2584
        %2601 = vst [vmem:[#allocation2 + $0x10] sm:$0xff] %v2585
        %2602 = vst [vmem:[#allocation2 + $0x18] sm:$0xff] %v2586
        %2603 = vst [vmem:[#allocation2 + $0x20] sm:$0xff] %v2587
        %2604 = vst [vmem:[#allocation2 + $0x28] sm:$0xff] %v2588
        %2605 = vst [vmem:[#allocation2 + $0x30] sm:$0xff] %v2589
        %2606 = vst [vmem:[#allocation2 + $0x38] sm:$0xff] %v2590
        %2607 = vst [vmem:[#allocation2 + $0x40] sm:$0xff] %v2591
        %2608 = vst [vmem:[#allocation2 + $0x48] sm:$0xff] %v2592
        %2609 = vst [vmem:[#allocation2 + $0x50] sm:$0xff] %v2593
        %2610 = vst [vmem:[#allocation2 + $0x58] sm:$0xff] %v2594
        %2611 = vst [vmem:[#allocation2 + $0x60] sm:$0xff] %v2595
        %2612 = vst [vmem:[#allocation2 + $0x68] sm:$0xff] %v2596
        %2613 = vst [vmem:[#allocation2 + $0x70] sm:$0xff] %v2597
        %2614 = vst [vmem:[#allocation2 + $0x78] sm:$0xff] %v2598
        %v2615 = vld [vmem:[#allocation3] sm:$0xff]
        %v2616 = vld [vmem:[#allocation3 + $0x8] sm:$0xff]
        %v2617 = vld [vmem:[#allocation3 + $0x10] sm:$0xff]
        %v2618 = vld [vmem:[#allocation3 + $0x18] sm:$0xff]
        %v2619 = vld [vmem:[#allocation3 + $0x20] sm:$0xff]
        %v2620 = vld [vmem:[#allocation3 + $0x28] sm:$0xff]
        %v2621 = vld [vmem:[#allocation3 + $0x30] sm:$0xff]
        %v2622 = vld [vmem:[#allocation3 + $0x38] sm:$0xff]
        %v2623 = vld [vmem:[#allocation3 + $0x40] sm:$0xff]
        %v2624 = vld [vmem:[#allocation3 + $0x48] sm:$0xff]
        %v2625 = vld [vmem:[#allocation3 + $0x50] sm:$0xff]
        %v2626 = vld [vmem:[#allocation3 + $0x58] sm:$0xff]
        %v2627 = vld [vmem:[#allocation3 + $0x60] sm:$0xff]
        %v2628 = vld [vmem:[#allocation3 + $0x68] sm:$0xff]
        %v2629 = vld [vmem:[#allocation3 + $0x70] sm:$0xff]
        %v2630 = vld [vmem:[#allocation3 + $0x78] sm:$0xff]
        %v2631 = vadd.f32 %v2615, %v2491
        %v2632 = vadd.f32 %v2616, %v2495
        %v2633 = vadd.f32 %v2617, %v2501
        %v2634 = vadd.f32 %v2618, %v2505
        %v2635 = vadd.f32 %v2619, %v2511
        %v2636 = vadd.f32 %v2620, %v2515
        %v2637 = vadd.f32 %v2621, %v2521
        %v2638 = vadd.f32 %v2622, %v2525
        %v2639 = vadd.f32 %v2623, %v2531
        %v2640 = vadd.f32 %v2624, %v2535
        %v2641 = vadd.f32 %v2625, %v2541
        %v2642 = vadd.f32 %v2626, %v2545
        %v2643 = vadd.f32 %v2627, %v2551
        %v2644 = vadd.f32 %v2628, %v2555
        %v2645 = vadd.f32 %v2629, %v2561
        %v2646 = vadd.f32 %v2630, %v2565
        %2647 = vst [vmem:[#allocation3] sm:$0xff] %v2631
        %2648 = vst [vmem:[#allocation3 + $0x8] sm:$0xff] %v2632
        %2649 = vst [vmem:[#allocation3 + $0x10] sm:$0xff] %v2633
        %2650 = vst [vmem:[#allocation3 + $0x18] sm:$0xff] %v2634
        %2651 = vst [vmem:[#allocation3 + $0x20] sm:$0xff] %v2635
        %2652 = vst [vmem:[#allocation3 + $0x28] sm:$0xff] %v2636
        %2653 = vst [vmem:[#allocation3 + $0x30] sm:$0xff] %v2637
        %2654 = vst [vmem:[#allocation3 + $0x38] sm:$0xff] %v2638
        %2655 = vst [vmem:[#allocation3 + $0x40] sm:$0xff] %v2639
        %2656 = vst [vmem:[#allocation3 + $0x48] sm:$0xff] %v2640
        %2657 = vst [vmem:[#allocation3 + $0x50] sm:$0xff] %v2641
        %2658 = vst [vmem:[#allocation3 + $0x58] sm:$0xff] %v2642
        %2659 = vst [vmem:[#allocation3 + $0x60] sm:$0xff] %v2643
        %2660 = vst [vmem:[#allocation3 + $0x68] sm:$0xff] %v2644
        %2661 = vst [vmem:[#allocation3 + $0x70] sm:$0xff] %v2645
        %2662 = vst [vmem:[#allocation3 + $0x78] sm:$0xff] %v2646
        %p2663 = scmp.eq.s32.totalorder %s38, 3
        // Predicated region
        $region135: #{tpu_custom_call.1} parent=101 // pred_check
          %p2664 = pneg %p2663
        $region136: #{tpu_custom_call.1} parent=101 // pred_check_branch
          %2666 = sbr.rel (%p2664) target = $region138
        $region137: #{tpu_custom_call.1} parent=101 // pred_region
          %v2667 = vld [vmem:[#allocation3] sm:$0xff]
          %v2668 = vld [vmem:[#allocation3 + $0x8] sm:$0xff]
          %v2669 = vld [vmem:[#allocation3 + $0x10] sm:$0xff]
          %v2670 = vld [vmem:[#allocation3 + $0x18] sm:$0xff]
          %v2671 = vld [vmem:[#allocation3 + $0x20] sm:$0xff]
          %v2672 = vld [vmem:[#allocation3 + $0x28] sm:$0xff]
          %v2673 = vld [vmem:[#allocation3 + $0x30] sm:$0xff]
          %v2674 = vld [vmem:[#allocation3 + $0x38] sm:$0xff]
          %v2675 = vld [vmem:[#allocation3 + $0x40] sm:$0xff]
          %v2676 = vld [vmem:[#allocation3 + $0x48] sm:$0xff]
          %v2677 = vld [vmem:[#allocation3 + $0x50] sm:$0xff]
          %v2678 = vld [vmem:[#allocation3 + $0x58] sm:$0xff]
          %v2679 = vld [vmem:[#allocation3 + $0x60] sm:$0xff]
          %v2680 = vld [vmem:[#allocation3 + $0x68] sm:$0xff]
          %v2681 = vld [vmem:[#allocation3 + $0x70] sm:$0xff]
          %v2682 = vld [vmem:[#allocation3 + $0x78] sm:$0xff]
          %v2683 = vmul.f32 %v2667, 0.5
          %v2684 = vmul.f32 %v2668, 0.5
          %v2685 = vmul.f32 %v2669, 0.5
          %v2686 = vmul.f32 %v2670, 0.5
          %v2687 = vmul.f32 %v2671, 0.5
          %v2688 = vmul.f32 %v2672, 0.5
          %v2689 = vmul.f32 %v2673, 0.5
          %v2690 = vmul.f32 %v2674, 0.5
          %v2691 = vmul.f32 %v2675, 0.5
          %v2692 = vmul.f32 %v2676, 0.5
          %v2693 = vmul.f32 %v2677, 0.5
          %v2694 = vmul.f32 %v2678, 0.5
          %v2695 = vmul.f32 %v2679, 0.5
          %v2696 = vmul.f32 %v2680, 0.5
          %v2697 = vmul.f32 %v2681, 0.5
          %v2698 = vmul.f32 %v2682, 0.5
          %v2699 = vpack.c.bf16 %v2684, %v2683
          %v2700 = vpack.c.bf16 %v2686, %v2685
          %v2701 = vpack.c.bf16 %v2688, %v2687
          %v2702 = vpack.c.bf16 %v2690, %v2689
          %v2703 = vpack.c.bf16 %v2692, %v2691
          %v2704 = vpack.c.bf16 %v2694, %v2693
          %v2705 = vpack.c.bf16 %v2696, %v2695
          %v2706 = vpack.c.bf16 %v2698, %v2697
          %v2707 = vld [vmem:[#allocation13] sm:$0xf]
          %v2708 = vld [vmem:[#allocation13 + $0x4] sm:$0xf]
          %v2709 = vld [vmem:[#allocation13 + $0x8] sm:$0xf]
          %v2710 = vld [vmem:[#allocation13 + $0xc] sm:$0xf]
          %v2711 = vld [vmem:[#allocation13 + $0x10] sm:$0xf]
          %v2712 = vld [vmem:[#allocation13 + $0x14] sm:$0xf]
          %v2713 = vld [vmem:[#allocation13 + $0x18] sm:$0xf]
          %v2714 = vld [vmem:[#allocation13 + $0x1c] sm:$0xf]
          %v2715 = vld [vmem:[#allocation13 + $0x20] sm:$0xf]
          %v2716 = vld [vmem:[#allocation13 + $0x24] sm:$0xf]
          %v2717 = vld [vmem:[#allocation13 + $0x28] sm:$0xf]
          %v2718 = vld [vmem:[#allocation13 + $0x2c] sm:$0xf]
          %v2719 = vld [vmem:[#allocation13 + $0x30] sm:$0xf]
          %v2720 = vld [vmem:[#allocation13 + $0x34] sm:$0xf]
          %v2721 = vld [vmem:[#allocation13 + $0x38] sm:$0xf]
          %v2722 = vld [vmem:[#allocation13 + $0x3c] sm:$0xf]
          %v2723 = vld [vmem:[%s10] sm:$0x1]
          %v2725 = vlaneseq
          %v2726 = vshrl.u32 %v2725, 7
          %v2727 = vsub.s32 0, %v2726
          %v2728 = vrot.slane %v2723, %v2727
          %v2746 = vunpack.c.l.b16 %v2707
          %v2747 = vunpack.c.l.b16 %v2708
          %v2748 = vunpack.c.l.b16 %v2709
          %v2749 = vunpack.c.l.b16 %v2710
          %v2750 = vunpack.c.l.b16 %v2711
          %v2751 = vunpack.c.l.b16 %v2712
          %v2752 = vunpack.c.l.b16 %v2713
          %v2753 = vunpack.c.l.b16 %v2714
          %v2754 = vunpack.c.l.b16 %v2715
          %v2755 = vunpack.c.l.b16 %v2716
          %v2756 = vunpack.c.l.b16 %v2717
          %v2757 = vunpack.c.l.b16 %v2718
          %v2758 = vunpack.c.l.b16 %v2719
          %v2759 = vunpack.c.l.b16 %v2720
          %v2760 = vunpack.c.l.b16 %v2721
          %v2761 = vunpack.c.l.b16 %v2722
          %v2762 = vpack.c.b16 %v2747, %v2746
          %v2763 = vpack.c.b16 %v2749, %v2748
          %v2764 = vpack.c.b16 %v2751, %v2750
          %v2765 = vpack.c.b16 %v2753, %v2752
          %v2766 = vpack.c.b16 %v2755, %v2754
          %v2767 = vpack.c.b16 %v2757, %v2756
          %v2768 = vpack.c.b16 %v2759, %v2758
          %v2769 = vpack.c.b16 %v2761, %v2760
          %2778 = vmatprep.subr.bf16.mxu0 0
          %2779 = vmatpush1.bf16.msra.mxu0 %v2769
          %2780 = vmatprep.subr.bf16.mxu0 0
          %2781 = vmatpush1.bf16.msra.mxu0 %v2768
          %2782 = vmatprep.subr.bf16.mxu0 0
          %2783 = vmatpush1.bf16.msra.mxu0 %v2767
          %2784 = vmatprep.subr.bf16.mxu0 0
          %2785 = vmatpush1.bf16.msra.mxu0 %v2766
          %2786 = vmatprep.subr.bf16.mxu0 0
          %2787 = vmatpush1.bf16.msra.mxu0 %v2765
          %2788 = vmatprep.subr.bf16.mxu0 0
          %2789 = vmatpush1.bf16.msra.mxu0 %v2764
          %2790 = vmatprep.subr.bf16.mxu0 0
          %2791 = vmatpush1.bf16.msra.mxu0 %v2763
          %2792 = vmatprep.subr.bf16.mxu0 0
          %2793 = vmatpush1.bf16.msra.mxu0 %v2762
          %2794 = vmatprep.subr.bf16.mxu0 0
          %2795 = vmatpush2.bf16.msra.mxu0 0
          %2796 = vmatprep.subr.bf16.mxu0 0
          %2797 = vmatpush2.bf16.msra.mxu0 0
          %2798 = vmatprep.subr.bf16.mxu0 0
          %2799 = vmatpush2.bf16.msra.mxu0 0
          %2800 = vmatprep.subr.bf16.mxu0 0
          %2801 = vmatpush2.bf16.msra.mxu0 0
          %2802 = vmatprep.subr.bf16.mxu0 0
          %2803 = vmatpush2.bf16.msra.mxu0 0
          %2804 = vmatprep.subr.bf16.mxu0 0
          %2805 = vmatpush2.bf16.msra.mxu0 0
          %2806 = vmatprep.subr.bf16.mxu0 0
          %2807 = vmatpush2.bf16.msra.mxu0 0
          %2808 = vmatprep.subr.bf16.mxu0 0
          %2809 = vmatpush2.bf16.msra.mxu0 0
          %2810 = vmatprep.mubr.bf16.mxu0 0
          %2811 = vmatmul.mubr.bf16.gmra.mxu0 %v2699
          %v2812 = vpop.f32.mrf.mxu0
          %v2813 = vadd.f32 %v2728, %v2812
          %v2814 = vpop.f32.mrf.mxu0
          %v2815 = vpop.f32.mrf.mxu0
          %v2816 = vadd.f32 %v2728, %v2815
          %v2817 = vpop.f32.mrf.mxu0
          %2818 = vmatprep.mubr.bf16.mxu0 0
          %2819 = vmatmul.mubr.bf16.gmra.mxu0 %v2700
          %v2820 = vpop.f32.mrf.mxu0
          %v2821 = vadd.f32 %v2728, %v2820
          %v2822 = vpop.f32.mrf.mxu0
          %v2823 = vpop.f32.mrf.mxu0
          %v2824 = vadd.f32 %v2728, %v2823
          %v2825 = vpop.f32.mrf.mxu0
          %2826 = vmatprep.mubr.bf16.mxu0 0
          %2827 = vmatmul.mubr.bf16.gmra.mxu0 %v2701
          %v2828 = vpop.f32.mrf.mxu0
          %v2829 = vadd.f32 %v2728, %v2828
          %v2830 = vpop.f32.mrf.mxu0
          %v2831 = vpop.f32.mrf.mxu0
          %v2832 = vadd.f32 %v2728, %v2831
          %v2833 = vpop.f32.mrf.mxu0
          %2834 = vmatprep.mubr.bf16.mxu0 0
          %2835 = vmatmul.mubr.bf16.gmra.mxu0 %v2702
          %v2836 = vpop.f32.mrf.mxu0
          %v2837 = vadd.f32 %v2728, %v2836
          %v2838 = vpop.f32.mrf.mxu0
          %v2839 = vpop.f32.mrf.mxu0
          %v2840 = vadd.f32 %v2728, %v2839
          %v2841 = vpop.f32.mrf.mxu0
          %2842 = vmatprep.mubr.bf16.mxu0 0
          %2843 = vmatmul.mubr.bf16.gmra.mxu0 %v2703
          %v2844 = vpop.f32.mrf.mxu0
          %v2845 = vadd.f32 %v2728, %v2844
          %v2846 = vpop.f32.mrf.mxu0
          %v2847 = vpop.f32.mrf.mxu0
          %v2848 = vadd.f32 %v2728, %v2847
          %v2849 = vpop.f32.mrf.mxu0
          %2850 = vmatprep.mubr.bf16.mxu0 0
          %2851 = vmatmul.mubr.bf16.gmra.mxu0 %v2704
          %v2852 = vpop.f32.mrf.mxu0
          %v2853 = vadd.f32 %v2728, %v2852
          %v2854 = vpop.f32.mrf.mxu0
          %v2855 = vpop.f32.mrf.mxu0
          %v2856 = vadd.f32 %v2728, %v2855
          %v2857 = vpop.f32.mrf.mxu0
          %2858 = vmatprep.mubr.bf16.mxu0 0
          %2859 = vmatmul.mubr.bf16.gmra.mxu0 %v2705
          %v2860 = vpop.f32.mrf.mxu0
          %v2861 = vadd.f32 %v2728, %v2860
          %v2862 = vpop.f32.mrf.mxu0
          %v2863 = vpop.f32.mrf.mxu0
          %v2864 = vadd.f32 %v2728, %v2863
          %v2865 = vpop.f32.mrf.mxu0
          %2866 = vmatprep.mubr.bf16.mxu0 0
          %2867 = vmatmul.mubr.bf16.gmra.mxu0 %v2706
          %v2868 = vpop.f32.mrf.mxu0
          %v2869 = vadd.f32 %v2728, %v2868
          %v2870 = vpop.f32.mrf.mxu0
          %v2871 = vpop.f32.mrf.mxu0
          %v2872 = vadd.f32 %v2728, %v2871
          %v2873 = vpop.f32.mrf.mxu0
          %2874 = vdwg.mxu0
          %v2875 = vmax.f32 %v2813, 0.0
          %v2876 = vmax.f32 %v2816, 0.0
          %v2877 = vmax.f32 %v2821, 0.0
          %v2878 = vmax.f32 %v2824, 0.0
          %v2879 = vmax.f32 %v2829, 0.0
          %v2880 = vmax.f32 %v2832, 0.0
          %v2881 = vmax.f32 %v2837, 0.0
          %v2882 = vmax.f32 %v2840, 0.0
          %v2883 = vmax.f32 %v2845, 0.0
          %v2884 = vmax.f32 %v2848, 0.0
          %v2885 = vmax.f32 %v2853, 0.0
          %v2886 = vmax.f32 %v2856, 0.0
          %v2887 = vmax.f32 %v2861, 0.0
          %v2888 = vmax.f32 %v2864, 0.0
          %v2889 = vmax.f32 %v2869, 0.0
          %v2890 = vmax.f32 %v2872, 0.0
          %v2891 = vpack.c.bf16 %v2876, %v2875
          %v2892 = vpack.c.bf16 %v2878, %v2877
          %v2893 = vpack.c.bf16 %v2880, %v2879
          %v2894 = vpack.c.bf16 %v2882, %v2881
          %v2895 = vpack.c.bf16 %v2884, %v2883
          %v2896 = vpack.c.bf16 %v2886, %v2885
          %v2897 = vpack.c.bf16 %v2888, %v2887
          %v2898 = vpack.c.bf16 %v2890, %v2889
          %v2899 = vld [vmem:[#allocation14] sm:$0xf]
          %v2900 = vld [vmem:[#allocation14 + $0x4] sm:$0xf]
          %v2901 = vld [vmem:[#allocation14 + $0x8] sm:$0xf]
          %v2902 = vld [vmem:[#allocation14 + $0xc] sm:$0xf]
          %v2903 = vld [vmem:[#allocation14 + $0x10] sm:$0xf]
          %v2904 = vld [vmem:[#allocation14 + $0x14] sm:$0xf]
          %v2905 = vld [vmem:[#allocation14 + $0x18] sm:$0xf]
          %v2906 = vld [vmem:[#allocation14 + $0x1c] sm:$0xf]
          %v2907 = vld [vmem:[#allocation14 + $0x20] sm:$0xf]
          %v2908 = vld [vmem:[#allocation14 + $0x24] sm:$0xf]
          %v2909 = vld [vmem:[#allocation14 + $0x28] sm:$0xf]
          %v2910 = vld [vmem:[#allocation14 + $0x2c] sm:$0xf]
          %v2911 = vld [vmem:[#allocation14 + $0x30] sm:$0xf]
          %v2912 = vld [vmem:[#allocation14 + $0x34] sm:$0xf]
          %v2913 = vld [vmem:[#allocation14 + $0x38] sm:$0xf]
          %v2914 = vld [vmem:[#allocation14 + $0x3c] sm:$0xf]
          %v2915 = vld [vmem:[%s12] sm:$0x1]
          %v2917 = vlaneseq
          %v2918 = vshrl.u32 %v2917, 7
          %v2919 = vsub.s32 0, %v2918
          %v2920 = vrot.slane %v2915, %v2919
          %v2938 = vunpack.c.l.b16 %v2899
          %v2939 = vunpack.c.l.b16 %v2900
          %v2940 = vunpack.c.l.b16 %v2901
          %v2941 = vunpack.c.l.b16 %v2902
          %v2942 = vunpack.c.l.b16 %v2903
          %v2943 = vunpack.c.l.b16 %v2904
          %v2944 = vunpack.c.l.b16 %v2905
          %v2945 = vunpack.c.l.b16 %v2906
          %v2946 = vunpack.c.l.b16 %v2907
          %v2947 = vunpack.c.l.b16 %v2908
          %v2948 = vunpack.c.l.b16 %v2909
          %v2949 = vunpack.c.l.b16 %v2910
          %v2950 = vunpack.c.l.b16 %v2911
          %v2951 = vunpack.c.l.b16 %v2912
          %v2952 = vunpack.c.l.b16 %v2913
          %v2953 = vunpack.c.l.b16 %v2914
          %v2954 = vpack.c.b16 %v2939, %v2938
          %v2955 = vpack.c.b16 %v2941, %v2940
          %v2956 = vpack.c.b16 %v2943, %v2942
          %v2957 = vpack.c.b16 %v2945, %v2944
          %v2958 = vpack.c.b16 %v2947, %v2946
          %v2959 = vpack.c.b16 %v2949, %v2948
          %v2960 = vpack.c.b16 %v2951, %v2950
          %v2961 = vpack.c.b16 %v2953, %v2952
          %2970 = vmatprep.subr.bf16.mxu0 0
          %2971 = vmatpush1.bf16.msra.mxu0 %v2961
          %2972 = vmatprep.subr.bf16.mxu0 0
          %2973 = vmatpush1.bf16.msra.mxu0 %v2960
          %2974 = vmatprep.subr.bf16.mxu0 0
          %2975 = vmatpush1.bf16.msra.mxu0 %v2959
          %2976 = vmatprep.subr.bf16.mxu0 0
          %2977 = vmatpush1.bf16.msra.mxu0 %v2958
          %2978 = vmatprep.subr.bf16.mxu0 0
          %2979 = vmatpush1.bf16.msra.mxu0 %v2957
          %2980 = vmatprep.subr.bf16.mxu0 0
          %2981 = vmatpush1.bf16.msra.mxu0 %v2956
          %2982 = vmatprep.subr.bf16.mxu0 0
          %2983 = vmatpush1.bf16.msra.mxu0 %v2955
          %2984 = vmatprep.subr.bf16.mxu0 0
          %2985 = vmatpush1.bf16.msra.mxu0 %v2954
          %2986 = vmatprep.subr.bf16.mxu0 0
          %2987 = vmatpush2.bf16.msra.mxu0 0
          %2988 = vmatprep.subr.bf16.mxu0 0
          %2989 = vmatpush2.bf16.msra.mxu0 0
          %2990 = vmatprep.subr.bf16.mxu0 0
          %2991 = vmatpush2.bf16.msra.mxu0 0
          %2992 = vmatprep.subr.bf16.mxu0 0
          %2993 = vmatpush2.bf16.msra.mxu0 0
          %2994 = vmatprep.subr.bf16.mxu0 0
          %2995 = vmatpush2.bf16.msra.mxu0 0
          %2996 = vmatprep.subr.bf16.mxu0 0
          %2997 = vmatpush2.bf16.msra.mxu0 0
          %2998 = vmatprep.subr.bf16.mxu0 0
          %2999 = vmatpush2.bf16.msra.mxu0 0
          %3000 = vmatprep.subr.bf16.mxu0 0
          %3001 = vmatpush2.bf16.msra.mxu0 0
          %3002 = vmatprep.mubr.bf16.mxu0 0
          %3003 = vmatmul.mubr.bf16.gmra.mxu0 %v2891
          %v3004 = vpop.f32.mrf.mxu0
          %v3005 = vadd.f32 %v2920, %v3004
          %v3006 = vpop.f32.mrf.mxu0
          %v3007 = vpop.f32.mrf.mxu0
          %v3008 = vadd.f32 %v2920, %v3007
          %v3009 = vpop.f32.mrf.mxu0
          %3010 = vmatprep.mubr.bf16.mxu0 0
          %3011 = vmatmul.mubr.bf16.gmra.mxu0 %v2892
          %v3012 = vpop.f32.mrf.mxu0
          %v3013 = vadd.f32 %v2920, %v3012
          %v3014 = vpop.f32.mrf.mxu0
          %v3015 = vpop.f32.mrf.mxu0
          %v3016 = vadd.f32 %v2920, %v3015
          %v3017 = vpop.f32.mrf.mxu0
          %3018 = vmatprep.mubr.bf16.mxu0 0
          %3019 = vmatmul.mubr.bf16.gmra.mxu0 %v2893
          %v3020 = vpop.f32.mrf.mxu0
          %v3021 = vadd.f32 %v2920, %v3020
          %v3022 = vpop.f32.mrf.mxu0
          %v3023 = vpop.f32.mrf.mxu0
          %v3024 = vadd.f32 %v2920, %v3023
          %v3025 = vpop.f32.mrf.mxu0
          %3026 = vmatprep.mubr.bf16.mxu0 0
          %3027 = vmatmul.mubr.bf16.gmra.mxu0 %v2894
          %v3028 = vpop.f32.mrf.mxu0
          %v3029 = vadd.f32 %v2920, %v3028
          %v3030 = vpop.f32.mrf.mxu0
          %v3031 = vpop.f32.mrf.mxu0
          %v3032 = vadd.f32 %v2920, %v3031
          %v3033 = vpop.f32.mrf.mxu0
          %3034 = vmatprep.mubr.bf16.mxu0 0
          %3035 = vmatmul.mubr.bf16.gmra.mxu0 %v2895
          %v3036 = vpop.f32.mrf.mxu0
          %v3037 = vadd.f32 %v2920, %v3036
          %v3038 = vpop.f32.mrf.mxu0
          %v3039 = vpop.f32.mrf.mxu0
          %v3040 = vadd.f32 %v2920, %v3039
          %v3041 = vpop.f32.mrf.mxu0
          %3042 = vmatprep.mubr.bf16.mxu0 0
          %3043 = vmatmul.mubr.bf16.gmra.mxu0 %v2896
          %v3044 = vpop.f32.mrf.mxu0
          %v3045 = vadd.f32 %v2920, %v3044
          %v3046 = vpop.f32.mrf.mxu0
          %v3047 = vpop.f32.mrf.mxu0
          %v3048 = vadd.f32 %v2920, %v3047
          %v3049 = vpop.f32.mrf.mxu0
          %3050 = vmatprep.mubr.bf16.mxu0 0
          %3051 = vmatmul.mubr.bf16.gmra.mxu0 %v2897
          %v3052 = vpop.f32.mrf.mxu0
          %v3053 = vadd.f32 %v2920, %v3052
          %v3054 = vpop.f32.mrf.mxu0
          %v3055 = vpop.f32.mrf.mxu0
          %v3056 = vadd.f32 %v2920, %v3055
          %v3057 = vpop.f32.mrf.mxu0
          %3058 = vmatprep.mubr.bf16.mxu0 0
          %3059 = vmatmul.mubr.bf16.gmra.mxu0 %v2898
          %v3060 = vpop.f32.mrf.mxu0
          %v3061 = vadd.f32 %v2920, %v3060
          %v3062 = vpop.f32.mrf.mxu0
          %v3063 = vpop.f32.mrf.mxu0
          %v3064 = vadd.f32 %v2920, %v3063
          %v3065 = vpop.f32.mrf.mxu0
          %3066 = vdwg.mxu0
          %3067 = vst [vmem:[#allocation16] sm:$0xff] %v3005
          %3068 = vst [vmem:[#allocation16 + $0x8] sm:$0xff] %v3008
          %3069 = vst [vmem:[#allocation16 + $0x10] sm:$0xff] %v3013
          %3070 = vst [vmem:[#allocation16 + $0x18] sm:$0xff] %v3016
          %3071 = vst [vmem:[#allocation16 + $0x20] sm:$0xff] %v3021
          %3072 = vst [vmem:[#allocation16 + $0x28] sm:$0xff] %v3024
          %3073 = vst [vmem:[#allocation16 + $0x30] sm:$0xff] %v3029
          %3074 = vst [vmem:[#allocation16 + $0x38] sm:$0xff] %v3032
          %3075 = vst [vmem:[#allocation16 + $0x40] sm:$0xff] %v3037
          %3076 = vst [vmem:[#allocation16 + $0x48] sm:$0xff] %v3040
          %3077 = vst [vmem:[#allocation16 + $0x50] sm:$0xff] %v3045
          %3078 = vst [vmem:[#allocation16 + $0x58] sm:$0xff] %v3048
          %3079 = vst [vmem:[#allocation16 + $0x60] sm:$0xff] %v3053
          %3080 = vst [vmem:[#allocation16 + $0x68] sm:$0xff] %v3056
          %3081 = vst [vmem:[#allocation16 + $0x70] sm:$0xff] %v3061
          %3082 = vst [vmem:[#allocation16 + $0x78] sm:$0xff] %v3064
        $region138: #{tpu_custom_call.1} parent=101 // pred_fallthru
          _
        // Predicated region
        $region139: #{tpu_custom_call.1} parent=101 // pred_check
          %p3083 = pneg %p373
        $region140: #{tpu_custom_call.1} parent=101 // pred_check_branch
          %3085 = sbr.rel (%p3083) target = $region142
        $region141: #{tpu_custom_call.1} parent=101 // pred_region
          %s3086 = smul.u32 16, %s37
          %s3088 = ssub.s32 2048, 2048
          %3089 = vsyncadd [#allocation7], %s3088
          %s3090 = smul.addr %s3086, 128
          %s3091 = scalar_lea.hbm %s13, %s3090
          %s3092 = sshll.u32 [#allocation16], 4
          %s3093 = int_to_ptr.vmem [resolvable:$true] %s3092
          %3098 = dma.vmem_to_hbm [thread:$0]  %s3093, 2048, %s3091, [#allocation7], 128, 128, 8
        $region142: #{tpu_custom_call.1} parent=101 // pred_fallthru
          _
        // Predicated region
        $region143: #{tpu_custom_call.1} parent=101 // pred_check
          %p3099 = pneg %p373
        $region144: #{tpu_custom_call.1} parent=101 // pred_check_branch
          %3101 = sbr.rel (%p3099) target = $region146
        $region145: #{tpu_custom_call.1} parent=101 // pred_region
          %3102 = dma.done [#allocation7], 2048
        $region146: #{tpu_custom_call.1} parent=101 // pred_fallthru
          _
      $region102: #{tpu_custom_call.1} parent=5 // pred_fallthru
        _
      %p3103 = scmp.le.s32.totalorder 2, %s28
      // Predicated region
      $region147: #{tpu_custom_call.1} parent=5 // pred_check
        %p3104 = pneg %p3103
      $region148: #{tpu_custom_call.1} parent=5 // pred_check_branch
        %3106 = sbr.rel (%p3104) target = $region150
      $region149: #{tpu_custom_call.1} parent=5 // pred_region
        %s3107 = ssub.s32 %s28, 2
      $region150: #{tpu_custom_call.1} parent=5 // pred_fallthru
        _
    $region6: #{tpu_custom_call.1} parent=1 // loop_footer
      %s32 = sadd.s32 1, %s28
    $region7: #{tpu_custom_call.1} parent=1 // loop_footer_branch
      %27 = sbr.rel target = $region3
    $region8: #{tpu_custom_call.1} parent=1 // loop_exit
      _
    %3108 = vsyncpa [#allocation6], 1
    %s3109 = scalar_lea.sflag [#allocation6], 1
    %3110 = vsyncpa %s3109, 1
    %3111 = vsyncpa [#allocation9], 1
    %s3112 = scalar_lea.sflag [#allocation9], 1
    %3113 = vsyncpa %s3112, 1
    %3114 = vsyncpa [#allocation12], 1
    %3115 = vsyncpa [#allocation15], 1
    %3116 = vsyncpa [#allocation7], 1
    %s3117 = scalar_lea.sflag [#allocation7], 1
    %3118 = vsyncpa %s3117, 1

</llo_original>
